<compile_context>
chip_gen: v6e
topology: v6e:2x2x1
jax: 0.10.0
libtpu: 0.0.40
codegen_flags: <defaults>
</compile_context>

<pallas_src>
import functools

import jax
import jax.numpy as jnp
from jax.experimental import pallas as pl
from jax.experimental.pallas import tpu as pltpu


def _round_up(n, m):
    return ((n + m - 1) // m) * m


# ----------------------------------------------------------------------------
# Pallas kernel
# ----------------------------------------------------------------------------
def rnn_hist_disc_kernel(num_layers, hidden_p, seq_len, x_ref, *refs):
    """refs = [wih_t, whh_t, b_fold, bhh_n] * num_layers + [lin_w, lin_b, out_ref].

    wih_t : (D_in, 3*Hp)   gate-major columns [r | z | n], each padded to Hp lanes
    whh_t : (Hp, 3*Hp)
    b_fold: (1, 3*Hp)      = bih + [bhh_r, bhh_z, 0]   (folded into hoisted proj)
    bhh_n : (1, Hp)        stays inside the loop (under r * (W_hn h + b_hn))
    lin_w : (1, Hp), lin_b: (1, 1)
    x_ref : (T, Bp, D_in)  time-major, batch padded to a multiple of 8
    out   : (Bp, 1)        sigmoid(logits)
    """
    out_ref = refs[-1]
    lin_b = refs[-2][...]                          # (1, 1)
    lin_w = refs[-3][...]                          # (1, Hp), zero padded
    layer_refs = refs[:-3]

    T = seq_len
    Hp = hidden_p
    Bp = x_ref.shape[1]

    # Current layer input flattened to (T*Bp, D_in) for the hoisted projection.
    x_flat = x_ref[...].astype(jnp.float32).reshape(T * Bp, x_ref.shape[2])

    h_last = None
    for l in range(num_layers):
        wih_t = layer_refs[4 * l][...]             # (D_in, 3Hp)
        whh_t = layer_refs[4 * l + 1][...]         # (Hp, 3Hp)
        b_fold = layer_refs[4 * l + 2][...]        # (1, 3Hp)
        bhh_n = layer_refs[4 * l + 3][...]         # (1, Hp)

        # Hoisted: input projection (+ folded biases) for ALL timesteps at once.
        gi_flat = jnp.dot(x_flat, wih_t,
                          preferred_element_type=jnp.float32) + b_fold  # (T*Bp, 3Hp)

        h = jnp.zeros((Bp, Hp), jnp.float32)
        outs = []
        for t in range(T):                         # fully unrolled recurrence
            gi = gi_flat[t * Bp:(t + 1) * Bp, :]   # (Bp, 3Hp), sublane-aligned slice
            gh = jnp.dot(h, whh_t, preferred_element_type=jnp.float32)
            # Lane-aligned gate slices (multiples of 128).
            r = jax.nn.sigmoid(gi[:, 0:Hp] + gh[:, 0:Hp])
            z = jax.nn.sigmoid(gi[:, Hp:2 * Hp] + gh[:, Hp:2 * Hp])
            n = jnp.tanh(gi[:, 2 * Hp:] + r * (gh[:, 2 * Hp:] + bhh_n))
            h = (1.0 - z) * n + z * h
            if l < num_layers - 1:
                outs.append(h)
        if l < num_layers - 1:
            # Time-major stack (T*Bp, Hp) feeding the next layer's hoisted matmul.
            x_flat = jnp.concatenate(outs, axis=0)
        h_last = h

    # Final Linear(H, 1): VPU multiply + lane reduction (avoids an N=1 MXU op).
    # Padded lanes of h_last / lin_w are zero so they contribute nothing.
    logits = jnp.sum(h_last * lin_w, axis=-1, keepdims=True) + lin_b
    out_ref[...] = jax.nn.sigmoid(logits)          # (Bp, 1)


# ----------------------------------------------------------------------------
# One-time parameter packing (transpose + gate padding + bias folding)
# ----------------------------------------------------------------------------
def prepare_params(params, *, input_size, hidden_size, num_layers):
    H = hidden_size
    Hp = _round_up(max(H, 1), 128)

    def pack_w_t(w, d_in, d_in_p):
        # w: (3H, d_in), torch gate order [r|z|n] -> (d_in_p, 3Hp) gate-major cols.
        cols = []
        for g in range(3):
            wg = jnp.asarray(w[g * H:(g + 1) * H, :], jnp.float32).T   # (d_in, H)
            wg = jnp.pad(wg, ((0, d_in_p - d_in), (0, Hp - H)))
            cols.append(wg)
        return jnp.concatenate(cols, axis=1)                           # (d_in_p, 3Hp)

    def pack_b(b):
        return jnp.concatenate(
            [jnp.pad(jnp.asarray(b[g * H:(g + 1) * H], jnp.float32), (0, Hp - H))
             for g in range(3)])

    layers = []
    for l in range(num_layers):
        wih, whh, bih, bhh = params["gru"][l]
        d_in = input_size if l == 0 else H
        d_in_p = input_size if l == 0 else Hp      # layer>0 input is padded hidden
        wih_t = pack_w_t(wih, d_in, d_in_p)        # (d_in_p, 3Hp)
        whh_t = pack_w_t(whh, H, Hp)               # (Hp, 3Hp)
        bih_p = pack_b(bih)
        bhh_p = pack_b(bhh)
        b_fold = (bih_p + bhh_p.at[2 * Hp:].set(0.0)).reshape(1, 3 * Hp)
        bhh_n = bhh_p[2 * Hp:].reshape(1, Hp)
        layers.append((wih_t, whh_t, b_fold, bhh_n))

    lin_w = jnp.pad(jnp.asarray(params["lin_w"], jnp.float32),
                    ((0, 0), (0, Hp - H)))                             # (1, Hp)
    lin_b = jnp.asarray(params["lin_b"], jnp.float32).reshape(1, 1)    # (1, 1)
    return {"layers": layers, "lin_w": lin_w, "lin_b": lin_b, "Hp": Hp}


# ----------------------------------------------------------------------------
# Wrapper
# ----------------------------------------------------------------------------
def rnn_histogram_discriminator(x, prep, *, num_layers, hidden_size):
    """x: (B, T, input_size) float32.  Returns (B,) float32 (matches module)."""
    B, T, D = x.shape
    Bp = _round_up(max(B, 1), 8)
    Hp = prep["Hp"]

    # Time-major + batch padded to a full 8-sublane tile.
    x_tbd = jnp.transpose(x, (1, 0, 2)).astype(jnp.float32)
    if Bp != B:
        x_tbd = jnp.pad(x_tbd, ((0, 0), (0, Bp - B), (0, 0)))

    flat_inputs = [x_tbd]
    for l in range(num_layers):
        flat_inputs += list(prep["layers"][l])
    flat_inputs += [prep["lin_w"], prep["lin_b"]]

    kernel = functools.partial(rnn_hist_disc_kernel, num_layers, Hp, T)
    out = pl.pallas_call(
        kernel,
        out_shape=jax.ShapeDtypeStruct((Bp, 1), jnp.float32),
        in_specs=[pl.BlockSpec(memory_space=pltpu.MemorySpace.VMEM)
                  for _ in flat_inputs],
        out_specs=pl.BlockSpec(memory_space=pltpu.MemorySpace.VMEM),
        compiler_params=pltpu.CompilerParams(vmem_limit_bytes=32 * 1024 * 1024),
    )(*flat_inputs)
    return out[:B, 0]                              # squeeze(dim=1)


# ----------------------------------------------------------------------------
# Deterministic parameter init (PyTorch-style uniform(-1/sqrt(H), 1/sqrt(H)))
# ----------------------------------------------------------------------------
def init_params(key, input_size, hidden_size, num_layers):
    k = 1.0 / jnp.sqrt(hidden_size)
    gru = []
    for l in range(num_layers):
        d_in = input_size if l == 0 else hidden_size
        key, k1, k2, k3, k4 = jax.random.split(key, 5)
        wih = jax.random.uniform(k1, (3 * hidden_size, d_in), jnp.float32, -k, k)
        whh = jax.random.uniform(k2, (3 * hidden_size, hidden_size), jnp.float32, -k, k)
        bih = jax.random.uniform(k3, (3 * hidden_size,), jnp.float32, -k, k)
        bhh = jax.random.uniform(k4, (3 * hidden_size,), jnp.float32, -k, k)
        gru.append((wih, whh, bih, bhh))
    key, k5, k6 = jax.random.split(key, 3)
    lin_w = jax.random.uniform(k5, (1, hidden_size), jnp.float32, -k, k)
    lin_b = jax.random.uniform(k6, (1,), jnp.float32, -k, k)
    return {"gru": gru, "lin_w": lin_w, "lin_b": lin_b}


# ----------------------------------------------------------------------------
# Pure-JAX reference (PyTorch GRU semantics) for validation
# ----------------------------------------------------------------------------
def reference_forward(x, params, *, num_layers, hidden_size):
    B, T, _ = x.shape
    H = hidden_size
    hs = [jnp.zeros((B, H), jnp.float32) for _ in range(num_layers)]
    for t in range(T):
        inp = x[:, t, :]
        for l in range(num_layers):
            wih, whh, bih, bhh = params["gru"][l]
            gi = inp @ wih.T + bih
            gh = hs[l] @ whh.T + bhh
            r = jax.nn.sigmoid(gi[:, :H] + gh[:, :H])
            z = jax.nn.sigmoid(gi[:, H:2 * H] + gh[:, H:2 * H])
            n = jnp.tanh(gi[:, 2 * H:] + r * gh[:, 2 * H:])
            hs[l] = (1.0 - z) * n + z * hs[l]
            inp = hs[l]
    logits = hs[-1] @ params["lin_w"].T + params["lin_b"]
    return jax.nn.sigmoid(logits)[:, 0]


# ----------------------------------------------------------------------------
if __name__ == "__main__":
    INPUT_SIZE = 16
    HIDDEN_SIZE = 32
    NUM_LAYERS = 2
    BATCH = 2
    SEQ = 8

    key = jax.random.PRNGKey(0)
    key, xk = jax.random.split(key)
    x = jax.random.normal(xk, (BATCH, SEQ, INPUT_SIZE), jnp.float32)
    params = init_params(key, INPUT_SIZE, HIDDEN_SIZE, NUM_LAYERS)

    prep = prepare_params(params, input_size=INPUT_SIZE,
                          hidden_size=HIDDEN_SIZE, num_layers=NUM_LAYERS)

    out = rnn_histogram_discriminator(
        x, prep, num_layers=NUM_LAYERS, hidden_size=HIDDEN_SIZE)
    out = jax.block_until_ready(out)

    ref = reference_forward(x, params, num_layers=NUM_LAYERS, hidden_size=HIDDEN_SIZE)
    assert out.shape == (BATCH,), out.shape
    assert jnp.allclose(out, ref, atol=1e-5, rtol=1e-5), (out, ref)

    print("KERNEL_OK")
</pallas_src>

<mosaic_0001>
module attributes {stable_mosaic.version = 11 : i64} {
  func.func @rnn_hist_disc_kernel(%arg0: memref<8x8x16xf32, #tpu.memory_space<vmem>>, %arg1: memref<16x384xf32, #tpu.memory_space<vmem>>, %arg2: memref<128x384xf32, #tpu.memory_space<vmem>>, %arg3: memref<1x384xf32, #tpu.memory_space<vmem>>, %arg4: memref<1x128xf32, #tpu.memory_space<vmem>>, %arg5: memref<128x384xf32, #tpu.memory_space<vmem>>, %arg6: memref<128x384xf32, #tpu.memory_space<vmem>>, %arg7: memref<1x384xf32, #tpu.memory_space<vmem>>, %arg8: memref<1x128xf32, #tpu.memory_space<vmem>>, %arg9: memref<1x128xf32, #tpu.memory_space<vmem>>, %arg10: memref<1x1xf32, #tpu.memory_space<vmem>>, %arg11: memref<8x1xf32, #tpu.memory_space<vmem>>) attributes {dimension_semantics = [], scalar_prefetch = 0 : i64, scratch_operands = 0 : i64, tpu.core_type = #tpu.core_type<tc>} {
    %c0 = arith.constant 0 : index
    %c0_0 = arith.constant 0 : index
    %0 = vector.load %arg10[%c0, %c0_0] : memref<1x1xf32, #tpu.memory_space<vmem>>, vector<1x1xf32>
    %c0_1 = arith.constant 0 : index
    %c0_2 = arith.constant 0 : index
    %1 = vector.load %arg9[%c0_1, %c0_2] : memref<1x128xf32, #tpu.memory_space<vmem>>, vector<1x128xf32>
    %c0_3 = arith.constant 0 : index
    %c0_4 = arith.constant 0 : index
    %c0_5 = arith.constant 0 : index
    %2 = vector.load %arg0[%c0_3, %c0_4, %c0_5] : memref<8x8x16xf32, #tpu.memory_space<vmem>>, vector<8x8x16xf32>
    %3 = vector.shape_cast %2 : vector<8x8x16xf32> to vector<64x16xf32>
    %c0_6 = arith.constant 0 : index
    %c0_7 = arith.constant 0 : index
    %4 = vector.load %arg1[%c0_6, %c0_7] : memref<16x384xf32, #tpu.memory_space<vmem>>, vector<16x384xf32>
    %c0_8 = arith.constant 0 : index
    %c0_9 = arith.constant 0 : index
    %5 = vector.load %arg2[%c0_8, %c0_9] : memref<128x384xf32, #tpu.memory_space<vmem>>, vector<128x384xf32>
    %c0_10 = arith.constant 0 : index
    %c0_11 = arith.constant 0 : index
    %6 = vector.load %arg3[%c0_10, %c0_11] : memref<1x384xf32, #tpu.memory_space<vmem>>, vector<1x384xf32>
    %c0_12 = arith.constant 0 : index
    %c0_13 = arith.constant 0 : index
    %7 = vector.load %arg4[%c0_12, %c0_13] : memref<1x128xf32, #tpu.memory_space<vmem>>, vector<1x128xf32>
    %cst = arith.constant dense<0.000000e+00> : vector<64x384xf32>
    %8 = tpu.matmul %3, %4, %cst {dimension_numbers = #tpu.dot_dimension_numbers<[1], [0], [0], [1], [0, 0, 1, 1], [], []>} : vector<64x16xf32>, vector<16x384xf32>, vector<64x384xf32> -> vector<64x384xf32>
    %9 = vector.broadcast %6 : vector<1x384xf32> to vector<64x384xf32>
    %10 = arith.addf %8, %9 : vector<64x384xf32>
    %cst_14 = arith.constant 0.000000e+00 : f32
    %11 = vector.broadcast %cst_14 : f32 to vector<8x128xf32>
    %12 = vector.extract_strided_slice %10 {offsets = [0, 0], sizes = [8, 384], strides = [1, 1]} : vector<64x384xf32> to vector<8x384xf32>
    %cst_15 = arith.constant dense<0.000000e+00> : vector<8x384xf32>
    %13 = tpu.matmul %11, %5, %cst_15 {dimension_numbers = #tpu.dot_dimension_numbers<[1], [0], [0], [1], [0, 0, 1, 1], [], []>} : vector<8x128xf32>, vector<128x384xf32>, vector<8x384xf32> -> vector<8x384xf32>
    %14 = vector.extract_strided_slice %12 {offsets = [0, 0], sizes = [8, 128], strides = [1, 1]} : vector<8x384xf32> to vector<8x128xf32>
    %15 = vector.extract_strided_slice %13 {offsets = [0, 0], sizes = [8, 128], strides = [1, 1]} : vector<8x384xf32> to vector<8x128xf32>
    %16 = arith.addf %14, %15 : vector<8x128xf32>
    %17 = arith.negf %16 : vector<8x128xf32>
    %18 = math.exp %17 : vector<8x128xf32>
    %cst_16 = arith.constant 1.000000e+00 : f32
    %19 = vector.broadcast %cst_16 : f32 to vector<8x128xf32>
    %20 = arith.addf %19, %18 : vector<8x128xf32>
    %21 = arith.divf %19, %20 : vector<8x128xf32>
    %22 = vector.extract_strided_slice %12 {offsets = [0, 128], sizes = [8, 128], strides = [1, 1]} : vector<8x384xf32> to vector<8x128xf32>
    %23 = vector.extract_strided_slice %13 {offsets = [0, 128], sizes = [8, 128], strides = [1, 1]} : vector<8x384xf32> to vector<8x128xf32>
    %24 = arith.addf %22, %23 : vector<8x128xf32>
    %25 = arith.negf %24 : vector<8x128xf32>
    %26 = math.exp %25 : vector<8x128xf32>
    %cst_17 = arith.constant 1.000000e+00 : f32
    %27 = vector.broadcast %cst_17 : f32 to vector<8x128xf32>
    %28 = arith.addf %27, %26 : vector<8x128xf32>
    %29 = arith.divf %27, %28 : vector<8x128xf32>
    %30 = vector.extract_strided_slice %12 {offsets = [0, 256], sizes = [8, 128], strides = [1, 1]} : vector<8x384xf32> to vector<8x128xf32>
    %31 = vector.extract_strided_slice %13 {offsets = [0, 256], sizes = [8, 128], strides = [1, 1]} : vector<8x384xf32> to vector<8x128xf32>
    %32 = vector.broadcast %7 : vector<1x128xf32> to vector<8x128xf32>
    %33 = arith.addf %31, %32 : vector<8x128xf32>
    %34 = arith.mulf %21, %33 : vector<8x128xf32>
    %35 = arith.addf %30, %34 : vector<8x128xf32>
    %36 = math.tanh %35 : vector<8x128xf32>
    %cst_18 = arith.constant 1.000000e+00 : f32
    %37 = vector.broadcast %cst_18 : f32 to vector<8x128xf32>
    %38 = arith.subf %37, %29 : vector<8x128xf32>
    %39 = arith.mulf %38, %36 : vector<8x128xf32>
    %40 = arith.mulf %29, %11 : vector<8x128xf32>
    %41 = arith.addf %39, %40 : vector<8x128xf32>
    %42 = vector.extract_strided_slice %10 {offsets = [8, 0], sizes = [8, 384], strides = [1, 1]} : vector<64x384xf32> to vector<8x384xf32>
    %cst_19 = arith.constant dense<0.000000e+00> : vector<8x384xf32>
    %43 = tpu.matmul %41, %5, %cst_19 {dimension_numbers = #tpu.dot_dimension_numbers<[1], [0], [0], [1], [0, 0, 1, 1], [], []>} : vector<8x128xf32>, vector<128x384xf32>, vector<8x384xf32> -> vector<8x384xf32>
    %44 = vector.extract_strided_slice %42 {offsets = [0, 0], sizes = [8, 128], strides = [1, 1]} : vector<8x384xf32> to vector<8x128xf32>
    %45 = vector.extract_strided_slice %43 {offsets = [0, 0], sizes = [8, 128], strides = [1, 1]} : vector<8x384xf32> to vector<8x128xf32>
    %46 = arith.addf %44, %45 : vector<8x128xf32>
    %47 = arith.negf %46 : vector<8x128xf32>
    %48 = math.exp %47 : vector<8x128xf32>
    %cst_20 = arith.constant 1.000000e+00 : f32
    %49 = vector.broadcast %cst_20 : f32 to vector<8x128xf32>
    %50 = arith.addf %49, %48 : vector<8x128xf32>
    %51 = arith.divf %49, %50 : vector<8x128xf32>
    %52 = vector.extract_strided_slice %42 {offsets = [0, 128], sizes = [8, 128], strides = [1, 1]} : vector<8x384xf32> to vector<8x128xf32>
    %53 = vector.extract_strided_slice %43 {offsets = [0, 128], sizes = [8, 128], strides = [1, 1]} : vector<8x384xf32> to vector<8x128xf32>
    %54 = arith.addf %52, %53 : vector<8x128xf32>
    %55 = arith.negf %54 : vector<8x128xf32>
    %56 = math.exp %55 : vector<8x128xf32>
    %cst_21 = arith.constant 1.000000e+00 : f32
    %57 = vector.broadcast %cst_21 : f32 to vector<8x128xf32>
    %58 = arith.addf %57, %56 : vector<8x128xf32>
    %59 = arith.divf %57, %58 : vector<8x128xf32>
    %60 = vector.extract_strided_slice %42 {offsets = [0, 256], sizes = [8, 128], strides = [1, 1]} : vector<8x384xf32> to vector<8x128xf32>
    %61 = vector.extract_strided_slice %43 {offsets = [0, 256], sizes = [8, 128], strides = [1, 1]} : vector<8x384xf32> to vector<8x128xf32>
    %62 = vector.broadcast %7 : vector<1x128xf32> to vector<8x128xf32>
    %63 = arith.addf %61, %62 : vector<8x128xf32>
    %64 = arith.mulf %51, %63 : vector<8x128xf32>
    %65 = arith.addf %60, %64 : vector<8x128xf32>
    %66 = math.tanh %65 : vector<8x128xf32>
    %cst_22 = arith.constant 1.000000e+00 : f32
    %67 = vector.broadcast %cst_22 : f32 to vector<8x128xf32>
    %68 = arith.subf %67, %59 : vector<8x128xf32>
    %69 = arith.mulf %68, %66 : vector<8x128xf32>
    %70 = arith.mulf %59, %41 : vector<8x128xf32>
    %71 = arith.addf %69, %70 : vector<8x128xf32>
    %72 = vector.extract_strided_slice %10 {offsets = [16, 0], sizes = [8, 384], strides = [1, 1]} : vector<64x384xf32> to vector<8x384xf32>
    %cst_23 = arith.constant dense<0.000000e+00> : vector<8x384xf32>
    %73 = tpu.matmul %71, %5, %cst_23 {dimension_numbers = #tpu.dot_dimension_numbers<[1], [0], [0], [1], [0, 0, 1, 1], [], []>} : vector<8x128xf32>, vector<128x384xf32>, vector<8x384xf32> -> vector<8x384xf32>
    %74 = vector.extract_strided_slice %72 {offsets = [0, 0], sizes = [8, 128], strides = [1, 1]} : vector<8x384xf32> to vector<8x128xf32>
    %75 = vector.extract_strided_slice %73 {offsets = [0, 0], sizes = [8, 128], strides = [1, 1]} : vector<8x384xf32> to vector<8x128xf32>
    %76 = arith.addf %74, %75 : vector<8x128xf32>
    %77 = arith.negf %76 : vector<8x128xf32>
    %78 = math.exp %77 : vector<8x128xf32>
    %cst_24 = arith.constant 1.000000e+00 : f32
    %79 = vector.broadcast %cst_24 : f32 to vector<8x128xf32>
    %80 = arith.addf %79, %78 : vector<8x128xf32>
    %81 = arith.divf %79, %80 : vector<8x128xf32>
    %82 = vector.extract_strided_slice %72 {offsets = [0, 128], sizes = [8, 128], strides = [1, 1]} : vector<8x384xf32> to vector<8x128xf32>
    %83 = vector.extract_strided_slice %73 {offsets = [0, 128], sizes = [8, 128], strides = [1, 1]} : vector<8x384xf32> to vector<8x128xf32>
    %84 = arith.addf %82, %83 : vector<8x128xf32>
    %85 = arith.negf %84 : vector<8x128xf32>
    %86 = math.exp %85 : vector<8x128xf32>
    %cst_25 = arith.constant 1.000000e+00 : f32
    %87 = vector.broadcast %cst_25 : f32 to vector<8x128xf32>
    %88 = arith.addf %87, %86 : vector<8x128xf32>
    %89 = arith.divf %87, %88 : vector<8x128xf32>
    %90 = vector.extract_strided_slice %72 {offsets = [0, 256], sizes = [8, 128], strides = [1, 1]} : vector<8x384xf32> to vector<8x128xf32>
    %91 = vector.extract_strided_slice %73 {offsets = [0, 256], sizes = [8, 128], strides = [1, 1]} : vector<8x384xf32> to vector<8x128xf32>
    %92 = vector.broadcast %7 : vector<1x128xf32> to vector<8x128xf32>
    %93 = arith.addf %91, %92 : vector<8x128xf32>
    %94 = arith.mulf %81, %93 : vector<8x128xf32>
    %95 = arith.addf %90, %94 : vector<8x128xf32>
    %96 = math.tanh %95 : vector<8x128xf32>
    %cst_26 = arith.constant 1.000000e+00 : f32
    %97 = vector.broadcast %cst_26 : f32 to vector<8x128xf32>
    %98 = arith.subf %97, %89 : vector<8x128xf32>
    %99 = arith.mulf %98, %96 : vector<8x128xf32>
    %100 = arith.mulf %89, %71 : vector<8x128xf32>
    %101 = arith.addf %99, %100 : vector<8x128xf32>
    %102 = vector.extract_strided_slice %10 {offsets = [24, 0], sizes = [8, 384], strides = [1, 1]} : vector<64x384xf32> to vector<8x384xf32>
    %cst_27 = arith.constant dense<0.000000e+00> : vector<8x384xf32>
    %103 = tpu.matmul %101, %5, %cst_27 {dimension_numbers = #tpu.dot_dimension_numbers<[1], [0], [0], [1], [0, 0, 1, 1], [], []>} : vector<8x128xf32>, vector<128x384xf32>, vector<8x384xf32> -> vector<8x384xf32>
    %104 = vector.extract_strided_slice %102 {offsets = [0, 0], sizes = [8, 128], strides = [1, 1]} : vector<8x384xf32> to vector<8x128xf32>
    %105 = vector.extract_strided_slice %103 {offsets = [0, 0], sizes = [8, 128], strides = [1, 1]} : vector<8x384xf32> to vector<8x128xf32>
    %106 = arith.addf %104, %105 : vector<8x128xf32>
    %107 = arith.negf %106 : vector<8x128xf32>
    %108 = math.exp %107 : vector<8x128xf32>
    %cst_28 = arith.constant 1.000000e+00 : f32
    %109 = vector.broadcast %cst_28 : f32 to vector<8x128xf32>
    %110 = arith.addf %109, %108 : vector<8x128xf32>
    %111 = arith.divf %109, %110 : vector<8x128xf32>
    %112 = vector.extract_strided_slice %102 {offsets = [0, 128], sizes = [8, 128], strides = [1, 1]} : vector<8x384xf32> to vector<8x128xf32>
    %113 = vector.extract_strided_slice %103 {offsets = [0, 128], sizes = [8, 128], strides = [1, 1]} : vector<8x384xf32> to vector<8x128xf32>
    %114 = arith.addf %112, %113 : vector<8x128xf32>
    %115 = arith.negf %114 : vector<8x128xf32>
    %116 = math.exp %115 : vector<8x128xf32>
    %cst_29 = arith.constant 1.000000e+00 : f32
    %117 = vector.broadcast %cst_29 : f32 to vector<8x128xf32>
    %118 = arith.addf %117, %116 : vector<8x128xf32>
    %119 = arith.divf %117, %118 : vector<8x128xf32>
    %120 = vector.extract_strided_slice %102 {offsets = [0, 256], sizes = [8, 128], strides = [1, 1]} : vector<8x384xf32> to vector<8x128xf32>
    %121 = vector.extract_strided_slice %103 {offsets = [0, 256], sizes = [8, 128], strides = [1, 1]} : vector<8x384xf32> to vector<8x128xf32>
    %122 = vector.broadcast %7 : vector<1x128xf32> to vector<8x128xf32>
    %123 = arith.addf %121, %122 : vector<8x128xf32>
    %124 = arith.mulf %111, %123 : vector<8x128xf32>
    %125 = arith.addf %120, %124 : vector<8x128xf32>
    %126 = math.tanh %125 : vector<8x128xf32>
    %cst_30 = arith.constant 1.000000e+00 : f32
    %127 = vector.broadcast %cst_30 : f32 to vector<8x128xf32>
    %128 = arith.subf %127, %119 : vector<8x128xf32>
    %129 = arith.mulf %128, %126 : vector<8x128xf32>
    %130 = arith.mulf %119, %101 : vector<8x128xf32>
    %131 = arith.addf %129, %130 : vector<8x128xf32>
    %132 = vector.extract_strided_slice %10 {offsets = [32, 0], sizes = [8, 384], strides = [1, 1]} : vector<64x384xf32> to vector<8x384xf32>
    %cst_31 = arith.constant dense<0.000000e+00> : vector<8x384xf32>
    %133 = tpu.matmul %131, %5, %cst_31 {dimension_numbers = #tpu.dot_dimension_numbers<[1], [0], [0], [1], [0, 0, 1, 1], [], []>} : vector<8x128xf32>, vector<128x384xf32>, vector<8x384xf32> -> vector<8x384xf32>
    %134 = vector.extract_strided_slice %132 {offsets = [0, 0], sizes = [8, 128], strides = [1, 1]} : vector<8x384xf32> to vector<8x128xf32>
    %135 = vector.extract_strided_slice %133 {offsets = [0, 0], sizes = [8, 128], strides = [1, 1]} : vector<8x384xf32> to vector<8x128xf32>
    %136 = arith.addf %134, %135 : vector<8x128xf32>
    %137 = arith.negf %136 : vector<8x128xf32>
    %138 = math.exp %137 : vector<8x128xf32>
    %cst_32 = arith.constant 1.000000e+00 : f32
    %139 = vector.broadcast %cst_32 : f32 to vector<8x128xf32>
    %140 = arith.addf %139, %138 : vector<8x128xf32>
    %141 = arith.divf %139, %140 : vector<8x128xf32>
    %142 = vector.extract_strided_slice %132 {offsets = [0, 128], sizes = [8, 128], strides = [1, 1]} : vector<8x384xf32> to vector<8x128xf32>
    %143 = vector.extract_strided_slice %133 {offsets = [0, 128], sizes = [8, 128], strides = [1, 1]} : vector<8x384xf32> to vector<8x128xf32>
    %144 = arith.addf %142, %143 : vector<8x128xf32>
    %145 = arith.negf %144 : vector<8x128xf32>
    %146 = math.exp %145 : vector<8x128xf32>
    %cst_33 = arith.constant 1.000000e+00 : f32
    %147 = vector.broadcast %cst_33 : f32 to vector<8x128xf32>
    %148 = arith.addf %147, %146 : vector<8x128xf32>
    %149 = arith.divf %147, %148 : vector<8x128xf32>
    %150 = vector.extract_strided_slice %132 {offsets = [0, 256], sizes = [8, 128], strides = [1, 1]} : vector<8x384xf32> to vector<8x128xf32>
    %151 = vector.extract_strided_slice %133 {offsets = [0, 256], sizes = [8, 128], strides = [1, 1]} : vector<8x384xf32> to vector<8x128xf32>
    %152 = vector.broadcast %7 : vector<1x128xf32> to vector<8x128xf32>
    %153 = arith.addf %151, %152 : vector<8x128xf32>
    %154 = arith.mulf %141, %153 : vector<8x128xf32>
    %155 = arith.addf %150, %154 : vector<8x128xf32>
    %156 = math.tanh %155 : vector<8x128xf32>
    %cst_34 = arith.constant 1.000000e+00 : f32
    %157 = vector.broadcast %cst_34 : f32 to vector<8x128xf32>
    %158 = arith.subf %157, %149 : vector<8x128xf32>
    %159 = arith.mulf %158, %156 : vector<8x128xf32>
    %160 = arith.mulf %149, %131 : vector<8x128xf32>
    %161 = arith.addf %159, %160 : vector<8x128xf32>
    %162 = vector.extract_strided_slice %10 {offsets = [40, 0], sizes = [8, 384], strides = [1, 1]} : vector<64x384xf32> to vector<8x384xf32>
    %cst_35 = arith.constant dense<0.000000e+00> : vector<8x384xf32>
    %163 = tpu.matmul %161, %5, %cst_35 {dimension_numbers = #tpu.dot_dimension_numbers<[1], [0], [0], [1], [0, 0, 1, 1], [], []>} : vector<8x128xf32>, vector<128x384xf32>, vector<8x384xf32> -> vector<8x384xf32>
    %164 = vector.extract_strided_slice %162 {offsets = [0, 0], sizes = [8, 128], strides = [1, 1]} : vector<8x384xf32> to vector<8x128xf32>
    %165 = vector.extract_strided_slice %163 {offsets = [0, 0], sizes = [8, 128], strides = [1, 1]} : vector<8x384xf32> to vector<8x128xf32>
    %166 = arith.addf %164, %165 : vector<8x128xf32>
    %167 = arith.negf %166 : vector<8x128xf32>
    %168 = math.exp %167 : vector<8x128xf32>
    %cst_36 = arith.constant 1.000000e+00 : f32
    %169 = vector.broadcast %cst_36 : f32 to vector<8x128xf32>
    %170 = arith.addf %169, %168 : vector<8x128xf32>
    %171 = arith.divf %169, %170 : vector<8x128xf32>
    %172 = vector.extract_strided_slice %162 {offsets = [0, 128], sizes = [8, 128], strides = [1, 1]} : vector<8x384xf32> to vector<8x128xf32>
    %173 = vector.extract_strided_slice %163 {offsets = [0, 128], sizes = [8, 128], strides = [1, 1]} : vector<8x384xf32> to vector<8x128xf32>
    %174 = arith.addf %172, %173 : vector<8x128xf32>
    %175 = arith.negf %174 : vector<8x128xf32>
    %176 = math.exp %175 : vector<8x128xf32>
    %cst_37 = arith.constant 1.000000e+00 : f32
    %177 = vector.broadcast %cst_37 : f32 to vector<8x128xf32>
    %178 = arith.addf %177, %176 : vector<8x128xf32>
    %179 = arith.divf %177, %178 : vector<8x128xf32>
    %180 = vector.extract_strided_slice %162 {offsets = [0, 256], sizes = [8, 128], strides = [1, 1]} : vector<8x384xf32> to vector<8x128xf32>
    %181 = vector.extract_strided_slice %163 {offsets = [0, 256], sizes = [8, 128], strides = [1, 1]} : vector<8x384xf32> to vector<8x128xf32>
    %182 = vector.broadcast %7 : vector<1x128xf32> to vector<8x128xf32>
    %183 = arith.addf %181, %182 : vector<8x128xf32>
    %184 = arith.mulf %171, %183 : vector<8x128xf32>
    %185 = arith.addf %180, %184 : vector<8x128xf32>
    %186 = math.tanh %185 : vector<8x128xf32>
    %cst_38 = arith.constant 1.000000e+00 : f32
    %187 = vector.broadcast %cst_38 : f32 to vector<8x128xf32>
    %188 = arith.subf %187, %179 : vector<8x128xf32>
    %189 = arith.mulf %188, %186 : vector<8x128xf32>
    %190 = arith.mulf %179, %161 : vector<8x128xf32>
    %191 = arith.addf %189, %190 : vector<8x128xf32>
    %192 = vector.extract_strided_slice %10 {offsets = [48, 0], sizes = [8, 384], strides = [1, 1]} : vector<64x384xf32> to vector<8x384xf32>
    %cst_39 = arith.constant dense<0.000000e+00> : vector<8x384xf32>
    %193 = tpu.matmul %191, %5, %cst_39 {dimension_numbers = #tpu.dot_dimension_numbers<[1], [0], [0], [1], [0, 0, 1, 1], [], []>} : vector<8x128xf32>, vector<128x384xf32>, vector<8x384xf32> -> vector<8x384xf32>
    %194 = vector.extract_strided_slice %192 {offsets = [0, 0], sizes = [8, 128], strides = [1, 1]} : vector<8x384xf32> to vector<8x128xf32>
    %195 = vector.extract_strided_slice %193 {offsets = [0, 0], sizes = [8, 128], strides = [1, 1]} : vector<8x384xf32> to vector<8x128xf32>
    %196 = arith.addf %194, %195 : vector<8x128xf32>
    %197 = arith.negf %196 : vector<8x128xf32>
    %198 = math.exp %197 : vector<8x128xf32>
    %cst_40 = arith.constant 1.000000e+00 : f32
    %199 = vector.broadcast %cst_40 : f32 to vector<8x128xf32>
    %200 = arith.addf %199, %198 : vector<8x128xf32>
    %201 = arith.divf %199, %200 : vector<8x128xf32>
    %202 = vector.extract_strided_slice %192 {offsets = [0, 128], sizes = [8, 128], strides = [1, 1]} : vector<8x384xf32> to vector<8x128xf32>
    %203 = vector.extract_strided_slice %193 {offsets = [0, 128], sizes = [8, 128], strides = [1, 1]} : vector<8x384xf32> to vector<8x128xf32>
    %204 = arith.addf %202, %203 : vector<8x128xf32>
    %205 = arith.negf %204 : vector<8x128xf32>
    %206 = math.exp %205 : vector<8x128xf32>
    %cst_41 = arith.constant 1.000000e+00 : f32
    %207 = vector.broadcast %cst_41 : f32 to vector<8x128xf32>
    %208 = arith.addf %207, %206 : vector<8x128xf32>
    %209 = arith.divf %207, %208 : vector<8x128xf32>
    %210 = vector.extract_strided_slice %192 {offsets = [0, 256], sizes = [8, 128], strides = [1, 1]} : vector<8x384xf32> to vector<8x128xf32>
    %211 = vector.extract_strided_slice %193 {offsets = [0, 256], sizes = [8, 128], strides = [1, 1]} : vector<8x384xf32> to vector<8x128xf32>
    %212 = vector.broadcast %7 : vector<1x128xf32> to vector<8x128xf32>
    %213 = arith.addf %211, %212 : vector<8x128xf32>
    %214 = arith.mulf %201, %213 : vector<8x128xf32>
    %215 = arith.addf %210, %214 : vector<8x128xf32>
    %216 = math.tanh %215 : vector<8x128xf32>
    %cst_42 = arith.constant 1.000000e+00 : f32
    %217 = vector.broadcast %cst_42 : f32 to vector<8x128xf32>
    %218 = arith.subf %217, %209 : vector<8x128xf32>
    %219 = arith.mulf %218, %216 : vector<8x128xf32>
    %220 = arith.mulf %209, %191 : vector<8x128xf32>
    %221 = arith.addf %219, %220 : vector<8x128xf32>
    %222 = vector.extract_strided_slice %10 {offsets = [56, 0], sizes = [8, 384], strides = [1, 1]} : vector<64x384xf32> to vector<8x384xf32>
    %cst_43 = arith.constant dense<0.000000e+00> : vector<8x384xf32>
    %223 = tpu.matmul %221, %5, %cst_43 {dimension_numbers = #tpu.dot_dimension_numbers<[1], [0], [0], [1], [0, 0, 1, 1], [], []>} : vector<8x128xf32>, vector<128x384xf32>, vector<8x384xf32> -> vector<8x384xf32>
    %224 = vector.extract_strided_slice %222 {offsets = [0, 0], sizes = [8, 128], strides = [1, 1]} : vector<8x384xf32> to vector<8x128xf32>
    %225 = vector.extract_strided_slice %223 {offsets = [0, 0], sizes = [8, 128], strides = [1, 1]} : vector<8x384xf32> to vector<8x128xf32>
    %226 = arith.addf %224, %225 : vector<8x128xf32>
    %227 = arith.negf %226 : vector<8x128xf32>
    %228 = math.exp %227 : vector<8x128xf32>
    %cst_44 = arith.constant 1.000000e+00 : f32
    %229 = vector.broadcast %cst_44 : f32 to vector<8x128xf32>
    %230 = arith.addf %229, %228 : vector<8x128xf32>
    %231 = arith.divf %229, %230 : vector<8x128xf32>
    %232 = vector.extract_strided_slice %222 {offsets = [0, 128], sizes = [8, 128], strides = [1, 1]} : vector<8x384xf32> to vector<8x128xf32>
    %233 = vector.extract_strided_slice %223 {offsets = [0, 128], sizes = [8, 128], strides = [1, 1]} : vector<8x384xf32> to vector<8x128xf32>
    %234 = arith.addf %232, %233 : vector<8x128xf32>
    %235 = arith.negf %234 : vector<8x128xf32>
    %236 = math.exp %235 : vector<8x128xf32>
    %cst_45 = arith.constant 1.000000e+00 : f32
    %237 = vector.broadcast %cst_45 : f32 to vector<8x128xf32>
    %238 = arith.addf %237, %236 : vector<8x128xf32>
    %239 = arith.divf %237, %238 : vector<8x128xf32>
    %240 = vector.extract_strided_slice %222 {offsets = [0, 256], sizes = [8, 128], strides = [1, 1]} : vector<8x384xf32> to vector<8x128xf32>
    %241 = vector.extract_strided_slice %223 {offsets = [0, 256], sizes = [8, 128], strides = [1, 1]} : vector<8x384xf32> to vector<8x128xf32>
    %242 = vector.broadcast %7 : vector<1x128xf32> to vector<8x128xf32>
    %243 = arith.addf %241, %242 : vector<8x128xf32>
    %244 = arith.mulf %231, %243 : vector<8x128xf32>
    %245 = arith.addf %240, %244 : vector<8x128xf32>
    %246 = math.tanh %245 : vector<8x128xf32>
    %cst_46 = arith.constant 1.000000e+00 : f32
    %247 = vector.broadcast %cst_46 : f32 to vector<8x128xf32>
    %248 = arith.subf %247, %239 : vector<8x128xf32>
    %249 = arith.mulf %248, %246 : vector<8x128xf32>
    %250 = arith.mulf %239, %221 : vector<8x128xf32>
    %251 = arith.addf %249, %250 : vector<8x128xf32>
    %252 = tpu.concatenate %41, %71, %101, %131, %161, %191, %221, %251 in 0 : vector<8x128xf32>, vector<8x128xf32>, vector<8x128xf32>, vector<8x128xf32>, vector<8x128xf32>, vector<8x128xf32>, vector<8x128xf32>, vector<8x128xf32> -> vector<64x128xf32>
    %c0_47 = arith.constant 0 : index
    %c0_48 = arith.constant 0 : index
    %253 = vector.load %arg5[%c0_47, %c0_48] : memref<128x384xf32, #tpu.memory_space<vmem>>, vector<128x384xf32>
    %c0_49 = arith.constant 0 : index
    %c0_50 = arith.constant 0 : index
    %254 = vector.load %arg6[%c0_49, %c0_50] : memref<128x384xf32, #tpu.memory_space<vmem>>, vector<128x384xf32>
    %c0_51 = arith.constant 0 : index
    %c0_52 = arith.constant 0 : index
    %255 = vector.load %arg7[%c0_51, %c0_52] : memref<1x384xf32, #tpu.memory_space<vmem>>, vector<1x384xf32>
    %c0_53 = arith.constant 0 : index
    %c0_54 = arith.constant 0 : index
    %256 = vector.load %arg8[%c0_53, %c0_54] : memref<1x128xf32, #tpu.memory_space<vmem>>, vector<1x128xf32>
    %cst_55 = arith.constant dense<0.000000e+00> : vector<64x384xf32>
    %257 = tpu.matmul %252, %253, %cst_55 {dimension_numbers = #tpu.dot_dimension_numbers<[1], [0], [0], [1], [0, 0, 1, 1], [], []>} : vector<64x128xf32>, vector<128x384xf32>, vector<64x384xf32> -> vector<64x384xf32>
    %258 = vector.broadcast %255 : vector<1x384xf32> to vector<64x384xf32>
    %259 = arith.addf %257, %258 : vector<64x384xf32>
    %cst_56 = arith.constant 0.000000e+00 : f32
    %260 = vector.broadcast %cst_56 : f32 to vector<8x128xf32>
    %261 = vector.extract_strided_slice %259 {offsets = [0, 0], sizes = [8, 384], strides = [1, 1]} : vector<64x384xf32> to vector<8x384xf32>
    %cst_57 = arith.constant dense<0.000000e+00> : vector<8x384xf32>
    %262 = tpu.matmul %260, %254, %cst_57 {dimension_numbers = #tpu.dot_dimension_numbers<[1], [0], [0], [1], [0, 0, 1, 1], [], []>} : vector<8x128xf32>, vector<128x384xf32>, vector<8x384xf32> -> vector<8x384xf32>
    %263 = vector.extract_strided_slice %261 {offsets = [0, 0], sizes = [8, 128], strides = [1, 1]} : vector<8x384xf32> to vector<8x128xf32>
    %264 = vector.extract_strided_slice %262 {offsets = [0, 0], sizes = [8, 128], strides = [1, 1]} : vector<8x384xf32> to vector<8x128xf32>
    %265 = arith.addf %263, %264 : vector<8x128xf32>
    %266 = arith.negf %265 : vector<8x128xf32>
    %267 = math.exp %266 : vector<8x128xf32>
    %cst_58 = arith.constant 1.000000e+00 : f32
    %268 = vector.broadcast %cst_58 : f32 to vector<8x128xf32>
    %269 = arith.addf %268, %267 : vector<8x128xf32>
    %270 = arith.divf %268, %269 : vector<8x128xf32>
    %271 = vector.extract_strided_slice %261 {offsets = [0, 128], sizes = [8, 128], strides = [1, 1]} : vector<8x384xf32> to vector<8x128xf32>
    %272 = vector.extract_strided_slice %262 {offsets = [0, 128], sizes = [8, 128], strides = [1, 1]} : vector<8x384xf32> to vector<8x128xf32>
    %273 = arith.addf %271, %272 : vector<8x128xf32>
    %274 = arith.negf %273 : vector<8x128xf32>
    %275 = math.exp %274 : vector<8x128xf32>
    %cst_59 = arith.constant 1.000000e+00 : f32
    %276 = vector.broadcast %cst_59 : f32 to vector<8x128xf32>
    %277 = arith.addf %276, %275 : vector<8x128xf32>
    %278 = arith.divf %276, %277 : vector<8x128xf32>
    %279 = vector.extract_strided_slice %261 {offsets = [0, 256], sizes = [8, 128], strides = [1, 1]} : vector<8x384xf32> to vector<8x128xf32>
    %280 = vector.extract_strided_slice %262 {offsets = [0, 256], sizes = [8, 128], strides = [1, 1]} : vector<8x384xf32> to vector<8x128xf32>
    %281 = vector.broadcast %256 : vector<1x128xf32> to vector<8x128xf32>
    %282 = arith.addf %280, %281 : vector<8x128xf32>
    %283 = arith.mulf %270, %282 : vector<8x128xf32>
    %284 = arith.addf %279, %283 : vector<8x128xf32>
    %285 = math.tanh %284 : vector<8x128xf32>
    %cst_60 = arith.constant 1.000000e+00 : f32
    %286 = vector.broadcast %cst_60 : f32 to vector<8x128xf32>
    %287 = arith.subf %286, %278 : vector<8x128xf32>
    %288 = arith.mulf %287, %285 : vector<8x128xf32>
    %289 = arith.mulf %278, %260 : vector<8x128xf32>
    %290 = arith.addf %288, %289 : vector<8x128xf32>
    %291 = vector.extract_strided_slice %259 {offsets = [8, 0], sizes = [8, 384], strides = [1, 1]} : vector<64x384xf32> to vector<8x384xf32>
    %cst_61 = arith.constant dense<0.000000e+00> : vector<8x384xf32>
    %292 = tpu.matmul %290, %254, %cst_61 {dimension_numbers = #tpu.dot_dimension_numbers<[1], [0], [0], [1], [0, 0, 1, 1], [], []>} : vector<8x128xf32>, vector<128x384xf32>, vector<8x384xf32> -> vector<8x384xf32>
    %293 = vector.extract_strided_slice %291 {offsets = [0, 0], sizes = [8, 128], strides = [1, 1]} : vector<8x384xf32> to vector<8x128xf32>
    %294 = vector.extract_strided_slice %292 {offsets = [0, 0], sizes = [8, 128], strides = [1, 1]} : vector<8x384xf32> to vector<8x128xf32>
    %295 = arith.addf %293, %294 : vector<8x128xf32>
    %296 = arith.negf %295 : vector<8x128xf32>
    %297 = math.exp %296 : vector<8x128xf32>
    %cst_62 = arith.constant 1.000000e+00 : f32
    %298 = vector.broadcast %cst_62 : f32 to vector<8x128xf32>
    %299 = arith.addf %298, %297 : vector<8x128xf32>
    %300 = arith.divf %298, %299 : vector<8x128xf32>
    %301 = vector.extract_strided_slice %291 {offsets = [0, 128], sizes = [8, 128], strides = [1, 1]} : vector<8x384xf32> to vector<8x128xf32>
    %302 = vector.extract_strided_slice %292 {offsets = [0, 128], sizes = [8, 128], strides = [1, 1]} : vector<8x384xf32> to vector<8x128xf32>
    %303 = arith.addf %301, %302 : vector<8x128xf32>
    %304 = arith.negf %303 : vector<8x128xf32>
    %305 = math.exp %304 : vector<8x128xf32>
    %cst_63 = arith.constant 1.000000e+00 : f32
    %306 = vector.broadcast %cst_63 : f32 to vector<8x128xf32>
    %307 = arith.addf %306, %305 : vector<8x128xf32>
    %308 = arith.divf %306, %307 : vector<8x128xf32>
    %309 = vector.extract_strided_slice %291 {offsets = [0, 256], sizes = [8, 128], strides = [1, 1]} : vector<8x384xf32> to vector<8x128xf32>
    %310 = vector.extract_strided_slice %292 {offsets = [0, 256], sizes = [8, 128], strides = [1, 1]} : vector<8x384xf32> to vector<8x128xf32>
    %311 = vector.broadcast %256 : vector<1x128xf32> to vector<8x128xf32>
    %312 = arith.addf %310, %311 : vector<8x128xf32>
    %313 = arith.mulf %300, %312 : vector<8x128xf32>
    %314 = arith.addf %309, %313 : vector<8x128xf32>
    %315 = math.tanh %314 : vector<8x128xf32>
    %cst_64 = arith.constant 1.000000e+00 : f32
    %316 = vector.broadcast %cst_64 : f32 to vector<8x128xf32>
    %317 = arith.subf %316, %308 : vector<8x128xf32>
    %318 = arith.mulf %317, %315 : vector<8x128xf32>
    %319 = arith.mulf %308, %290 : vector<8x128xf32>
    %320 = arith.addf %318, %319 : vector<8x128xf32>
    %321 = vector.extract_strided_slice %259 {offsets = [16, 0], sizes = [8, 384], strides = [1, 1]} : vector<64x384xf32> to vector<8x384xf32>
    %cst_65 = arith.constant dense<0.000000e+00> : vector<8x384xf32>
    %322 = tpu.matmul %320, %254, %cst_65 {dimension_numbers = #tpu.dot_dimension_numbers<[1], [0], [0], [1], [0, 0, 1, 1], [], []>} : vector<8x128xf32>, vector<128x384xf32>, vector<8x384xf32> -> vector<8x384xf32>
    %323 = vector.extract_strided_slice %321 {offsets = [0, 0], sizes = [8, 128], strides = [1, 1]} : vector<8x384xf32> to vector<8x128xf32>
    %324 = vector.extract_strided_slice %322 {offsets = [0, 0], sizes = [8, 128], strides = [1, 1]} : vector<8x384xf32> to vector<8x128xf32>
    %325 = arith.addf %323, %324 : vector<8x128xf32>
    %326 = arith.negf %325 : vector<8x128xf32>
    %327 = math.exp %326 : vector<8x128xf32>
    %cst_66 = arith.constant 1.000000e+00 : f32
    %328 = vector.broadcast %cst_66 : f32 to vector<8x128xf32>
    %329 = arith.addf %328, %327 : vector<8x128xf32>
    %330 = arith.divf %328, %329 : vector<8x128xf32>
    %331 = vector.extract_strided_slice %321 {offsets = [0, 128], sizes = [8, 128], strides = [1, 1]} : vector<8x384xf32> to vector<8x128xf32>
    %332 = vector.extract_strided_slice %322 {offsets = [0, 128], sizes = [8, 128], strides = [1, 1]} : vector<8x384xf32> to vector<8x128xf32>
    %333 = arith.addf %331, %332 : vector<8x128xf32>
    %334 = arith.negf %333 : vector<8x128xf32>
    %335 = math.exp %334 : vector<8x128xf32>
    %cst_67 = arith.constant 1.000000e+00 : f32
    %336 = vector.broadcast %cst_67 : f32 to vector<8x128xf32>
    %337 = arith.addf %336, %335 : vector<8x128xf32>
    %338 = arith.divf %336, %337 : vector<8x128xf32>
    %339 = vector.extract_strided_slice %321 {offsets = [0, 256], sizes = [8, 128], strides = [1, 1]} : vector<8x384xf32> to vector<8x128xf32>
    %340 = vector.extract_strided_slice %322 {offsets = [0, 256], sizes = [8, 128], strides = [1, 1]} : vector<8x384xf32> to vector<8x128xf32>
    %341 = vector.broadcast %256 : vector<1x128xf32> to vector<8x128xf32>
    %342 = arith.addf %340, %341 : vector<8x128xf32>
    %343 = arith.mulf %330, %342 : vector<8x128xf32>
    %344 = arith.addf %339, %343 : vector<8x128xf32>
    %345 = math.tanh %344 : vector<8x128xf32>
    %cst_68 = arith.constant 1.000000e+00 : f32
    %346 = vector.broadcast %cst_68 : f32 to vector<8x128xf32>
    %347 = arith.subf %346, %338 : vector<8x128xf32>
    %348 = arith.mulf %347, %345 : vector<8x128xf32>
    %349 = arith.mulf %338, %320 : vector<8x128xf32>
    %350 = arith.addf %348, %349 : vector<8x128xf32>
    %351 = vector.extract_strided_slice %259 {offsets = [24, 0], sizes = [8, 384], strides = [1, 1]} : vector<64x384xf32> to vector<8x384xf32>
    %cst_69 = arith.constant dense<0.000000e+00> : vector<8x384xf32>
    %352 = tpu.matmul %350, %254, %cst_69 {dimension_numbers = #tpu.dot_dimension_numbers<[1], [0], [0], [1], [0, 0, 1, 1], [], []>} : vector<8x128xf32>, vector<128x384xf32>, vector<8x384xf32> -> vector<8x384xf32>
    %353 = vector.extract_strided_slice %351 {offsets = [0, 0], sizes = [8, 128], strides = [1, 1]} : vector<8x384xf32> to vector<8x128xf32>
    %354 = vector.extract_strided_slice %352 {offsets = [0, 0], sizes = [8, 128], strides = [1, 1]} : vector<8x384xf32> to vector<8x128xf32>
    %355 = arith.addf %353, %354 : vector<8x128xf32>
    %356 = arith.negf %355 : vector<8x128xf32>
    %357 = math.exp %356 : vector<8x128xf32>
    %cst_70 = arith.constant 1.000000e+00 : f32
    %358 = vector.broadcast %cst_70 : f32 to vector<8x128xf32>
    %359 = arith.addf %358, %357 : vector<8x128xf32>
    %360 = arith.divf %358, %359 : vector<8x128xf32>
    %361 = vector.extract_strided_slice %351 {offsets = [0, 128], sizes = [8, 128], strides = [1, 1]} : vector<8x384xf32> to vector<8x128xf32>
    %362 = vector.extract_strided_slice %352 {offsets = [0, 128], sizes = [8, 128], strides = [1, 1]} : vector<8x384xf32> to vector<8x128xf32>
    %363 = arith.addf %361, %362 : vector<8x128xf32>
    %364 = arith.negf %363 : vector<8x128xf32>
    %365 = math.exp %364 : vector<8x128xf32>
    %cst_71 = arith.constant 1.000000e+00 : f32
    %366 = vector.broadcast %cst_71 : f32 to vector<8x128xf32>
    %367 = arith.addf %366, %365 : vector<8x128xf32>
    %368 = arith.divf %366, %367 : vector<8x128xf32>
    %369 = vector.extract_strided_slice %351 {offsets = [0, 256], sizes = [8, 128], strides = [1, 1]} : vector<8x384xf32> to vector<8x128xf32>
    %370 = vector.extract_strided_slice %352 {offsets = [0, 256], sizes = [8, 128], strides = [1, 1]} : vector<8x384xf32> to vector<8x128xf32>
    %371 = vector.broadcast %256 : vector<1x128xf32> to vector<8x128xf32>
    %372 = arith.addf %370, %371 : vector<8x128xf32>
    %373 = arith.mulf %360, %372 : vector<8x128xf32>
    %374 = arith.addf %369, %373 : vector<8x128xf32>
    %375 = math.tanh %374 : vector<8x128xf32>
    %cst_72 = arith.constant 1.000000e+00 : f32
    %376 = vector.broadcast %cst_72 : f32 to vector<8x128xf32>
    %377 = arith.subf %376, %368 : vector<8x128xf32>
    %378 = arith.mulf %377, %375 : vector<8x128xf32>
    %379 = arith.mulf %368, %350 : vector<8x128xf32>
    %380 = arith.addf %378, %379 : vector<8x128xf32>
    %381 = vector.extract_strided_slice %259 {offsets = [32, 0], sizes = [8, 384], strides = [1, 1]} : vector<64x384xf32> to vector<8x384xf32>
    %cst_73 = arith.constant dense<0.000000e+00> : vector<8x384xf32>
    %382 = tpu.matmul %380, %254, %cst_73 {dimension_numbers = #tpu.dot_dimension_numbers<[1], [0], [0], [1], [0, 0, 1, 1], [], []>} : vector<8x128xf32>, vector<128x384xf32>, vector<8x384xf32> -> vector<8x384xf32>
    %383 = vector.extract_strided_slice %381 {offsets = [0, 0], sizes = [8, 128], strides = [1, 1]} : vector<8x384xf32> to vector<8x128xf32>
    %384 = vector.extract_strided_slice %382 {offsets = [0, 0], sizes = [8, 128], strides = [1, 1]} : vector<8x384xf32> to vector<8x128xf32>
    %385 = arith.addf %383, %384 : vector<8x128xf32>
    %386 = arith.negf %385 : vector<8x128xf32>
    %387 = math.exp %386 : vector<8x128xf32>
    %cst_74 = arith.constant 1.000000e+00 : f32
    %388 = vector.broadcast %cst_74 : f32 to vector<8x128xf32>
    %389 = arith.addf %388, %387 : vector<8x128xf32>
    %390 = arith.divf %388, %389 : vector<8x128xf32>
    %391 = vector.extract_strided_slice %381 {offsets = [0, 128], sizes = [8, 128], strides = [1, 1]} : vector<8x384xf32> to vector<8x128xf32>
    %392 = vector.extract_strided_slice %382 {offsets = [0, 128], sizes = [8, 128], strides = [1, 1]} : vector<8x384xf32> to vector<8x128xf32>
    %393 = arith.addf %391, %392 : vector<8x128xf32>
    %394 = arith.negf %393 : vector<8x128xf32>
    %395 = math.exp %394 : vector<8x128xf32>
    %cst_75 = arith.constant 1.000000e+00 : f32
    %396 = vector.broadcast %cst_75 : f32 to vector<8x128xf32>
    %397 = arith.addf %396, %395 : vector<8x128xf32>
    %398 = arith.divf %396, %397 : vector<8x128xf32>
    %399 = vector.extract_strided_slice %381 {offsets = [0, 256], sizes = [8, 128], strides = [1, 1]} : vector<8x384xf32> to vector<8x128xf32>
    %400 = vector.extract_strided_slice %382 {offsets = [0, 256], sizes = [8, 128], strides = [1, 1]} : vector<8x384xf32> to vector<8x128xf32>
    %401 = vector.broadcast %256 : vector<1x128xf32> to vector<8x128xf32>
    %402 = arith.addf %400, %401 : vector<8x128xf32>
    %403 = arith.mulf %390, %402 : vector<8x128xf32>
    %404 = arith.addf %399, %403 : vector<8x128xf32>
    %405 = math.tanh %404 : vector<8x128xf32>
    %cst_76 = arith.constant 1.000000e+00 : f32
    %406 = vector.broadcast %cst_76 : f32 to vector<8x128xf32>
    %407 = arith.subf %406, %398 : vector<8x128xf32>
    %408 = arith.mulf %407, %405 : vector<8x128xf32>
    %409 = arith.mulf %398, %380 : vector<8x128xf32>
    %410 = arith.addf %408, %409 : vector<8x128xf32>
    %411 = vector.extract_strided_slice %259 {offsets = [40, 0], sizes = [8, 384], strides = [1, 1]} : vector<64x384xf32> to vector<8x384xf32>
    %cst_77 = arith.constant dense<0.000000e+00> : vector<8x384xf32>
    %412 = tpu.matmul %410, %254, %cst_77 {dimension_numbers = #tpu.dot_dimension_numbers<[1], [0], [0], [1], [0, 0, 1, 1], [], []>} : vector<8x128xf32>, vector<128x384xf32>, vector<8x384xf32> -> vector<8x384xf32>
    %413 = vector.extract_strided_slice %411 {offsets = [0, 0], sizes = [8, 128], strides = [1, 1]} : vector<8x384xf32> to vector<8x128xf32>
    %414 = vector.extract_strided_slice %412 {offsets = [0, 0], sizes = [8, 128], strides = [1, 1]} : vector<8x384xf32> to vector<8x128xf32>
    %415 = arith.addf %413, %414 : vector<8x128xf32>
    %416 = arith.negf %415 : vector<8x128xf32>
    %417 = math.exp %416 : vector<8x128xf32>
    %cst_78 = arith.constant 1.000000e+00 : f32
    %418 = vector.broadcast %cst_78 : f32 to vector<8x128xf32>
    %419 = arith.addf %418, %417 : vector<8x128xf32>
    %420 = arith.divf %418, %419 : vector<8x128xf32>
    %421 = vector.extract_strided_slice %411 {offsets = [0, 128], sizes = [8, 128], strides = [1, 1]} : vector<8x384xf32> to vector<8x128xf32>
    %422 = vector.extract_strided_slice %412 {offsets = [0, 128], sizes = [8, 128], strides = [1, 1]} : vector<8x384xf32> to vector<8x128xf32>
    %423 = arith.addf %421, %422 : vector<8x128xf32>
    %424 = arith.negf %423 : vector<8x128xf32>
    %425 = math.exp %424 : vector<8x128xf32>
    %cst_79 = arith.constant 1.000000e+00 : f32
    %426 = vector.broadcast %cst_79 : f32 to vector<8x128xf32>
    %427 = arith.addf %426, %425 : vector<8x128xf32>
    %428 = arith.divf %426, %427 : vector<8x128xf32>
    %429 = vector.extract_strided_slice %411 {offsets = [0, 256], sizes = [8, 128], strides = [1, 1]} : vector<8x384xf32> to vector<8x128xf32>
    %430 = vector.extract_strided_slice %412 {offsets = [0, 256], sizes = [8, 128], strides = [1, 1]} : vector<8x384xf32> to vector<8x128xf32>
    %431 = vector.broadcast %256 : vector<1x128xf32> to vector<8x128xf32>
    %432 = arith.addf %430, %431 : vector<8x128xf32>
    %433 = arith.mulf %420, %432 : vector<8x128xf32>
    %434 = arith.addf %429, %433 : vector<8x128xf32>
    %435 = math.tanh %434 : vector<8x128xf32>
    %cst_80 = arith.constant 1.000000e+00 : f32
    %436 = vector.broadcast %cst_80 : f32 to vector<8x128xf32>
    %437 = arith.subf %436, %428 : vector<8x128xf32>
    %438 = arith.mulf %437, %435 : vector<8x128xf32>
    %439 = arith.mulf %428, %410 : vector<8x128xf32>
    %440 = arith.addf %438, %439 : vector<8x128xf32>
    %441 = vector.extract_strided_slice %259 {offsets = [48, 0], sizes = [8, 384], strides = [1, 1]} : vector<64x384xf32> to vector<8x384xf32>
    %cst_81 = arith.constant dense<0.000000e+00> : vector<8x384xf32>
    %442 = tpu.matmul %440, %254, %cst_81 {dimension_numbers = #tpu.dot_dimension_numbers<[1], [0], [0], [1], [0, 0, 1, 1], [], []>} : vector<8x128xf32>, vector<128x384xf32>, vector<8x384xf32> -> vector<8x384xf32>
    %443 = vector.extract_strided_slice %441 {offsets = [0, 0], sizes = [8, 128], strides = [1, 1]} : vector<8x384xf32> to vector<8x128xf32>
    %444 = vector.extract_strided_slice %442 {offsets = [0, 0], sizes = [8, 128], strides = [1, 1]} : vector<8x384xf32> to vector<8x128xf32>
    %445 = arith.addf %443, %444 : vector<8x128xf32>
    %446 = arith.negf %445 : vector<8x128xf32>
    %447 = math.exp %446 : vector<8x128xf32>
    %cst_82 = arith.constant 1.000000e+00 : f32
    %448 = vector.broadcast %cst_82 : f32 to vector<8x128xf32>
    %449 = arith.addf %448, %447 : vector<8x128xf32>
    %450 = arith.divf %448, %449 : vector<8x128xf32>
    %451 = vector.extract_strided_slice %441 {offsets = [0, 128], sizes = [8, 128], strides = [1, 1]} : vector<8x384xf32> to vector<8x128xf32>
    %452 = vector.extract_strided_slice %442 {offsets = [0, 128], sizes = [8, 128], strides = [1, 1]} : vector<8x384xf32> to vector<8x128xf32>
    %453 = arith.addf %451, %452 : vector<8x128xf32>
    %454 = arith.negf %453 : vector<8x128xf32>
    %455 = math.exp %454 : vector<8x128xf32>
    %cst_83 = arith.constant 1.000000e+00 : f32
    %456 = vector.broadcast %cst_83 : f32 to vector<8x128xf32>
    %457 = arith.addf %456, %455 : vector<8x128xf32>
    %458 = arith.divf %456, %457 : vector<8x128xf32>
    %459 = vector.extract_strided_slice %441 {offsets = [0, 256], sizes = [8, 128], strides = [1, 1]} : vector<8x384xf32> to vector<8x128xf32>
    %460 = vector.extract_strided_slice %442 {offsets = [0, 256], sizes = [8, 128], strides = [1, 1]} : vector<8x384xf32> to vector<8x128xf32>
    %461 = vector.broadcast %256 : vector<1x128xf32> to vector<8x128xf32>
    %462 = arith.addf %460, %461 : vector<8x128xf32>
    %463 = arith.mulf %450, %462 : vector<8x128xf32>
    %464 = arith.addf %459, %463 : vector<8x128xf32>
    %465 = math.tanh %464 : vector<8x128xf32>
    %cst_84 = arith.constant 1.000000e+00 : f32
    %466 = vector.broadcast %cst_84 : f32 to vector<8x128xf32>
    %467 = arith.subf %466, %458 : vector<8x128xf32>
    %468 = arith.mulf %467, %465 : vector<8x128xf32>
    %469 = arith.mulf %458, %440 : vector<8x128xf32>
    %470 = arith.addf %468, %469 : vector<8x128xf32>
    %471 = vector.extract_strided_slice %259 {offsets = [56, 0], sizes = [8, 384], strides = [1, 1]} : vector<64x384xf32> to vector<8x384xf32>
    %cst_85 = arith.constant dense<0.000000e+00> : vector<8x384xf32>
    %472 = tpu.matmul %470, %254, %cst_85 {dimension_numbers = #tpu.dot_dimension_numbers<[1], [0], [0], [1], [0, 0, 1, 1], [], []>} : vector<8x128xf32>, vector<128x384xf32>, vector<8x384xf32> -> vector<8x384xf32>
    %473 = vector.extract_strided_slice %471 {offsets = [0, 0], sizes = [8, 128], strides = [1, 1]} : vector<8x384xf32> to vector<8x128xf32>
    %474 = vector.extract_strided_slice %472 {offsets = [0, 0], sizes = [8, 128], strides = [1, 1]} : vector<8x384xf32> to vector<8x128xf32>
    %475 = arith.addf %473, %474 : vector<8x128xf32>
    %476 = arith.negf %475 : vector<8x128xf32>
    %477 = math.exp %476 : vector<8x128xf32>
    %cst_86 = arith.constant 1.000000e+00 : f32
    %478 = vector.broadcast %cst_86 : f32 to vector<8x128xf32>
    %479 = arith.addf %478, %477 : vector<8x128xf32>
    %480 = arith.divf %478, %479 : vector<8x128xf32>
    %481 = vector.extract_strided_slice %471 {offsets = [0, 128], sizes = [8, 128], strides = [1, 1]} : vector<8x384xf32> to vector<8x128xf32>
    %482 = vector.extract_strided_slice %472 {offsets = [0, 128], sizes = [8, 128], strides = [1, 1]} : vector<8x384xf32> to vector<8x128xf32>
    %483 = arith.addf %481, %482 : vector<8x128xf32>
    %484 = arith.negf %483 : vector<8x128xf32>
    %485 = math.exp %484 : vector<8x128xf32>
    %cst_87 = arith.constant 1.000000e+00 : f32
    %486 = vector.broadcast %cst_87 : f32 to vector<8x128xf32>
    %487 = arith.addf %486, %485 : vector<8x128xf32>
    %488 = arith.divf %486, %487 : vector<8x128xf32>
    %489 = vector.extract_strided_slice %471 {offsets = [0, 256], sizes = [8, 128], strides = [1, 1]} : vector<8x384xf32> to vector<8x128xf32>
    %490 = vector.extract_strided_slice %472 {offsets = [0, 256], sizes = [8, 128], strides = [1, 1]} : vector<8x384xf32> to vector<8x128xf32>
    %491 = vector.broadcast %256 : vector<1x128xf32> to vector<8x128xf32>
    %492 = arith.addf %490, %491 : vector<8x128xf32>
    %493 = arith.mulf %480, %492 : vector<8x128xf32>
    %494 = arith.addf %489, %493 : vector<8x128xf32>
    %495 = math.tanh %494 : vector<8x128xf32>
    %cst_88 = arith.constant 1.000000e+00 : f32
    %496 = vector.broadcast %cst_88 : f32 to vector<8x128xf32>
    %497 = arith.subf %496, %488 : vector<8x128xf32>
    %498 = arith.mulf %497, %495 : vector<8x128xf32>
    %499 = arith.mulf %488, %470 : vector<8x128xf32>
    %500 = arith.addf %498, %499 : vector<8x128xf32>
    %501 = vector.broadcast %1 : vector<1x128xf32> to vector<8x128xf32>
    %502 = arith.mulf %500, %501 : vector<8x128xf32>
    %cst_89 = arith.constant dense<0.000000e+00> : vector<8xf32>
    %503 = vector.multi_reduction <add>, %502, %cst_89 [1] : vector<8x128xf32> to vector<8xf32>
    %504 = vector.shape_cast %503 : vector<8xf32> to vector<8x1xf32>
    %505 = vector.broadcast %0 : vector<1x1xf32> to vector<8x1xf32>
    %506 = arith.addf %504, %505 : vector<8x1xf32>
    %507 = arith.negf %506 : vector<8x1xf32>
    %508 = math.exp %507 : vector<8x1xf32>
    %cst_90 = arith.constant 1.000000e+00 : f32
    %509 = vector.broadcast %cst_90 : f32 to vector<8x1xf32>
    %510 = arith.addf %509, %508 : vector<8x1xf32>
    %511 = arith.divf %509, %510 : vector<8x1xf32>
    %c0_91 = arith.constant 0 : index
    %c0_92 = arith.constant 0 : index
    %512 = vector.load %arg11[%c0_91, %c0_92] : memref<8x1xf32, #tpu.memory_space<vmem>>, vector<8x1xf32>
    tpu.vector_store %arg11[%c0_91, %c0_92], %511 {strides = array<i32>} : memref<8x1xf32, #tpu.memory_space<vmem>>, vector<8x1xf32>,
    return
  }
}

</mosaic_0001>

<llo_original>
// kernel: tpu_custom_call.1
$region0: #{tpu_custom_call.1}
  #allocation0 [shape = 'u32[]', space=smem, size = 0x4, offset = 0x4, fixed_abs, tag = 'smem constant byte address 0x4 - core index']
  #allocation1 [shape = 'u32[144,128]{1,0:T(1,128)}', space=vmem, size = 0x12000, scoped, tag = 'internal scratch']
  #allocation2 [shape = 'f32[1,1]{1,0:T(1,128)S(1)}', space=vmem, size = 0x200, scoped, tag = 'scoped memory for tpu_custom_call.1']
  %s0 = inlined_call_operand.hbm [shape: f32[8,8,16], index: 0, kind: input, shape index: {}]
  %s1 = inlined_call_operand.hbm [shape: f32[16,384], index: 1, kind: input, shape index: {}]
  %s2 = inlined_call_operand.hbm [shape: f32[128,384], index: 2, kind: input, shape index: {}]
  %s3 = inlined_call_operand.vmem [shape: f32[1,384], index: 3, kind: input, shape index: {}]
  %s4 = inlined_call_operand.vmem [shape: f32[1,128], index: 4, kind: input, shape index: {}]
  %s5 = inlined_call_operand.hbm [shape: f32[128,384], index: 5, kind: input, shape index: {}]
  %s6 = inlined_call_operand.hbm [shape: f32[128,384], index: 6, kind: input, shape index: {}]
  %s7 = inlined_call_operand.vmem [shape: f32[1,384], index: 7, kind: input, shape index: {}]
  %s8 = inlined_call_operand.vmem [shape: f32[1,128], index: 8, kind: input, shape index: {}]
  %s9 = inlined_call_operand.vmem [shape: f32[1,128], index: 9, kind: input, shape index: {}]
  %s10 = inlined_call_operand.<no memory space> [shape: f32[1,1], index: 10, kind: input, shape index: {}]
  %s11 = inlined_call_operand.vmem [shape: f32[8,1], index: 11, kind: output, shape index: {}]
  %s12 = sld [smem:[#allocation0]]
  $region74: #{tpu_custom_call.1} parent=0
    _
  %s14 = ssub.s32 1, %s12
  %s15 = scalar_select 0, %s14, %s12
  %v16 = vstv %s10
  %17 = vst [vmem:[#allocation2] sm:$0x1] %v16
  $region1: #{tpu_custom_call.1} parent=0
    #allocation3 [shape = 'u8[32768]{0}', space=vmem, size = 0x8000, scoped, tag = 'input window, operand 0, single buffered']
    #allocation4 [shape = 's32[1]{0}', space=sflag, size = 0x4, scoped, tag = 'scoped memory for tpu_custom_call.1']
    #allocation5 [shape = 'u8[24576]{0}', space=vmem, size = 0x6000, scoped, tag = 'input window, operand 1, single buffered']
    #allocation6 [shape = 's32[1]{0}', space=sflag, size = 0x4, scoped, tag = 'scoped memory for tpu_custom_call.1']
    #allocation7 [shape = 'u8[196608]{0}', space=vmem, size = 0x30000, scoped, tag = 'input window, operand 2, single buffered']
    #allocation8 [shape = 'u8[196608]{0}', space=vmem, size = 0x30000, scoped, tag = 'input window, operand 5, single buffered']
    #allocation9 [shape = 's32[1]{0}', space=sflag, size = 0x4, scoped, tag = 'scoped memory for tpu_custom_call.1']
    #allocation10 [shape = 'u8[196608]{0}', space=vmem, size = 0x30000, scoped, tag = 'input window, operand 6, single buffered']
    %18 = vsyncpa [#allocation4], 0
    %19 = vsyncpa [#allocation6], 0
    %20 = vsyncpa [#allocation9], 0
    // Predicated region
    $region2: #{tpu_custom_call.1} parent=1 // pred_check
      _
    $region3: #{tpu_custom_call.1} parent=1 // pred_check_branch
      %22 = sbr.rel (0) target = $region5
    $region4: #{tpu_custom_call.1} parent=1 // pred_region
      %s24 = ssub.s32 1024, 1024
      %25 = vsyncadd [#allocation4], %s24
      %s26 = sshll.u32 [#allocation3], 4
      %s27 = int_to_ptr.vmem [resolvable:$true] %s26
      %32 = dma.hbm_to_vmem [thread:$0]  %s0, 1024, %s27, [#allocation4], 128, 128, 8
    $region5: #{tpu_custom_call.1} parent=1 // pred_fallthru
      _
    // Predicated region
    $region6: #{tpu_custom_call.1} parent=1 // pred_check
      _
    $region7: #{tpu_custom_call.1} parent=1 // pred_check_branch
      %34 = sbr.rel (0) target = $region9
    $region8: #{tpu_custom_call.1} parent=1 // pred_region
      %s36 = ssub.s32 768, 768
      %37 = vsyncadd [#allocation6], %s36
      %s38 = sshll.u32 [#allocation5], 4
      %s39 = int_to_ptr.vmem [resolvable:$true] %s38
      %44 = dma.hbm_to_vmem [thread:$0]  %s1, 768, %s39, [#allocation6], 384, 384, 24
    $region9: #{tpu_custom_call.1} parent=1 // pred_fallthru
      _
    // Predicated region
    $region10: #{tpu_custom_call.1} parent=1 // pred_check
      _
    $region11: #{tpu_custom_call.1} parent=1 // pred_check_branch
      %46 = sbr.rel (0) target = $region13
    $region12: #{tpu_custom_call.1} parent=1 // pred_region
      %s48 = ssub.s32 6144, 6144
      %49 = vsyncadd [#allocation6], %s48
      %s50 = sshll.u32 [#allocation7], 4
      %s51 = int_to_ptr.vmem [resolvable:$true] %s50
      %56 = dma.hbm_to_vmem [thread:$0]  %s2, 6144, %s51, [#allocation6], 384, 384, 24
    $region13: #{tpu_custom_call.1} parent=1 // pred_fallthru
      _
    // Predicated region
    $region14: #{tpu_custom_call.1} parent=1 // pred_check
      _
    $region15: #{tpu_custom_call.1} parent=1 // pred_check_branch
      %58 = sbr.rel (0) target = $region17
    $region16: #{tpu_custom_call.1} parent=1 // pred_region
      _
    $region17: #{tpu_custom_call.1} parent=1 // pred_fallthru
      _
    // Predicated region
    $region18: #{tpu_custom_call.1} parent=1 // pred_check
      _
    $region19: #{tpu_custom_call.1} parent=1 // pred_check_branch
      %60 = sbr.rel (0) target = $region21
    $region20: #{tpu_custom_call.1} parent=1 // pred_region
      _
    $region21: #{tpu_custom_call.1} parent=1 // pred_fallthru
      _
    // Predicated region
    $region22: #{tpu_custom_call.1} parent=1 // pred_check
      _
    $region23: #{tpu_custom_call.1} parent=1 // pred_check_branch
      %62 = sbr.rel (0) target = $region25
    $region24: #{tpu_custom_call.1} parent=1 // pred_region
      %s64 = ssub.s32 6144, 6144
      %65 = vsyncadd [#allocation9], %s64
      %s66 = sshll.u32 [#allocation8], 4
      %s67 = int_to_ptr.vmem [resolvable:$true] %s66
      %72 = dma.hbm_to_vmem [thread:$0]  %s5, 6144, %s67, [#allocation9], 384, 384, 24
    $region25: #{tpu_custom_call.1} parent=1 // pred_fallthru
      _
    // Predicated region
    $region26: #{tpu_custom_call.1} parent=1 // pred_check
      _
    $region27: #{tpu_custom_call.1} parent=1 // pred_check_branch
      %74 = sbr.rel (0) target = $region29
    $region28: #{tpu_custom_call.1} parent=1 // pred_region
      %s76 = ssub.s32 6144, 6144
      %77 = vsyncadd [#allocation9], %s76
      %s78 = sshll.u32 [#allocation10], 4
      %s79 = int_to_ptr.vmem [resolvable:$true] %s78
      %84 = dma.hbm_to_vmem [thread:$0]  %s6, 6144, %s79, [#allocation9], 384, 384, 24
    $region29: #{tpu_custom_call.1} parent=1 // pred_fallthru
      _
    // Predicated region
    $region30: #{tpu_custom_call.1} parent=1 // pred_check
      _
    $region31: #{tpu_custom_call.1} parent=1 // pred_check_branch
      %86 = sbr.rel (0) target = $region33
    $region32: #{tpu_custom_call.1} parent=1 // pred_region
      _
    $region33: #{tpu_custom_call.1} parent=1 // pred_fallthru
      _
    // Predicated region
    $region34: #{tpu_custom_call.1} parent=1 // pred_check
      _
    $region35: #{tpu_custom_call.1} parent=1 // pred_check_branch
      %88 = sbr.rel (0) target = $region37
    $region36: #{tpu_custom_call.1} parent=1 // pred_region
      _
    $region37: #{tpu_custom_call.1} parent=1 // pred_fallthru
      _
    // Predicated region
    $region38: #{tpu_custom_call.1} parent=1 // pred_check
      _
    $region39: #{tpu_custom_call.1} parent=1 // pred_check_branch
      %90 = sbr.rel (0) target = $region41
    $region40: #{tpu_custom_call.1} parent=1 // pred_region
      _
    $region41: #{tpu_custom_call.1} parent=1 // pred_fallthru
      _
    // Predicated region
    $region42: #{tpu_custom_call.1} parent=1 // pred_check
      _
    $region43: #{tpu_custom_call.1} parent=1 // pred_check_branch
      %92 = sbr.rel (0) target = $region45
    $region44: #{tpu_custom_call.1} parent=1 // pred_region
      _
    $region45: #{tpu_custom_call.1} parent=1 // pred_fallthru
      _
    // Predicated region
    $region46: #{tpu_custom_call.1} parent=1 // pred_check
      _
    $region47: #{tpu_custom_call.1} parent=1 // pred_check_branch
      %94 = sbr.rel (0) target = $region49
    $region48: #{tpu_custom_call.1} parent=1 // pred_region
      %95 = dma.done [#allocation4], 1024
    $region49: #{tpu_custom_call.1} parent=1 // pred_fallthru
      _
    // Predicated region
    $region50: #{tpu_custom_call.1} parent=1 // pred_check
      _
    $region51: #{tpu_custom_call.1} parent=1 // pred_check_branch
      %97 = sbr.rel (0) target = $region53
    $region52: #{tpu_custom_call.1} parent=1 // pred_region
      %98 = dma.done [#allocation6], 768
    $region53: #{tpu_custom_call.1} parent=1 // pred_fallthru
      _
    // Predicated region
    $region54: #{tpu_custom_call.1} parent=1 // pred_check
      _
    $region55: #{tpu_custom_call.1} parent=1 // pred_check_branch
      %100 = sbr.rel (0) target = $region57
    $region56: #{tpu_custom_call.1} parent=1 // pred_region
      %101 = dma.done [#allocation6], 6144
    $region57: #{tpu_custom_call.1} parent=1 // pred_fallthru
      _
    // Predicated region
    $region58: #{tpu_custom_call.1} parent=1 // pred_check
      _
    $region59: #{tpu_custom_call.1} parent=1 // pred_check_branch
      %103 = sbr.rel (0) target = $region61
    $region60: #{tpu_custom_call.1} parent=1 // pred_region
      %104 = dma.done [#allocation9], 6144
    $region61: #{tpu_custom_call.1} parent=1 // pred_fallthru
      _
    // Predicated region
    $region62: #{tpu_custom_call.1} parent=1 // pred_check
      _
    $region63: #{tpu_custom_call.1} parent=1 // pred_check_branch
      %106 = sbr.rel (0) target = $region65
    $region64: #{tpu_custom_call.1} parent=1 // pred_region
      %107 = dma.done [#allocation9], 6144
    $region65: #{tpu_custom_call.1} parent=1 // pred_fallthru
      _
    %v108 = vld [vmem:[#allocation2] sm:$0x1]
    %v109 = vld [vmem:[%s9] sm:$0x1]
    %v110 = vld [vmem:[#allocation3] sm:$0xff]
    %v111 = vld [vmem:[#allocation3 + $0x8] sm:$0xff]
    %v112 = vld [vmem:[#allocation3 + $0x10] sm:$0xff]
    %v113 = vld [vmem:[#allocation3 + $0x18] sm:$0xff]
    %v114 = vld [vmem:[#allocation3 + $0x20] sm:$0xff]
    %v115 = vld [vmem:[#allocation3 + $0x28] sm:$0xff]
    %v116 = vld [vmem:[#allocation3 + $0x30] sm:$0xff]
    %v117 = vld [vmem:[#allocation3 + $0x38] sm:$0xff]
    %v118 = vld [vmem:[#allocation5] sm:$0xff]
    %v119 = vld [vmem:[#allocation5 + $0x8] sm:$0xff]
    %v120 = vld [vmem:[#allocation5 + $0x10] sm:$0xff]
    %v121 = vld [vmem:[#allocation5 + $0x18] sm:$0xff]
    %v122 = vld [vmem:[#allocation5 + $0x20] sm:$0xff]
    %v123 = vld [vmem:[#allocation5 + $0x28] sm:$0xff]
    %v124 = vld [vmem:[#allocation7] sm:$0xff]
    %v125 = vld [vmem:[#allocation7 + $0x8] sm:$0xff]
    %v126 = vld [vmem:[#allocation7 + $0x10] sm:$0xff]
    %v127 = vld [vmem:[#allocation7 + $0x18] sm:$0xff]
    %v128 = vld [vmem:[#allocation7 + $0x20] sm:$0xff]
    %v129 = vld [vmem:[#allocation7 + $0x28] sm:$0xff]
    %v130 = vld [vmem:[#allocation7 + $0x30] sm:$0xff]
    %v131 = vld [vmem:[#allocation7 + $0x38] sm:$0xff]
    %v132 = vld [vmem:[#allocation7 + $0x40] sm:$0xff]
    %v133 = vld [vmem:[#allocation7 + $0x48] sm:$0xff]
    %v134 = vld [vmem:[#allocation7 + $0x50] sm:$0xff]
    %v135 = vld [vmem:[#allocation7 + $0x58] sm:$0xff]
    %v136 = vld [vmem:[#allocation7 + $0x60] sm:$0xff]
    %v137 = vld [vmem:[#allocation7 + $0x68] sm:$0xff]
    %v138 = vld [vmem:[#allocation7 + $0x70] sm:$0xff]
    %v139 = vld [vmem:[#allocation7 + $0x78] sm:$0xff]
    %v140 = vld [vmem:[#allocation7 + $0x80] sm:$0xff]
    %v141 = vld [vmem:[#allocation7 + $0x88] sm:$0xff]
    %v142 = vld [vmem:[#allocation7 + $0x90] sm:$0xff]
    %v143 = vld [vmem:[#allocation7 + $0x98] sm:$0xff]
    %v144 = vld [vmem:[#allocation7 + $0xa0] sm:$0xff]
    %v145 = vld [vmem:[#allocation7 + $0xa8] sm:$0xff]
    %v146 = vld [vmem:[#allocation7 + $0xb0] sm:$0xff]
    %v147 = vld [vmem:[#allocation7 + $0xb8] sm:$0xff]
    %v148 = vld [vmem:[#allocation7 + $0xc0] sm:$0xff]
    %v149 = vld [vmem:[#allocation7 + $0xc8] sm:$0xff]
    %v150 = vld [vmem:[#allocation7 + $0xd0] sm:$0xff]
    %v151 = vld [vmem:[#allocation7 + $0xd8] sm:$0xff]
    %v152 = vld [vmem:[#allocation7 + $0xe0] sm:$0xff]
    %v153 = vld [vmem:[#allocation7 + $0xe8] sm:$0xff]
    %v154 = vld [vmem:[#allocation7 + $0xf0] sm:$0xff]
    %v155 = vld [vmem:[#allocation7 + $0xf8] sm:$0xff]
    %v156 = vld [vmem:[#allocation7 + $0x100] sm:$0xff]
    %v157 = vld [vmem:[#allocation7 + $0x108] sm:$0xff]
    %v158 = vld [vmem:[#allocation7 + $0x110] sm:$0xff]
    %v159 = vld [vmem:[#allocation7 + $0x118] sm:$0xff]
    %v160 = vld [vmem:[#allocation7 + $0x120] sm:$0xff]
    %v161 = vld [vmem:[#allocation7 + $0x128] sm:$0xff]
    %v162 = vld [vmem:[#allocation7 + $0x130] sm:$0xff]
    %v163 = vld [vmem:[#allocation7 + $0x138] sm:$0xff]
    %v164 = vld [vmem:[#allocation7 + $0x140] sm:$0xff]
    %v165 = vld [vmem:[#allocation7 + $0x148] sm:$0xff]
    %v166 = vld [vmem:[#allocation7 + $0x150] sm:$0xff]
    %v167 = vld [vmem:[#allocation7 + $0x158] sm:$0xff]
    %v168 = vld [vmem:[#allocation7 + $0x160] sm:$0xff]
    %v169 = vld [vmem:[#allocation7 + $0x168] sm:$0xff]
    %v170 = vld [vmem:[#allocation7 + $0x170] sm:$0xff]
    %v171 = vld [vmem:[#allocation7 + $0x178] sm:$0xff]
    %v172 = vld [vmem:[%s3] sm:$0x7]
    %v173 = vld [vmem:[%s4] sm:$0x1]
    %v175 = vlaneseq
    %v176 = vshrl.u32 %v175, 7
    %v177 = vsub.s32 0, %v176
    %v178 = vrot.slane %v172, %v177
    %v179 = vlaneseq
    %v180 = vshrl.u32 %v179, 7
    %v181 = vsub.s32 1, %v180
    %v182 = vrot.slane %v172, %v181
    %v183 = vlaneseq
    %v184 = vshrl.u32 %v183, 7
    %v185 = vsub.s32 2, %v184
    %v186 = vrot.slane %v172, %v185
    %vm190 = vcmask 130048
    %v192 = vsel %vm190, %v110, 0
    %v195 = vsel %vm190, %v111, 0
    %v198 = vsel %vm190, %v112, 0
    %v201 = vsel %vm190, %v113, 0
    %v204 = vsel %vm190, %v114, 0
    %v207 = vsel %vm190, %v115, 0
    %v210 = vsel %vm190, %v116, 0
    %v213 = vsel %vm190, %v117, 0
    %215 = vmatprep.subr.mxu0 0.0
    %216 = vmatpush1.msra.mxu0 0.0
    %217 = vmatprep.subr.mxu0 0.0
    %218 = vmatpush1.msra.mxu0 0.0
    %219 = vmatprep.subr.mxu0 0.0
    %220 = vmatpush1.msra.mxu0 0.0
    %221 = vmatprep.subr.mxu0 0.0
    %222 = vmatpush1.msra.mxu0 0.0
    %223 = vmatprep.subr.mxu0 0.0
    %224 = vmatpush1.msra.mxu0 0.0
    %225 = vmatprep.subr.mxu0 0.0
    %226 = vmatpush1.msra.mxu0 0.0
    %227 = vmatprep.subr.mxu0 0.0
    %228 = vmatpush1.msra.mxu0 0.0
    %229 = vmatprep.subr.mxu0 0.0
    %230 = vmatpush1.msra.mxu0 0.0
    %231 = vmatprep.subr.mxu0 0.0
    %232 = vmatpush1.msra.mxu0 0.0
    %233 = vmatprep.subr.mxu0 0.0
    %234 = vmatpush1.msra.mxu0 0.0
    %235 = vmatprep.subr.mxu0 0.0
    %236 = vmatpush1.msra.mxu0 0.0
    %237 = vmatprep.subr.mxu0 0.0
    %238 = vmatpush1.msra.mxu0 0.0
    %239 = vmatprep.subr.mxu0 0.0
    %240 = vmatpush1.msra.mxu0 0.0
    %241 = vmatprep.subr.mxu0 0.0
    %242 = vmatpush1.msra.mxu0 0.0
    %243 = vmatprep.subr.mxu0 %v122
    %244 = vmatpush1.msra.mxu0 %v121
    %245 = vmatprep.subr.mxu0 %v119
    %246 = vmatpush1.msra.mxu0 %v118
    %247 = vmatprep.subr.mxu0 0.0
    %248 = vmatpush2.msra.mxu0 0.0
    %249 = vmatprep.subr.mxu0 0.0
    %250 = vmatpush2.msra.mxu0 0.0
    %251 = vmatprep.subr.mxu0 0.0
    %252 = vmatpush2.msra.mxu0 0.0
    %253 = vmatprep.subr.mxu0 0.0
    %254 = vmatpush2.msra.mxu0 0.0
    %255 = vmatprep.subr.mxu0 0.0
    %256 = vmatpush2.msra.mxu0 0.0
    %257 = vmatprep.subr.mxu0 0.0
    %258 = vmatpush2.msra.mxu0 0.0
    %259 = vmatprep.subr.mxu0 0.0
    %260 = vmatpush2.msra.mxu0 0.0
    %261 = vmatprep.subr.mxu0 0.0
    %262 = vmatpush2.msra.mxu0 0.0
    %263 = vmatprep.subr.mxu0 0.0
    %264 = vmatpush2.msra.mxu0 0.0
    %265 = vmatprep.subr.mxu0 0.0
    %266 = vmatpush2.msra.mxu0 0.0
    %267 = vmatprep.subr.mxu0 0.0
    %268 = vmatpush2.msra.mxu0 0.0
    %269 = vmatprep.subr.mxu0 0.0
    %270 = vmatpush2.msra.mxu0 0.0
    %271 = vmatprep.subr.mxu0 0.0
    %272 = vmatpush2.msra.mxu0 0.0
    %273 = vmatprep.subr.mxu0 0.0
    %274 = vmatpush2.msra.mxu0 0.0
    %275 = vmatprep.subr.mxu0 0.0
    %276 = vmatpush2.msra.mxu0 0.0
    %277 = vmatprep.subr.mxu0 0.0
    %278 = vmatpush2.msra.mxu0 0.0
    %279 = vmatprep.mubr.f32.mxu0 0.0
    %280 = vmatmul.mubr.f32.gmra.mxu0 %v192
    %v281 = vpop.f32.mrf.mxu0
    %v282 = vadd.f32 %v178, %v281
    %v283 = vpop.f32.mrf.mxu0
    %v284 = vadd.f32 %v182, %v283
    %285 = vmatprep.mubr.f32.mxu0 0.0
    %286 = vmatmul.mubr.f32.gmra.mxu0 %v195
    %v287 = vpop.f32.mrf.mxu0
    %v288 = vadd.f32 %v178, %v287
    %v289 = vpop.f32.mrf.mxu0
    %v290 = vadd.f32 %v182, %v289
    %291 = vmatprep.mubr.f32.mxu0 0.0
    %292 = vmatmul.mubr.f32.gmra.mxu0 %v198
    %v293 = vpop.f32.mrf.mxu0
    %v294 = vadd.f32 %v178, %v293
    %v295 = vpop.f32.mrf.mxu0
    %v296 = vadd.f32 %v182, %v295
    %297 = vmatprep.mubr.f32.mxu0 0.0
    %298 = vmatmul.mubr.f32.gmra.mxu0 %v201
    %v299 = vpop.f32.mrf.mxu0
    %v300 = vadd.f32 %v178, %v299
    %v301 = vpop.f32.mrf.mxu0
    %v302 = vadd.f32 %v182, %v301
    %303 = vmatprep.mubr.f32.mxu0 0.0
    %304 = vmatmul.mubr.f32.gmra.mxu0 %v204
    %v305 = vpop.f32.mrf.mxu0
    %v306 = vadd.f32 %v178, %v305
    %v307 = vpop.f32.mrf.mxu0
    %v308 = vadd.f32 %v182, %v307
    %309 = vmatprep.mubr.f32.mxu0 0.0
    %310 = vmatmul.mubr.f32.gmra.mxu0 %v207
    %v311 = vpop.f32.mrf.mxu0
    %v312 = vadd.f32 %v178, %v311
    %v313 = vpop.f32.mrf.mxu0
    %v314 = vadd.f32 %v182, %v313
    %315 = vmatprep.mubr.f32.mxu0 0.0
    %316 = vmatmul.mubr.f32.gmra.mxu0 %v210
    %v317 = vpop.f32.mrf.mxu0
    %v318 = vadd.f32 %v178, %v317
    %v319 = vpop.f32.mrf.mxu0
    %v320 = vadd.f32 %v182, %v319
    %321 = vmatprep.mubr.f32.mxu0 0.0
    %322 = vmatmul.mubr.f32.gmra.mxu0 %v213
    %v323 = vpop.f32.mrf.mxu0
    %v324 = vadd.f32 %v178, %v323
    %v325 = vpop.f32.mrf.mxu0
    %v326 = vadd.f32 %v182, %v325
    %327 = vdwg.mxu0
    %328 = vmatprep.subr.mxu0 0.0
    %329 = vmatpush1.msra.mxu0 0.0
    %330 = vmatprep.subr.mxu0 0.0
    %331 = vmatpush1.msra.mxu0 0.0
    %332 = vmatprep.subr.mxu0 0.0
    %333 = vmatpush1.msra.mxu0 0.0
    %334 = vmatprep.subr.mxu0 0.0
    %335 = vmatpush1.msra.mxu0 0.0
    %336 = vmatprep.subr.mxu0 0.0
    %337 = vmatpush1.msra.mxu0 0.0
    %338 = vmatprep.subr.mxu0 0.0
    %339 = vmatpush1.msra.mxu0 0.0
    %340 = vmatprep.subr.mxu0 0.0
    %341 = vmatpush1.msra.mxu0 0.0
    %342 = vmatprep.subr.mxu0 0.0
    %343 = vmatpush1.msra.mxu0 0.0
    %344 = vmatprep.subr.mxu0 0.0
    %345 = vmatpush1.msra.mxu0 0.0
    %346 = vmatprep.subr.mxu0 0.0
    %347 = vmatpush1.msra.mxu0 0.0
    %348 = vmatprep.subr.mxu0 0.0
    %349 = vmatpush1.msra.mxu0 0.0
    %350 = vmatprep.subr.mxu0 0.0
    %351 = vmatpush1.msra.mxu0 0.0
    %352 = vmatprep.subr.mxu0 0.0
    %353 = vmatpush1.msra.mxu0 0.0
    %354 = vmatprep.subr.mxu0 0.0
    %355 = vmatpush1.msra.mxu0 0.0
    %356 = vmatprep.subr.mxu0 0.0
    %357 = vmatpush1.msra.mxu0 %v123
    %358 = vmatprep.subr.mxu0 0.0
    %359 = vmatpush1.msra.mxu0 %v120
    %360 = vmatprep.subr.mxu0 0.0
    %361 = vmatpush2.msra.mxu0 0.0
    %362 = vmatprep.subr.mxu0 0.0
    %363 = vmatpush2.msra.mxu0 0.0
    %364 = vmatprep.subr.mxu0 0.0
    %365 = vmatpush2.msra.mxu0 0.0
    %366 = vmatprep.subr.mxu0 0.0
    %367 = vmatpush2.msra.mxu0 0.0
    %368 = vmatprep.subr.mxu0 0.0
    %369 = vmatpush2.msra.mxu0 0.0
    %370 = vmatprep.subr.mxu0 0.0
    %371 = vmatpush2.msra.mxu0 0.0
    %372 = vmatprep.subr.mxu0 0.0
    %373 = vmatpush2.msra.mxu0 0.0
    %374 = vmatprep.subr.mxu0 0.0
    %375 = vmatpush2.msra.mxu0 0.0
    %376 = vmatprep.subr.mxu0 0.0
    %377 = vmatpush2.msra.mxu0 0.0
    %378 = vmatprep.subr.mxu0 0.0
    %379 = vmatpush2.msra.mxu0 0.0
    %380 = vmatprep.subr.mxu0 0.0
    %381 = vmatpush2.msra.mxu0 0.0
    %382 = vmatprep.subr.mxu0 0.0
    %383 = vmatpush2.msra.mxu0 0.0
    %384 = vmatprep.subr.mxu0 0.0
    %385 = vmatpush2.msra.mxu0 0.0
    %386 = vmatprep.subr.mxu0 0.0
    %387 = vmatpush2.msra.mxu0 0.0
    %388 = vmatprep.subr.mxu0 0.0
    %389 = vmatpush2.msra.mxu0 0.0
    %390 = vmatprep.subr.mxu0 0.0
    %391 = vmatpush2.msra.mxu0 0.0
    %392 = vmatprep.mubr.f32.mxu0 0.0
    %393 = vmatmul.mubr.f32.gmra.mxu0 %v192
    %v394 = vpop.f32.mrf.mxu0
    %v395 = vadd.f32 %v186, %v394
    %v396 = vpop.f32.mrf.mxu0
    %397 = vmatprep.mubr.f32.mxu0 0.0
    %398 = vmatmul.mubr.f32.gmra.mxu0 %v195
    %v399 = vpop.f32.mrf.mxu0
    %v400 = vadd.f32 %v186, %v399
    %v401 = vpop.f32.mrf.mxu0
    %402 = vmatprep.mubr.f32.mxu0 0.0
    %403 = vmatmul.mubr.f32.gmra.mxu0 %v198
    %v404 = vpop.f32.mrf.mxu0
    %v405 = vadd.f32 %v186, %v404
    %v406 = vpop.f32.mrf.mxu0
    %407 = vmatprep.mubr.f32.mxu0 0.0
    %408 = vmatmul.mubr.f32.gmra.mxu0 %v201
    %v409 = vpop.f32.mrf.mxu0
    %v410 = vadd.f32 %v186, %v409
    %v411 = vpop.f32.mrf.mxu0
    %412 = vmatprep.mubr.f32.mxu0 0.0
    %413 = vmatmul.mubr.f32.gmra.mxu0 %v204
    %v414 = vpop.f32.mrf.mxu0
    %v415 = vadd.f32 %v186, %v414
    %v416 = vpop.f32.mrf.mxu0
    %417 = vmatprep.mubr.f32.mxu0 0.0
    %418 = vmatmul.mubr.f32.gmra.mxu0 %v207
    %v419 = vpop.f32.mrf.mxu0
    %v420 = vadd.f32 %v186, %v419
    %v421 = vpop.f32.mrf.mxu0
    %422 = vmatprep.mubr.f32.mxu0 0.0
    %423 = vmatmul.mubr.f32.gmra.mxu0 %v210
    %v424 = vpop.f32.mrf.mxu0
    %v425 = vadd.f32 %v186, %v424
    %v426 = vpop.f32.mrf.mxu0
    %427 = vmatprep.mubr.f32.mxu0 0.0
    %428 = vmatmul.mubr.f32.gmra.mxu0 %v213
    %v429 = vpop.f32.mrf.mxu0
    %v430 = vadd.f32 %v186, %v429
    %v431 = vpop.f32.mrf.mxu0
    %432 = vdwg.mxu0
    %433 = vmatprep.subr.mxu0 %v170
    %434 = vmatpush1.msra.mxu0 %v169
    %435 = vmatprep.subr.mxu0 %v167
    %436 = vmatpush1.msra.mxu0 %v166
    %437 = vmatprep.subr.mxu0 %v164
    %438 = vmatpush1.msra.mxu0 %v163
    %439 = vmatprep.subr.mxu0 %v161
    %440 = vmatpush1.msra.mxu0 %v160
    %441 = vmatprep.subr.mxu0 %v158
    %442 = vmatpush1.msra.mxu0 %v157
    %443 = vmatprep.subr.mxu0 %v155
    %444 = vmatpush1.msra.mxu0 %v154
    %445 = vmatprep.subr.mxu0 %v152
    %446 = vmatpush1.msra.mxu0 %v151
    %447 = vmatprep.subr.mxu0 %v149
    %448 = vmatpush1.msra.mxu0 %v148
    %449 = vmatprep.subr.mxu0 %v146
    %450 = vmatpush1.msra.mxu0 %v145
    %451 = vmatprep.subr.mxu0 %v143
    %452 = vmatpush1.msra.mxu0 %v142
    %453 = vmatprep.subr.mxu0 %v140
    %454 = vmatpush1.msra.mxu0 %v139
    %455 = vmatprep.subr.mxu0 %v137
    %456 = vmatpush1.msra.mxu0 %v136
    %457 = vmatprep.subr.mxu0 %v134
    %458 = vmatpush1.msra.mxu0 %v133
    %459 = vmatprep.subr.mxu0 %v131
    %460 = vmatpush1.msra.mxu0 %v130
    %461 = vmatprep.subr.mxu0 %v128
    %462 = vmatpush1.msra.mxu0 %v127
    %463 = vmatprep.subr.mxu0 %v125
    %464 = vmatpush1.msra.mxu0 %v124
    %465 = vmatprep.subr.mxu0 0.0
    %466 = vmatpush2.msra.mxu0 0.0
    %467 = vmatprep.subr.mxu0 0.0
    %468 = vmatpush2.msra.mxu0 0.0
    %469 = vmatprep.subr.mxu0 0.0
    %470 = vmatpush2.msra.mxu0 0.0
    %471 = vmatprep.subr.mxu0 0.0
    %472 = vmatpush2.msra.mxu0 0.0
    %473 = vmatprep.subr.mxu0 0.0
    %474 = vmatpush2.msra.mxu0 0.0
    %475 = vmatprep.subr.mxu0 0.0
    %476 = vmatpush2.msra.mxu0 0.0
    %477 = vmatprep.subr.mxu0 0.0
    %478 = vmatpush2.msra.mxu0 0.0
    %479 = vmatprep.subr.mxu0 0.0
    %480 = vmatpush2.msra.mxu0 0.0
    %481 = vmatprep.subr.mxu0 0.0
    %482 = vmatpush2.msra.mxu0 0.0
    %483 = vmatprep.subr.mxu0 0.0
    %484 = vmatpush2.msra.mxu0 0.0
    %485 = vmatprep.subr.mxu0 0.0
    %486 = vmatpush2.msra.mxu0 0.0
    %487 = vmatprep.subr.mxu0 0.0
    %488 = vmatpush2.msra.mxu0 0.0
    %489 = vmatprep.subr.mxu0 0.0
    %490 = vmatpush2.msra.mxu0 0.0
    %491 = vmatprep.subr.mxu0 0.0
    %492 = vmatpush2.msra.mxu0 0.0
    %493 = vmatprep.subr.mxu0 0.0
    %494 = vmatpush2.msra.mxu0 0.0
    %495 = vmatprep.subr.mxu0 0.0
    %496 = vmatpush2.msra.mxu0 0.0
    %497 = vmatprep.mubr.f32.mxu0 0.0
    %498 = vmatmul.mubr.f32.gmra.mxu0 0.0
    %v499 = vpop.f32.mrf.mxu0
    %v500 = vadd.f32 0.0, %v499
    %v501 = vpop.f32.mrf.mxu0
    %v502 = vadd.f32 0.0, %v501
    %503 = vdwg.mxu0
    %504 = vmatprep.subr.mxu0 0.0
    %505 = vmatpush1.msra.mxu0 %v171
    %506 = vmatprep.subr.mxu0 0.0
    %507 = vmatpush1.msra.mxu0 %v168
    %508 = vmatprep.subr.mxu0 0.0
    %509 = vmatpush1.msra.mxu0 %v165
    %510 = vmatprep.subr.mxu0 0.0
    %511 = vmatpush1.msra.mxu0 %v162
    %512 = vmatprep.subr.mxu0 0.0
    %513 = vmatpush1.msra.mxu0 %v159
    %514 = vmatprep.subr.mxu0 0.0
    %515 = vmatpush1.msra.mxu0 %v156
    %516 = vmatprep.subr.mxu0 0.0
    %517 = vmatpush1.msra.mxu0 %v153
    %518 = vmatprep.subr.mxu0 0.0
    %519 = vmatpush1.msra.mxu0 %v150
    %520 = vmatprep.subr.mxu0 0.0
    %521 = vmatpush1.msra.mxu0 %v147
    %522 = vmatprep.subr.mxu0 0.0
    %523 = vmatpush1.msra.mxu0 %v144
    %524 = vmatprep.subr.mxu0 0.0
    %525 = vmatpush1.msra.mxu0 %v141
    %526 = vmatprep.subr.mxu0 0.0
    %527 = vmatpush1.msra.mxu0 %v138
    %528 = vmatprep.subr.mxu0 0.0
    %529 = vmatpush1.msra.mxu0 %v135
    %530 = vmatprep.subr.mxu0 0.0
    %531 = vmatpush1.msra.mxu0 %v132
    %532 = vmatprep.subr.mxu0 0.0
    %533 = vmatpush1.msra.mxu0 %v129
    %534 = vmatprep.subr.mxu0 0.0
    %535 = vmatpush1.msra.mxu0 %v126
    %536 = vmatprep.subr.mxu0 0.0
    %537 = vmatpush2.msra.mxu0 0.0
    %538 = vmatprep.subr.mxu0 0.0
    %539 = vmatpush2.msra.mxu0 0.0
    %540 = vmatprep.subr.mxu0 0.0
    %541 = vmatpush2.msra.mxu0 0.0
    %542 = vmatprep.subr.mxu0 0.0
    %543 = vmatpush2.msra.mxu0 0.0
    %544 = vmatprep.subr.mxu0 0.0
    %545 = vmatpush2.msra.mxu0 0.0
    %546 = vmatprep.subr.mxu0 0.0
    %547 = vmatpush2.msra.mxu0 0.0
    %548 = vmatprep.subr.mxu0 0.0
    %549 = vmatpush2.msra.mxu0 0.0
    %550 = vmatprep.subr.mxu0 0.0
    %551 = vmatpush2.msra.mxu0 0.0
    %552 = vmatprep.subr.mxu0 0.0
    %553 = vmatpush2.msra.mxu0 0.0
    %554 = vmatprep.subr.mxu0 0.0
    %555 = vmatpush2.msra.mxu0 0.0
    %556 = vmatprep.subr.mxu0 0.0
    %557 = vmatpush2.msra.mxu0 0.0
    %558 = vmatprep.subr.mxu0 0.0
    %559 = vmatpush2.msra.mxu0 0.0
    %560 = vmatprep.subr.mxu0 0.0
    %561 = vmatpush2.msra.mxu0 0.0
    %562 = vmatprep.subr.mxu0 0.0
    %563 = vmatpush2.msra.mxu0 0.0
    %564 = vmatprep.subr.mxu0 0.0
    %565 = vmatpush2.msra.mxu0 0.0
    %566 = vmatprep.subr.mxu0 0.0
    %567 = vmatpush2.msra.mxu0 0.0
    %568 = vmatprep.mubr.f32.mxu0 0.0
    %569 = vmatmul.mubr.f32.gmra.mxu0 0.0
    %v570 = vpop.f32.mrf.mxu0
    %v571 = vadd.f32 0.0, %v570
    %v572 = vpop.f32.mrf.mxu0
    %573 = vdwg.mxu0
    %v574 = vadd.f32 %v282, %v500
    %v575 = vxor.u32 %v574, 2147483648
    %v576 = vmul.f32 %v575, 1.442695
    %v577 = vpow.pop %v576
    %v578 = vadd.f32 %v577, 1.0
    %v579 = vrcp.pop %v578
    %v580 = vmul.f32 1.0, %v579
    %v581 = vadd.f32 %v284, %v502
    %v582 = vxor.u32 %v581, 2147483648
    %v583 = vmul.f32 %v582, 1.442695
    %v584 = vpow.pop %v583
    %v585 = vadd.f32 %v584, 1.0
    %v586 = vrcp.pop %v585
    %v587 = vmul.f32 1.0, %v586
    %v589 = vlaneseq
    %v590 = vshrl.u32 %v589, 7
    %v591 = vsub.s32 0, %v590
    %v592 = vrot.slane %v173, %v591
    %v594 = vadd.f32 %v571, %v592
    %v595 = vmul.f32 %v580, %v594
    %v596 = vadd.f32 %v395, %v595
    %v597 = vtanh.pop %v596
    %v598 = vsub.f32 1.0, %v587
    %v599 = vmul.f32 %v598, %v597
    %v600 = vmul.f32 %v587, 0.0
    %v601 = vadd.f32 %v599, %v600
    %602 = vmatprep.subr.mxu0 %v170
    %603 = vmatpush1.msra.mxu0 %v169
    %604 = vmatprep.subr.mxu0 %v167
    %605 = vmatpush1.msra.mxu0 %v166
    %606 = vmatprep.subr.mxu0 %v164
    %607 = vmatpush1.msra.mxu0 %v163
    %608 = vmatprep.subr.mxu0 %v161
    %609 = vmatpush1.msra.mxu0 %v160
    %610 = vmatprep.subr.mxu0 %v158
    %611 = vmatpush1.msra.mxu0 %v157
    %612 = vmatprep.subr.mxu0 %v155
    %613 = vmatpush1.msra.mxu0 %v154
    %614 = vmatprep.subr.mxu0 %v152
    %615 = vmatpush1.msra.mxu0 %v151
    %616 = vmatprep.subr.mxu0 %v149
    %617 = vmatpush1.msra.mxu0 %v148
    %618 = vmatprep.subr.mxu0 %v146
    %619 = vmatpush1.msra.mxu0 %v145
    %620 = vmatprep.subr.mxu0 %v143
    %621 = vmatpush1.msra.mxu0 %v142
    %622 = vmatprep.subr.mxu0 %v140
    %623 = vmatpush1.msra.mxu0 %v139
    %624 = vmatprep.subr.mxu0 %v137
    %625 = vmatpush1.msra.mxu0 %v136
    %626 = vmatprep.subr.mxu0 %v134
    %627 = vmatpush1.msra.mxu0 %v133
    %628 = vmatprep.subr.mxu0 %v131
    %629 = vmatpush1.msra.mxu0 %v130
    %630 = vmatprep.subr.mxu0 %v128
    %631 = vmatpush1.msra.mxu0 %v127
    %632 = vmatprep.subr.mxu0 %v125
    %633 = vmatpush1.msra.mxu0 %v124
    %634 = vmatprep.subr.mxu0 0.0
    %635 = vmatpush2.msra.mxu0 0.0
    %636 = vmatprep.subr.mxu0 0.0
    %637 = vmatpush2.msra.mxu0 0.0
    %638 = vmatprep.subr.mxu0 0.0
    %639 = vmatpush2.msra.mxu0 0.0
    %640 = vmatprep.subr.mxu0 0.0
    %641 = vmatpush2.msra.mxu0 0.0
    %642 = vmatprep.subr.mxu0 0.0
    %643 = vmatpush2.msra.mxu0 0.0
    %644 = vmatprep.subr.mxu0 0.0
    %645 = vmatpush2.msra.mxu0 0.0
    %646 = vmatprep.subr.mxu0 0.0
    %647 = vmatpush2.msra.mxu0 0.0
    %648 = vmatprep.subr.mxu0 0.0
    %649 = vmatpush2.msra.mxu0 0.0
    %650 = vmatprep.subr.mxu0 0.0
    %651 = vmatpush2.msra.mxu0 0.0
    %652 = vmatprep.subr.mxu0 0.0
    %653 = vmatpush2.msra.mxu0 0.0
    %654 = vmatprep.subr.mxu0 0.0
    %655 = vmatpush2.msra.mxu0 0.0
    %656 = vmatprep.subr.mxu0 0.0
    %657 = vmatpush2.msra.mxu0 0.0
    %658 = vmatprep.subr.mxu0 0.0
    %659 = vmatpush2.msra.mxu0 0.0
    %660 = vmatprep.subr.mxu0 0.0
    %661 = vmatpush2.msra.mxu0 0.0
    %662 = vmatprep.subr.mxu0 0.0
    %663 = vmatpush2.msra.mxu0 0.0
    %664 = vmatprep.subr.mxu0 0.0
    %665 = vmatpush2.msra.mxu0 0.0
    %666 = vmatprep.mubr.f32.mxu0 0.0
    %667 = vmatmul.mubr.f32.gmra.mxu0 %v601
    %v668 = vpop.f32.mrf.mxu0
    %v669 = vadd.f32 0.0, %v668
    %v670 = vpop.f32.mrf.mxu0
    %v671 = vadd.f32 0.0, %v670
    %672 = vdwg.mxu0
    %673 = vmatprep.subr.mxu0 0.0
    %674 = vmatpush1.msra.mxu0 %v171
    %675 = vmatprep.subr.mxu0 0.0
    %676 = vmatpush1.msra.mxu0 %v168
    %677 = vmatprep.subr.mxu0 0.0
    %678 = vmatpush1.msra.mxu0 %v165
    %679 = vmatprep.subr.mxu0 0.0
    %680 = vmatpush1.msra.mxu0 %v162
    %681 = vmatprep.subr.mxu0 0.0
    %682 = vmatpush1.msra.mxu0 %v159
    %683 = vmatprep.subr.mxu0 0.0
    %684 = vmatpush1.msra.mxu0 %v156
    %685 = vmatprep.subr.mxu0 0.0
    %686 = vmatpush1.msra.mxu0 %v153
    %687 = vmatprep.subr.mxu0 0.0
    %688 = vmatpush1.msra.mxu0 %v150
    %689 = vmatprep.subr.mxu0 0.0
    %690 = vmatpush1.msra.mxu0 %v147
    %691 = vmatprep.subr.mxu0 0.0
    %692 = vmatpush1.msra.mxu0 %v144
    %693 = vmatprep.subr.mxu0 0.0
    %694 = vmatpush1.msra.mxu0 %v141
    %695 = vmatprep.subr.mxu0 0.0
    %696 = vmatpush1.msra.mxu0 %v138
    %697 = vmatprep.subr.mxu0 0.0
    %698 = vmatpush1.msra.mxu0 %v135
    %699 = vmatprep.subr.mxu0 0.0
    %700 = vmatpush1.msra.mxu0 %v132
    %701 = vmatprep.subr.mxu0 0.0
    %702 = vmatpush1.msra.mxu0 %v129
    %703 = vmatprep.subr.mxu0 0.0
    %704 = vmatpush1.msra.mxu0 %v126
    %705 = vmatprep.subr.mxu0 0.0
    %706 = vmatpush2.msra.mxu0 0.0
    %707 = vmatprep.subr.mxu0 0.0
    %708 = vmatpush2.msra.mxu0 0.0
    %709 = vmatprep.subr.mxu0 0.0
    %710 = vmatpush2.msra.mxu0 0.0
    %711 = vmatprep.subr.mxu0 0.0
    %712 = vmatpush2.msra.mxu0 0.0
    %713 = vmatprep.subr.mxu0 0.0
    %714 = vmatpush2.msra.mxu0 0.0
    %715 = vmatprep.subr.mxu0 0.0
    %716 = vmatpush2.msra.mxu0 0.0
    %717 = vmatprep.subr.mxu0 0.0
    %718 = vmatpush2.msra.mxu0 0.0
    %719 = vmatprep.subr.mxu0 0.0
    %720 = vmatpush2.msra.mxu0 0.0
    %721 = vmatprep.subr.mxu0 0.0
    %722 = vmatpush2.msra.mxu0 0.0
    %723 = vmatprep.subr.mxu0 0.0
    %724 = vmatpush2.msra.mxu0 0.0
    %725 = vmatprep.subr.mxu0 0.0
    %726 = vmatpush2.msra.mxu0 0.0
    %727 = vmatprep.subr.mxu0 0.0
    %728 = vmatpush2.msra.mxu0 0.0
    %729 = vmatprep.subr.mxu0 0.0
    %730 = vmatpush2.msra.mxu0 0.0
    %731 = vmatprep.subr.mxu0 0.0
    %732 = vmatpush2.msra.mxu0 0.0
    %733 = vmatprep.subr.mxu0 0.0
    %734 = vmatpush2.msra.mxu0 0.0
    %735 = vmatprep.subr.mxu0 0.0
    %736 = vmatpush2.msra.mxu0 0.0
    %737 = vmatprep.mubr.f32.mxu0 0.0
    %738 = vmatmul.mubr.f32.gmra.mxu0 %v601
    %v739 = vpop.f32.mrf.mxu0
    %v740 = vadd.f32 0.0, %v739
    %v741 = vpop.f32.mrf.mxu0
    %742 = vdwg.mxu0
    %v743 = vadd.f32 %v288, %v669
    %v744 = vxor.u32 %v743, 2147483648
    %v745 = vmul.f32 %v744, 1.442695
    %v746 = vpow.pop %v745
    %v747 = vadd.f32 %v746, 1.0
    %v748 = vrcp.pop %v747
    %v749 = vmul.f32 1.0, %v748
    %v750 = vadd.f32 %v290, %v671
    %v751 = vxor.u32 %v750, 2147483648
    %v752 = vmul.f32 %v751, 1.442695
    %v753 = vpow.pop %v752
    %v754 = vadd.f32 %v753, 1.0
    %v755 = vrcp.pop %v754
    %v756 = vmul.f32 1.0, %v755
    %v757 = vadd.f32 %v740, %v592
    %v758 = vmul.f32 %v749, %v757
    %v759 = vadd.f32 %v400, %v758
    %v760 = vtanh.pop %v759
    %v761 = vsub.f32 1.0, %v756
    %v762 = vmul.f32 %v761, %v760
    %v763 = vmul.f32 %v756, %v601
    %v764 = vadd.f32 %v762, %v763
    %765 = vmatprep.subr.mxu0 %v170
    %766 = vmatpush1.msra.mxu0 %v169
    %767 = vmatprep.subr.mxu0 %v167
    %768 = vmatpush1.msra.mxu0 %v166
    %769 = vmatprep.subr.mxu0 %v164
    %770 = vmatpush1.msra.mxu0 %v163
    %771 = vmatprep.subr.mxu0 %v161
    %772 = vmatpush1.msra.mxu0 %v160
    %773 = vmatprep.subr.mxu0 %v158
    %774 = vmatpush1.msra.mxu0 %v157
    %775 = vmatprep.subr.mxu0 %v155
    %776 = vmatpush1.msra.mxu0 %v154
    %777 = vmatprep.subr.mxu0 %v152
    %778 = vmatpush1.msra.mxu0 %v151
    %779 = vmatprep.subr.mxu0 %v149
    %780 = vmatpush1.msra.mxu0 %v148
    %781 = vmatprep.subr.mxu0 %v146
    %782 = vmatpush1.msra.mxu0 %v145
    %783 = vmatprep.subr.mxu0 %v143
    %784 = vmatpush1.msra.mxu0 %v142
    %785 = vmatprep.subr.mxu0 %v140
    %786 = vmatpush1.msra.mxu0 %v139
    %787 = vmatprep.subr.mxu0 %v137
    %788 = vmatpush1.msra.mxu0 %v136
    %789 = vmatprep.subr.mxu0 %v134
    %790 = vmatpush1.msra.mxu0 %v133
    %791 = vmatprep.subr.mxu0 %v131
    %792 = vmatpush1.msra.mxu0 %v130
    %793 = vmatprep.subr.mxu0 %v128
    %794 = vmatpush1.msra.mxu0 %v127
    %795 = vmatprep.subr.mxu0 %v125
    %796 = vmatpush1.msra.mxu0 %v124
    %797 = vmatprep.subr.mxu0 0.0
    %798 = vmatpush2.msra.mxu0 0.0
    %799 = vmatprep.subr.mxu0 0.0
    %800 = vmatpush2.msra.mxu0 0.0
    %801 = vmatprep.subr.mxu0 0.0
    %802 = vmatpush2.msra.mxu0 0.0
    %803 = vmatprep.subr.mxu0 0.0
    %804 = vmatpush2.msra.mxu0 0.0
    %805 = vmatprep.subr.mxu0 0.0
    %806 = vmatpush2.msra.mxu0 0.0
    %807 = vmatprep.subr.mxu0 0.0
    %808 = vmatpush2.msra.mxu0 0.0
    %809 = vmatprep.subr.mxu0 0.0
    %810 = vmatpush2.msra.mxu0 0.0
    %811 = vmatprep.subr.mxu0 0.0
    %812 = vmatpush2.msra.mxu0 0.0
    %813 = vmatprep.subr.mxu0 0.0
    %814 = vmatpush2.msra.mxu0 0.0
    %815 = vmatprep.subr.mxu0 0.0
    %816 = vmatpush2.msra.mxu0 0.0
    %817 = vmatprep.subr.mxu0 0.0
    %818 = vmatpush2.msra.mxu0 0.0
    %819 = vmatprep.subr.mxu0 0.0
    %820 = vmatpush2.msra.mxu0 0.0
    %821 = vmatprep.subr.mxu0 0.0
    %822 = vmatpush2.msra.mxu0 0.0
    %823 = vmatprep.subr.mxu0 0.0
    %824 = vmatpush2.msra.mxu0 0.0
    %825 = vmatprep.subr.mxu0 0.0
    %826 = vmatpush2.msra.mxu0 0.0
    %827 = vmatprep.subr.mxu0 0.0
    %828 = vmatpush2.msra.mxu0 0.0
    %829 = vmatprep.mubr.f32.mxu0 0.0
    %830 = vmatmul.mubr.f32.gmra.mxu0 %v764
    %v831 = vpop.f32.mrf.mxu0
    %v832 = vadd.f32 0.0, %v831
    %v833 = vpop.f32.mrf.mxu0
    %v834 = vadd.f32 0.0, %v833
    %835 = vdwg.mxu0
    %836 = vmatprep.subr.mxu0 0.0
    %837 = vmatpush1.msra.mxu0 %v171
    %838 = vmatprep.subr.mxu0 0.0
    %839 = vmatpush1.msra.mxu0 %v168
    %840 = vmatprep.subr.mxu0 0.0
    %841 = vmatpush1.msra.mxu0 %v165
    %842 = vmatprep.subr.mxu0 0.0
    %843 = vmatpush1.msra.mxu0 %v162
    %844 = vmatprep.subr.mxu0 0.0
    %845 = vmatpush1.msra.mxu0 %v159
    %846 = vmatprep.subr.mxu0 0.0
    %847 = vmatpush1.msra.mxu0 %v156
    %848 = vmatprep.subr.mxu0 0.0
    %849 = vmatpush1.msra.mxu0 %v153
    %850 = vmatprep.subr.mxu0 0.0
    %851 = vmatpush1.msra.mxu0 %v150
    %852 = vmatprep.subr.mxu0 0.0
    %853 = vmatpush1.msra.mxu0 %v147
    %854 = vmatprep.subr.mxu0 0.0
    %855 = vmatpush1.msra.mxu0 %v144
    %856 = vmatprep.subr.mxu0 0.0
    %857 = vmatpush1.msra.mxu0 %v141
    %858 = vmatprep.subr.mxu0 0.0
    %859 = vmatpush1.msra.mxu0 %v138
    %860 = vmatprep.subr.mxu0 0.0
    %861 = vmatpush1.msra.mxu0 %v135
    %862 = vmatprep.subr.mxu0 0.0
    %863 = vmatpush1.msra.mxu0 %v132
    %864 = vmatprep.subr.mxu0 0.0
    %865 = vmatpush1.msra.mxu0 %v129
    %866 = vmatprep.subr.mxu0 0.0
    %867 = vmatpush1.msra.mxu0 %v126
    %868 = vmatprep.subr.mxu0 0.0
    %869 = vmatpush2.msra.mxu0 0.0
    %870 = vmatprep.subr.mxu0 0.0
    %871 = vmatpush2.msra.mxu0 0.0
    %872 = vmatprep.subr.mxu0 0.0
    %873 = vmatpush2.msra.mxu0 0.0
    %874 = vmatprep.subr.mxu0 0.0
    %875 = vmatpush2.msra.mxu0 0.0
    %876 = vmatprep.subr.mxu0 0.0
    %877 = vmatpush2.msra.mxu0 0.0
    %878 = vmatprep.subr.mxu0 0.0
    %879 = vmatpush2.msra.mxu0 0.0
    %880 = vmatprep.subr.mxu0 0.0
    %881 = vmatpush2.msra.mxu0 0.0
    %882 = vmatprep.subr.mxu0 0.0
    %883 = vmatpush2.msra.mxu0 0.0
    %884 = vmatprep.subr.mxu0 0.0
    %885 = vmatpush2.msra.mxu0 0.0
    %886 = vmatprep.subr.mxu0 0.0
    %887 = vmatpush2.msra.mxu0 0.0
    %888 = vmatprep.subr.mxu0 0.0
    %889 = vmatpush2.msra.mxu0 0.0
    %890 = vmatprep.subr.mxu0 0.0
    %891 = vmatpush2.msra.mxu0 0.0
    %892 = vmatprep.subr.mxu0 0.0
    %893 = vmatpush2.msra.mxu0 0.0
    %894 = vmatprep.subr.mxu0 0.0
    %895 = vmatpush2.msra.mxu0 0.0
    %896 = vmatprep.subr.mxu0 0.0
    %897 = vmatpush2.msra.mxu0 0.0
    %898 = vmatprep.subr.mxu0 0.0
    %899 = vmatpush2.msra.mxu0 0.0
    %900 = vmatprep.mubr.f32.mxu0 0.0
    %901 = vmatmul.mubr.f32.gmra.mxu0 %v764
    %v902 = vpop.f32.mrf.mxu0
    %v903 = vadd.f32 0.0, %v902
    %v904 = vpop.f32.mrf.mxu0
    %905 = vdwg.mxu0
    %v906 = vadd.f32 %v294, %v832
    %v907 = vxor.u32 %v906, 2147483648
    %v908 = vmul.f32 %v907, 1.442695
    %v909 = vpow.pop %v908
    %v910 = vadd.f32 %v909, 1.0
    %v911 = vrcp.pop %v910
    %v912 = vmul.f32 1.0, %v911
    %v913 = vadd.f32 %v296, %v834
    %v914 = vxor.u32 %v913, 2147483648
    %v915 = vmul.f32 %v914, 1.442695
    %v916 = vpow.pop %v915
    %v917 = vadd.f32 %v916, 1.0
    %v918 = vrcp.pop %v917
    %v919 = vmul.f32 1.0, %v918
    %v920 = vadd.f32 %v903, %v592
    %v921 = vmul.f32 %v912, %v920
    %v922 = vadd.f32 %v405, %v921
    %v923 = vtanh.pop %v922
    %v924 = vsub.f32 1.0, %v919
    %v925 = vmul.f32 %v924, %v923
    %v926 = vmul.f32 %v919, %v764
    %v927 = vadd.f32 %v925, %v926
    %928 = vmatprep.subr.mxu0 %v170
    %929 = vmatpush1.msra.mxu0 %v169
    %930 = vmatprep.subr.mxu0 %v167
    %931 = vmatpush1.msra.mxu0 %v166
    %932 = vmatprep.subr.mxu0 %v164
    %933 = vmatpush1.msra.mxu0 %v163
    %934 = vmatprep.subr.mxu0 %v161
    %935 = vmatpush1.msra.mxu0 %v160
    %936 = vmatprep.subr.mxu0 %v158
    %937 = vmatpush1.msra.mxu0 %v157
    %938 = vmatprep.subr.mxu0 %v155
    %939 = vmatpush1.msra.mxu0 %v154
    %940 = vmatprep.subr.mxu0 %v152
    %941 = vmatpush1.msra.mxu0 %v151
    %942 = vmatprep.subr.mxu0 %v149
    %943 = vmatpush1.msra.mxu0 %v148
    %944 = vmatprep.subr.mxu0 %v146
    %945 = vmatpush1.msra.mxu0 %v145
    %946 = vmatprep.subr.mxu0 %v143
    %947 = vmatpush1.msra.mxu0 %v142
    %948 = vmatprep.subr.mxu0 %v140
    %949 = vmatpush1.msra.mxu0 %v139
    %950 = vmatprep.subr.mxu0 %v137
    %951 = vmatpush1.msra.mxu0 %v136
    %952 = vmatprep.subr.mxu0 %v134
    %953 = vmatpush1.msra.mxu0 %v133
    %954 = vmatprep.subr.mxu0 %v131
    %955 = vmatpush1.msra.mxu0 %v130
    %956 = vmatprep.subr.mxu0 %v128
    %957 = vmatpush1.msra.mxu0 %v127
    %958 = vmatprep.subr.mxu0 %v125
    %959 = vmatpush1.msra.mxu0 %v124
    %960 = vmatprep.subr.mxu0 0.0
    %961 = vmatpush2.msra.mxu0 0.0
    %962 = vmatprep.subr.mxu0 0.0
    %963 = vmatpush2.msra.mxu0 0.0
    %964 = vmatprep.subr.mxu0 0.0
    %965 = vmatpush2.msra.mxu0 0.0
    %966 = vmatprep.subr.mxu0 0.0
    %967 = vmatpush2.msra.mxu0 0.0
    %968 = vmatprep.subr.mxu0 0.0
    %969 = vmatpush2.msra.mxu0 0.0
    %970 = vmatprep.subr.mxu0 0.0
    %971 = vmatpush2.msra.mxu0 0.0
    %972 = vmatprep.subr.mxu0 0.0
    %973 = vmatpush2.msra.mxu0 0.0
    %974 = vmatprep.subr.mxu0 0.0
    %975 = vmatpush2.msra.mxu0 0.0
    %976 = vmatprep.subr.mxu0 0.0
    %977 = vmatpush2.msra.mxu0 0.0
    %978 = vmatprep.subr.mxu0 0.0
    %979 = vmatpush2.msra.mxu0 0.0
    %980 = vmatprep.subr.mxu0 0.0
    %981 = vmatpush2.msra.mxu0 0.0
    %982 = vmatprep.subr.mxu0 0.0
    %983 = vmatpush2.msra.mxu0 0.0
    %984 = vmatprep.subr.mxu0 0.0
    %985 = vmatpush2.msra.mxu0 0.0
    %986 = vmatprep.subr.mxu0 0.0
    %987 = vmatpush2.msra.mxu0 0.0
    %988 = vmatprep.subr.mxu0 0.0
    %989 = vmatpush2.msra.mxu0 0.0
    %990 = vmatprep.subr.mxu0 0.0
    %991 = vmatpush2.msra.mxu0 0.0
    %992 = vmatprep.mubr.f32.mxu0 0.0
    %993 = vmatmul.mubr.f32.gmra.mxu0 %v927
    %v994 = vpop.f32.mrf.mxu0
    %v995 = vadd.f32 0.0, %v994
    %v996 = vpop.f32.mrf.mxu0
    %v997 = vadd.f32 0.0, %v996
    %998 = vdwg.mxu0
    %999 = vmatprep.subr.mxu0 0.0
    %1000 = vmatpush1.msra.mxu0 %v171
    %1001 = vmatprep.subr.mxu0 0.0
    %1002 = vmatpush1.msra.mxu0 %v168
    %1003 = vmatprep.subr.mxu0 0.0
    %1004 = vmatpush1.msra.mxu0 %v165
    %1005 = vmatprep.subr.mxu0 0.0
    %1006 = vmatpush1.msra.mxu0 %v162
    %1007 = vmatprep.subr.mxu0 0.0
    %1008 = vmatpush1.msra.mxu0 %v159
    %1009 = vmatprep.subr.mxu0 0.0
    %1010 = vmatpush1.msra.mxu0 %v156
    %1011 = vmatprep.subr.mxu0 0.0
    %1012 = vmatpush1.msra.mxu0 %v153
    %1013 = vmatprep.subr.mxu0 0.0
    %1014 = vmatpush1.msra.mxu0 %v150
    %1015 = vmatprep.subr.mxu0 0.0
    %1016 = vmatpush1.msra.mxu0 %v147
    %1017 = vmatprep.subr.mxu0 0.0
    %1018 = vmatpush1.msra.mxu0 %v144
    %1019 = vmatprep.subr.mxu0 0.0
    %1020 = vmatpush1.msra.mxu0 %v141
    %1021 = vmatprep.subr.mxu0 0.0
    %1022 = vmatpush1.msra.mxu0 %v138
    %1023 = vmatprep.subr.mxu0 0.0
    %1024 = vmatpush1.msra.mxu0 %v135
    %1025 = vmatprep.subr.mxu0 0.0
    %1026 = vmatpush1.msra.mxu0 %v132
    %1027 = vmatprep.subr.mxu0 0.0
    %1028 = vmatpush1.msra.mxu0 %v129
    %1029 = vmatprep.subr.mxu0 0.0
    %1030 = vmatpush1.msra.mxu0 %v126
    %1031 = vmatprep.subr.mxu0 0.0
    %1032 = vmatpush2.msra.mxu0 0.0
    %1033 = vmatprep.subr.mxu0 0.0
    %1034 = vmatpush2.msra.mxu0 0.0
    %1035 = vmatprep.subr.mxu0 0.0
    %1036 = vmatpush2.msra.mxu0 0.0
    %1037 = vmatprep.subr.mxu0 0.0
    %1038 = vmatpush2.msra.mxu0 0.0
    %1039 = vmatprep.subr.mxu0 0.0
    %1040 = vmatpush2.msra.mxu0 0.0
    %1041 = vmatprep.subr.mxu0 0.0
    %1042 = vmatpush2.msra.mxu0 0.0
    %1043 = vmatprep.subr.mxu0 0.0
    %1044 = vmatpush2.msra.mxu0 0.0
    %1045 = vmatprep.subr.mxu0 0.0
    %1046 = vmatpush2.msra.mxu0 0.0
    %1047 = vmatprep.subr.mxu0 0.0
    %1048 = vmatpush2.msra.mxu0 0.0
    %1049 = vmatprep.subr.mxu0 0.0
    %1050 = vmatpush2.msra.mxu0 0.0
    %1051 = vmatprep.subr.mxu0 0.0
    %1052 = vmatpush2.msra.mxu0 0.0
    %1053 = vmatprep.subr.mxu0 0.0
    %1054 = vmatpush2.msra.mxu0 0.0
    %1055 = vmatprep.subr.mxu0 0.0
    %1056 = vmatpush2.msra.mxu0 0.0
    %1057 = vmatprep.subr.mxu0 0.0
    %1058 = vmatpush2.msra.mxu0 0.0
    %1059 = vmatprep.subr.mxu0 0.0
    %1060 = vmatpush2.msra.mxu0 0.0
    %1061 = vmatprep.subr.mxu0 0.0
    %1062 = vmatpush2.msra.mxu0 0.0
    %1063 = vmatprep.mubr.f32.mxu0 0.0
    %1064 = vmatmul.mubr.f32.gmra.mxu0 %v927
    %v1065 = vpop.f32.mrf.mxu0
    %v1066 = vadd.f32 0.0, %v1065
    %v1067 = vpop.f32.mrf.mxu0
    %1068 = vdwg.mxu0
    %v1069 = vadd.f32 %v300, %v995
    %v1070 = vxor.u32 %v1069, 2147483648
    %v1071 = vmul.f32 %v1070, 1.442695
    %v1072 = vpow.pop %v1071
    %v1073 = vadd.f32 %v1072, 1.0
    %v1074 = vrcp.pop %v1073
    %v1075 = vmul.f32 1.0, %v1074
    %v1076 = vadd.f32 %v302, %v997
    %v1077 = vxor.u32 %v1076, 2147483648
    %v1078 = vmul.f32 %v1077, 1.442695
    %v1079 = vpow.pop %v1078
    %v1080 = vadd.f32 %v1079, 1.0
    %v1081 = vrcp.pop %v1080
    %v1082 = vmul.f32 1.0, %v1081
    %v1083 = vadd.f32 %v1066, %v592
    %v1084 = vmul.f32 %v1075, %v1083
    %v1085 = vadd.f32 %v410, %v1084
    %v1086 = vtanh.pop %v1085
    %v1087 = vsub.f32 1.0, %v1082
    %v1088 = vmul.f32 %v1087, %v1086
    %v1089 = vmul.f32 %v1082, %v927
    %v1090 = vadd.f32 %v1088, %v1089
    %1091 = vmatprep.subr.mxu0 %v170
    %1092 = vmatpush1.msra.mxu0 %v169
    %1093 = vmatprep.subr.mxu0 %v167
    %1094 = vmatpush1.msra.mxu0 %v166
    %1095 = vmatprep.subr.mxu0 %v164
    %1096 = vmatpush1.msra.mxu0 %v163
    %1097 = vmatprep.subr.mxu0 %v161
    %1098 = vmatpush1.msra.mxu0 %v160
    %1099 = vmatprep.subr.mxu0 %v158
    %1100 = vmatpush1.msra.mxu0 %v157
    %1101 = vmatprep.subr.mxu0 %v155
    %1102 = vmatpush1.msra.mxu0 %v154
    %1103 = vmatprep.subr.mxu0 %v152
    %1104 = vmatpush1.msra.mxu0 %v151
    %1105 = vmatprep.subr.mxu0 %v149
    %1106 = vmatpush1.msra.mxu0 %v148
    %1107 = vmatprep.subr.mxu0 %v146
    %1108 = vmatpush1.msra.mxu0 %v145
    %1109 = vmatprep.subr.mxu0 %v143
    %1110 = vmatpush1.msra.mxu0 %v142
    %1111 = vmatprep.subr.mxu0 %v140
    %1112 = vmatpush1.msra.mxu0 %v139
    %1113 = vmatprep.subr.mxu0 %v137
    %1114 = vmatpush1.msra.mxu0 %v136
    %1115 = vmatprep.subr.mxu0 %v134
    %1116 = vmatpush1.msra.mxu0 %v133
    %1117 = vmatprep.subr.mxu0 %v131
    %1118 = vmatpush1.msra.mxu0 %v130
    %1119 = vmatprep.subr.mxu0 %v128
    %1120 = vmatpush1.msra.mxu0 %v127
    %1121 = vmatprep.subr.mxu0 %v125
    %1122 = vmatpush1.msra.mxu0 %v124
    %1123 = vmatprep.subr.mxu0 0.0
    %1124 = vmatpush2.msra.mxu0 0.0
    %1125 = vmatprep.subr.mxu0 0.0
    %1126 = vmatpush2.msra.mxu0 0.0
    %1127 = vmatprep.subr.mxu0 0.0
    %1128 = vmatpush2.msra.mxu0 0.0
    %1129 = vmatprep.subr.mxu0 0.0
    %1130 = vmatpush2.msra.mxu0 0.0
    %1131 = vmatprep.subr.mxu0 0.0
    %1132 = vmatpush2.msra.mxu0 0.0
    %1133 = vmatprep.subr.mxu0 0.0
    %1134 = vmatpush2.msra.mxu0 0.0
    %1135 = vmatprep.subr.mxu0 0.0
    %1136 = vmatpush2.msra.mxu0 0.0
    %1137 = vmatprep.subr.mxu0 0.0
    %1138 = vmatpush2.msra.mxu0 0.0
    %1139 = vmatprep.subr.mxu0 0.0
    %1140 = vmatpush2.msra.mxu0 0.0
    %1141 = vmatprep.subr.mxu0 0.0
    %1142 = vmatpush2.msra.mxu0 0.0
    %1143 = vmatprep.subr.mxu0 0.0
    %1144 = vmatpush2.msra.mxu0 0.0
    %1145 = vmatprep.subr.mxu0 0.0
    %1146 = vmatpush2.msra.mxu0 0.0
    %1147 = vmatprep.subr.mxu0 0.0
    %1148 = vmatpush2.msra.mxu0 0.0
    %1149 = vmatprep.subr.mxu0 0.0
    %1150 = vmatpush2.msra.mxu0 0.0
    %1151 = vmatprep.subr.mxu0 0.0
    %1152 = vmatpush2.msra.mxu0 0.0
    %1153 = vmatprep.subr.mxu0 0.0
    %1154 = vmatpush2.msra.mxu0 0.0
    %1155 = vmatprep.mubr.f32.mxu0 0.0
    %1156 = vmatmul.mubr.f32.gmra.mxu0 %v1090
    %v1157 = vpop.f32.mrf.mxu0
    %v1158 = vadd.f32 0.0, %v1157
    %v1159 = vpop.f32.mrf.mxu0
    %v1160 = vadd.f32 0.0, %v1159
    %1161 = vdwg.mxu0
    %1162 = vmatprep.subr.mxu0 0.0
    %1163 = vmatpush1.msra.mxu0 %v171
    %1164 = vmatprep.subr.mxu0 0.0
    %1165 = vmatpush1.msra.mxu0 %v168
    %1166 = vmatprep.subr.mxu0 0.0
    %1167 = vmatpush1.msra.mxu0 %v165
    %1168 = vmatprep.subr.mxu0 0.0
    %1169 = vmatpush1.msra.mxu0 %v162
    %1170 = vmatprep.subr.mxu0 0.0
    %1171 = vmatpush1.msra.mxu0 %v159
    %1172 = vmatprep.subr.mxu0 0.0
    %1173 = vmatpush1.msra.mxu0 %v156
    %1174 = vmatprep.subr.mxu0 0.0
    %1175 = vmatpush1.msra.mxu0 %v153
    %1176 = vmatprep.subr.mxu0 0.0
    %1177 = vmatpush1.msra.mxu0 %v150
    %1178 = vmatprep.subr.mxu0 0.0
    %1179 = vmatpush1.msra.mxu0 %v147
    %1180 = vmatprep.subr.mxu0 0.0
    %1181 = vmatpush1.msra.mxu0 %v144
    %1182 = vmatprep.subr.mxu0 0.0
    %1183 = vmatpush1.msra.mxu0 %v141
    %1184 = vmatprep.subr.mxu0 0.0
    %1185 = vmatpush1.msra.mxu0 %v138
    %1186 = vmatprep.subr.mxu0 0.0
    %1187 = vmatpush1.msra.mxu0 %v135
    %1188 = vmatprep.subr.mxu0 0.0
    %1189 = vmatpush1.msra.mxu0 %v132
    %1190 = vmatprep.subr.mxu0 0.0
    %1191 = vmatpush1.msra.mxu0 %v129
    %1192 = vmatprep.subr.mxu0 0.0
    %1193 = vmatpush1.msra.mxu0 %v126
    %1194 = vmatprep.subr.mxu0 0.0
    %1195 = vmatpush2.msra.mxu0 0.0
    %1196 = vmatprep.subr.mxu0 0.0
    %1197 = vmatpush2.msra.mxu0 0.0
    %1198 = vmatprep.subr.mxu0 0.0
    %1199 = vmatpush2.msra.mxu0 0.0
    %1200 = vmatprep.subr.mxu0 0.0
    %1201 = vmatpush2.msra.mxu0 0.0
    %1202 = vmatprep.subr.mxu0 0.0
    %1203 = vmatpush2.msra.mxu0 0.0
    %1204 = vmatprep.subr.mxu0 0.0
    %1205 = vmatpush2.msra.mxu0 0.0
    %1206 = vmatprep.subr.mxu0 0.0
    %1207 = vmatpush2.msra.mxu0 0.0
    %1208 = vmatprep.subr.mxu0 0.0
    %1209 = vmatpush2.msra.mxu0 0.0
    %1210 = vmatprep.subr.mxu0 0.0
    %1211 = vmatpush2.msra.mxu0 0.0
    %1212 = vmatprep.subr.mxu0 0.0
    %1213 = vmatpush2.msra.mxu0 0.0
    %1214 = vmatprep.subr.mxu0 0.0
    %1215 = vmatpush2.msra.mxu0 0.0
    %1216 = vmatprep.subr.mxu0 0.0
    %1217 = vmatpush2.msra.mxu0 0.0
    %1218 = vmatprep.subr.mxu0 0.0
    %1219 = vmatpush2.msra.mxu0 0.0
    %1220 = vmatprep.subr.mxu0 0.0
    %1221 = vmatpush2.msra.mxu0 0.0
    %1222 = vmatprep.subr.mxu0 0.0
    %1223 = vmatpush2.msra.mxu0 0.0
    %1224 = vmatprep.subr.mxu0 0.0
    %1225 = vmatpush2.msra.mxu0 0.0
    %1226 = vmatprep.mubr.f32.mxu0 0.0
    %1227 = vmatmul.mubr.f32.gmra.mxu0 %v1090
    %v1228 = vpop.f32.mrf.mxu0
    %v1229 = vadd.f32 0.0, %v1228
    %v1230 = vpop.f32.mrf.mxu0
    %1231 = vdwg.mxu0
    %v1232 = vadd.f32 %v306, %v1158
    %v1233 = vxor.u32 %v1232, 2147483648
    %v1234 = vmul.f32 %v1233, 1.442695
    %v1235 = vpow.pop %v1234
    %v1236 = vadd.f32 %v1235, 1.0
    %v1237 = vrcp.pop %v1236
    %v1238 = vmul.f32 1.0, %v1237
    %v1239 = vadd.f32 %v308, %v1160
    %v1240 = vxor.u32 %v1239, 2147483648
    %v1241 = vmul.f32 %v1240, 1.442695
    %v1242 = vpow.pop %v1241
    %v1243 = vadd.f32 %v1242, 1.0
    %v1244 = vrcp.pop %v1243
    %v1245 = vmul.f32 1.0, %v1244
    %v1246 = vadd.f32 %v1229, %v592
    %v1247 = vmul.f32 %v1238, %v1246
    %v1248 = vadd.f32 %v415, %v1247
    %v1249 = vtanh.pop %v1248
    %v1250 = vsub.f32 1.0, %v1245
    %v1251 = vmul.f32 %v1250, %v1249
    %v1252 = vmul.f32 %v1245, %v1090
    %v1253 = vadd.f32 %v1251, %v1252
    %1254 = vmatprep.subr.mxu0 %v170
    %1255 = vmatpush1.msra.mxu0 %v169
    %1256 = vmatprep.subr.mxu0 %v167
    %1257 = vmatpush1.msra.mxu0 %v166
    %1258 = vmatprep.subr.mxu0 %v164
    %1259 = vmatpush1.msra.mxu0 %v163
    %1260 = vmatprep.subr.mxu0 %v161
    %1261 = vmatpush1.msra.mxu0 %v160
    %1262 = vmatprep.subr.mxu0 %v158
    %1263 = vmatpush1.msra.mxu0 %v157
    %1264 = vmatprep.subr.mxu0 %v155
    %1265 = vmatpush1.msra.mxu0 %v154
    %1266 = vmatprep.subr.mxu0 %v152
    %1267 = vmatpush1.msra.mxu0 %v151
    %1268 = vmatprep.subr.mxu0 %v149
    %1269 = vmatpush1.msra.mxu0 %v148
    %1270 = vmatprep.subr.mxu0 %v146
    %1271 = vmatpush1.msra.mxu0 %v145
    %1272 = vmatprep.subr.mxu0 %v143
    %1273 = vmatpush1.msra.mxu0 %v142
    %1274 = vmatprep.subr.mxu0 %v140
    %1275 = vmatpush1.msra.mxu0 %v139
    %1276 = vmatprep.subr.mxu0 %v137
    %1277 = vmatpush1.msra.mxu0 %v136
    %1278 = vmatprep.subr.mxu0 %v134
    %1279 = vmatpush1.msra.mxu0 %v133
    %1280 = vmatprep.subr.mxu0 %v131
    %1281 = vmatpush1.msra.mxu0 %v130
    %1282 = vmatprep.subr.mxu0 %v128
    %1283 = vmatpush1.msra.mxu0 %v127
    %1284 = vmatprep.subr.mxu0 %v125
    %1285 = vmatpush1.msra.mxu0 %v124
    %1286 = vmatprep.subr.mxu0 0.0
    %1287 = vmatpush2.msra.mxu0 0.0
    %1288 = vmatprep.subr.mxu0 0.0
    %1289 = vmatpush2.msra.mxu0 0.0
    %1290 = vmatprep.subr.mxu0 0.0
    %1291 = vmatpush2.msra.mxu0 0.0
    %1292 = vmatprep.subr.mxu0 0.0
    %1293 = vmatpush2.msra.mxu0 0.0
    %1294 = vmatprep.subr.mxu0 0.0
    %1295 = vmatpush2.msra.mxu0 0.0
    %1296 = vmatprep.subr.mxu0 0.0
    %1297 = vmatpush2.msra.mxu0 0.0
    %1298 = vmatprep.subr.mxu0 0.0
    %1299 = vmatpush2.msra.mxu0 0.0
    %1300 = vmatprep.subr.mxu0 0.0
    %1301 = vmatpush2.msra.mxu0 0.0
    %1302 = vmatprep.subr.mxu0 0.0
    %1303 = vmatpush2.msra.mxu0 0.0
    %1304 = vmatprep.subr.mxu0 0.0
    %1305 = vmatpush2.msra.mxu0 0.0
    %1306 = vmatprep.subr.mxu0 0.0
    %1307 = vmatpush2.msra.mxu0 0.0
    %1308 = vmatprep.subr.mxu0 0.0
    %1309 = vmatpush2.msra.mxu0 0.0
    %1310 = vmatprep.subr.mxu0 0.0
    %1311 = vmatpush2.msra.mxu0 0.0
    %1312 = vmatprep.subr.mxu0 0.0
    %1313 = vmatpush2.msra.mxu0 0.0
    %1314 = vmatprep.subr.mxu0 0.0
    %1315 = vmatpush2.msra.mxu0 0.0
    %1316 = vmatprep.subr.mxu0 0.0
    %1317 = vmatpush2.msra.mxu0 0.0
    %1318 = vmatprep.mubr.f32.mxu0 0.0
    %1319 = vmatmul.mubr.f32.gmra.mxu0 %v1253
    %v1320 = vpop.f32.mrf.mxu0
    %v1321 = vadd.f32 0.0, %v1320
    %v1322 = vpop.f32.mrf.mxu0
    %v1323 = vadd.f32 0.0, %v1322
    %1324 = vdwg.mxu0
    %1325 = vmatprep.subr.mxu0 0.0
    %1326 = vmatpush1.msra.mxu0 %v171
    %1327 = vmatprep.subr.mxu0 0.0
    %1328 = vmatpush1.msra.mxu0 %v168
    %1329 = vmatprep.subr.mxu0 0.0
    %1330 = vmatpush1.msra.mxu0 %v165
    %1331 = vmatprep.subr.mxu0 0.0
    %1332 = vmatpush1.msra.mxu0 %v162
    %1333 = vmatprep.subr.mxu0 0.0
    %1334 = vmatpush1.msra.mxu0 %v159
    %1335 = vmatprep.subr.mxu0 0.0
    %1336 = vmatpush1.msra.mxu0 %v156
    %1337 = vmatprep.subr.mxu0 0.0
    %1338 = vmatpush1.msra.mxu0 %v153
    %1339 = vmatprep.subr.mxu0 0.0
    %1340 = vmatpush1.msra.mxu0 %v150
    %1341 = vmatprep.subr.mxu0 0.0
    %1342 = vmatpush1.msra.mxu0 %v147
    %1343 = vmatprep.subr.mxu0 0.0
    %1344 = vmatpush1.msra.mxu0 %v144
    %1345 = vmatprep.subr.mxu0 0.0
    %1346 = vmatpush1.msra.mxu0 %v141
    %1347 = vmatprep.subr.mxu0 0.0
    %1348 = vmatpush1.msra.mxu0 %v138
    %1349 = vmatprep.subr.mxu0 0.0
    %1350 = vmatpush1.msra.mxu0 %v135
    %1351 = vmatprep.subr.mxu0 0.0
    %1352 = vmatpush1.msra.mxu0 %v132
    %1353 = vmatprep.subr.mxu0 0.0
    %1354 = vmatpush1.msra.mxu0 %v129
    %1355 = vmatprep.subr.mxu0 0.0
    %1356 = vmatpush1.msra.mxu0 %v126
    %1357 = vmatprep.subr.mxu0 0.0
    %1358 = vmatpush2.msra.mxu0 0.0
    %1359 = vmatprep.subr.mxu0 0.0
    %1360 = vmatpush2.msra.mxu0 0.0
    %1361 = vmatprep.subr.mxu0 0.0
    %1362 = vmatpush2.msra.mxu0 0.0
    %1363 = vmatprep.subr.mxu0 0.0
    %1364 = vmatpush2.msra.mxu0 0.0
    %1365 = vmatprep.subr.mxu0 0.0
    %1366 = vmatpush2.msra.mxu0 0.0
    %1367 = vmatprep.subr.mxu0 0.0
    %1368 = vmatpush2.msra.mxu0 0.0
    %1369 = vmatprep.subr.mxu0 0.0
    %1370 = vmatpush2.msra.mxu0 0.0
    %1371 = vmatprep.subr.mxu0 0.0
    %1372 = vmatpush2.msra.mxu0 0.0
    %1373 = vmatprep.subr.mxu0 0.0
    %1374 = vmatpush2.msra.mxu0 0.0
    %1375 = vmatprep.subr.mxu0 0.0
    %1376 = vmatpush2.msra.mxu0 0.0
    %1377 = vmatprep.subr.mxu0 0.0
    %1378 = vmatpush2.msra.mxu0 0.0
    %1379 = vmatprep.subr.mxu0 0.0
    %1380 = vmatpush2.msra.mxu0 0.0
    %1381 = vmatprep.subr.mxu0 0.0
    %1382 = vmatpush2.msra.mxu0 0.0
    %1383 = vmatprep.subr.mxu0 0.0
    %1384 = vmatpush2.msra.mxu0 0.0
    %1385 = vmatprep.subr.mxu0 0.0
    %1386 = vmatpush2.msra.mxu0 0.0
    %1387 = vmatprep.subr.mxu0 0.0
    %1388 = vmatpush2.msra.mxu0 0.0
    %1389 = vmatprep.mubr.f32.mxu0 0.0
    %1390 = vmatmul.mubr.f32.gmra.mxu0 %v1253
    %v1391 = vpop.f32.mrf.mxu0
    %v1392 = vadd.f32 0.0, %v1391
    %v1393 = vpop.f32.mrf.mxu0
    %1394 = vdwg.mxu0
    %v1395 = vadd.f32 %v312, %v1321
    %v1396 = vxor.u32 %v1395, 2147483648
    %v1397 = vmul.f32 %v1396, 1.442695
    %v1398 = vpow.pop %v1397
    %v1399 = vadd.f32 %v1398, 1.0
    %v1400 = vrcp.pop %v1399
    %v1401 = vmul.f32 1.0, %v1400
    %v1402 = vadd.f32 %v314, %v1323
    %v1403 = vxor.u32 %v1402, 2147483648
    %v1404 = vmul.f32 %v1403, 1.442695
    %v1405 = vpow.pop %v1404
    %v1406 = vadd.f32 %v1405, 1.0
    %v1407 = vrcp.pop %v1406
    %v1408 = vmul.f32 1.0, %v1407
    %v1409 = vadd.f32 %v1392, %v592
    %v1410 = vmul.f32 %v1401, %v1409
    %v1411 = vadd.f32 %v420, %v1410
    %v1412 = vtanh.pop %v1411
    %v1413 = vsub.f32 1.0, %v1408
    %v1414 = vmul.f32 %v1413, %v1412
    %v1415 = vmul.f32 %v1408, %v1253
    %v1416 = vadd.f32 %v1414, %v1415
    %1417 = vmatprep.subr.mxu0 %v170
    %1418 = vmatpush1.msra.mxu0 %v169
    %1419 = vmatprep.subr.mxu0 %v167
    %1420 = vmatpush1.msra.mxu0 %v166
    %1421 = vmatprep.subr.mxu0 %v164
    %1422 = vmatpush1.msra.mxu0 %v163
    %1423 = vmatprep.subr.mxu0 %v161
    %1424 = vmatpush1.msra.mxu0 %v160
    %1425 = vmatprep.subr.mxu0 %v158
    %1426 = vmatpush1.msra.mxu0 %v157
    %1427 = vmatprep.subr.mxu0 %v155
    %1428 = vmatpush1.msra.mxu0 %v154
    %1429 = vmatprep.subr.mxu0 %v152
    %1430 = vmatpush1.msra.mxu0 %v151
    %1431 = vmatprep.subr.mxu0 %v149
    %1432 = vmatpush1.msra.mxu0 %v148
    %1433 = vmatprep.subr.mxu0 %v146
    %1434 = vmatpush1.msra.mxu0 %v145
    %1435 = vmatprep.subr.mxu0 %v143
    %1436 = vmatpush1.msra.mxu0 %v142
    %1437 = vmatprep.subr.mxu0 %v140
    %1438 = vmatpush1.msra.mxu0 %v139
    %1439 = vmatprep.subr.mxu0 %v137
    %1440 = vmatpush1.msra.mxu0 %v136
    %1441 = vmatprep.subr.mxu0 %v134
    %1442 = vmatpush1.msra.mxu0 %v133
    %1443 = vmatprep.subr.mxu0 %v131
    %1444 = vmatpush1.msra.mxu0 %v130
    %1445 = vmatprep.subr.mxu0 %v128
    %1446 = vmatpush1.msra.mxu0 %v127
    %1447 = vmatprep.subr.mxu0 %v125
    %1448 = vmatpush1.msra.mxu0 %v124
    %1449 = vmatprep.subr.mxu0 0.0
    %1450 = vmatpush2.msra.mxu0 0.0
    %1451 = vmatprep.subr.mxu0 0.0
    %1452 = vmatpush2.msra.mxu0 0.0
    %1453 = vmatprep.subr.mxu0 0.0
    %1454 = vmatpush2.msra.mxu0 0.0
    %1455 = vmatprep.subr.mxu0 0.0
    %1456 = vmatpush2.msra.mxu0 0.0
    %1457 = vmatprep.subr.mxu0 0.0
    %1458 = vmatpush2.msra.mxu0 0.0
    %1459 = vmatprep.subr.mxu0 0.0
    %1460 = vmatpush2.msra.mxu0 0.0
    %1461 = vmatprep.subr.mxu0 0.0
    %1462 = vmatpush2.msra.mxu0 0.0
    %1463 = vmatprep.subr.mxu0 0.0
    %1464 = vmatpush2.msra.mxu0 0.0
    %1465 = vmatprep.subr.mxu0 0.0
    %1466 = vmatpush2.msra.mxu0 0.0
    %1467 = vmatprep.subr.mxu0 0.0
    %1468 = vmatpush2.msra.mxu0 0.0
    %1469 = vmatprep.subr.mxu0 0.0
    %1470 = vmatpush2.msra.mxu0 0.0
    %1471 = vmatprep.subr.mxu0 0.0
    %1472 = vmatpush2.msra.mxu0 0.0
    %1473 = vmatprep.subr.mxu0 0.0
    %1474 = vmatpush2.msra.mxu0 0.0
    %1475 = vmatprep.subr.mxu0 0.0
    %1476 = vmatpush2.msra.mxu0 0.0
    %1477 = vmatprep.subr.mxu0 0.0
    %1478 = vmatpush2.msra.mxu0 0.0
    %1479 = vmatprep.subr.mxu0 0.0
    %1480 = vmatpush2.msra.mxu0 0.0
    %1481 = vmatprep.mubr.f32.mxu0 0.0
    %1482 = vmatmul.mubr.f32.gmra.mxu0 %v1416
    %v1483 = vpop.f32.mrf.mxu0
    %v1484 = vadd.f32 0.0, %v1483
    %v1485 = vpop.f32.mrf.mxu0
    %v1486 = vadd.f32 0.0, %v1485
    %1487 = vdwg.mxu0
    %1488 = vmatprep.subr.mxu0 0.0
    %1489 = vmatpush1.msra.mxu0 %v171
    %1490 = vmatprep.subr.mxu0 0.0
    %1491 = vmatpush1.msra.mxu0 %v168
    %1492 = vmatprep.subr.mxu0 0.0
    %1493 = vmatpush1.msra.mxu0 %v165
    %1494 = vmatprep.subr.mxu0 0.0
    %1495 = vmatpush1.msra.mxu0 %v162
    %1496 = vmatprep.subr.mxu0 0.0
    %1497 = vmatpush1.msra.mxu0 %v159
    %1498 = vmatprep.subr.mxu0 0.0
    %1499 = vmatpush1.msra.mxu0 %v156
    %1500 = vmatprep.subr.mxu0 0.0
    %1501 = vmatpush1.msra.mxu0 %v153
    %1502 = vmatprep.subr.mxu0 0.0
    %1503 = vmatpush1.msra.mxu0 %v150
    %1504 = vmatprep.subr.mxu0 0.0
    %1505 = vmatpush1.msra.mxu0 %v147
    %1506 = vmatprep.subr.mxu0 0.0
    %1507 = vmatpush1.msra.mxu0 %v144
    %1508 = vmatprep.subr.mxu0 0.0
    %1509 = vmatpush1.msra.mxu0 %v141
    %1510 = vmatprep.subr.mxu0 0.0
    %1511 = vmatpush1.msra.mxu0 %v138
    %1512 = vmatprep.subr.mxu0 0.0
    %1513 = vmatpush1.msra.mxu0 %v135
    %1514 = vmatprep.subr.mxu0 0.0
    %1515 = vmatpush1.msra.mxu0 %v132
    %1516 = vmatprep.subr.mxu0 0.0
    %1517 = vmatpush1.msra.mxu0 %v129
    %1518 = vmatprep.subr.mxu0 0.0
    %1519 = vmatpush1.msra.mxu0 %v126
    %1520 = vmatprep.subr.mxu0 0.0
    %1521 = vmatpush2.msra.mxu0 0.0
    %1522 = vmatprep.subr.mxu0 0.0
    %1523 = vmatpush2.msra.mxu0 0.0
    %1524 = vmatprep.subr.mxu0 0.0
    %1525 = vmatpush2.msra.mxu0 0.0
    %1526 = vmatprep.subr.mxu0 0.0
    %1527 = vmatpush2.msra.mxu0 0.0
    %1528 = vmatprep.subr.mxu0 0.0
    %1529 = vmatpush2.msra.mxu0 0.0
    %1530 = vmatprep.subr.mxu0 0.0
    %1531 = vmatpush2.msra.mxu0 0.0
    %1532 = vmatprep.subr.mxu0 0.0
    %1533 = vmatpush2.msra.mxu0 0.0
    %1534 = vmatprep.subr.mxu0 0.0
    %1535 = vmatpush2.msra.mxu0 0.0
    %1536 = vmatprep.subr.mxu0 0.0
    %1537 = vmatpush2.msra.mxu0 0.0
    %1538 = vmatprep.subr.mxu0 0.0
    %1539 = vmatpush2.msra.mxu0 0.0
    %1540 = vmatprep.subr.mxu0 0.0
    %1541 = vmatpush2.msra.mxu0 0.0
    %1542 = vmatprep.subr.mxu0 0.0
    %1543 = vmatpush2.msra.mxu0 0.0
    %1544 = vmatprep.subr.mxu0 0.0
    %1545 = vmatpush2.msra.mxu0 0.0
    %1546 = vmatprep.subr.mxu0 0.0
    %1547 = vmatpush2.msra.mxu0 0.0
    %1548 = vmatprep.subr.mxu0 0.0
    %1549 = vmatpush2.msra.mxu0 0.0
    %1550 = vmatprep.subr.mxu0 0.0
    %1551 = vmatpush2.msra.mxu0 0.0
    %1552 = vmatprep.mubr.f32.mxu0 0.0
    %1553 = vmatmul.mubr.f32.gmra.mxu0 %v1416
    %v1554 = vpop.f32.mrf.mxu0
    %v1555 = vadd.f32 0.0, %v1554
    %v1556 = vpop.f32.mrf.mxu0
    %1557 = vdwg.mxu0
    %v1558 = vadd.f32 %v318, %v1484
    %v1559 = vxor.u32 %v1558, 2147483648
    %v1560 = vmul.f32 %v1559, 1.442695
    %v1561 = vpow.pop %v1560
    %v1562 = vadd.f32 %v1561, 1.0
    %v1563 = vrcp.pop %v1562
    %v1564 = vmul.f32 1.0, %v1563
    %v1565 = vadd.f32 %v320, %v1486
    %v1566 = vxor.u32 %v1565, 2147483648
    %v1567 = vmul.f32 %v1566, 1.442695
    %v1568 = vpow.pop %v1567
    %v1569 = vadd.f32 %v1568, 1.0
    %v1570 = vrcp.pop %v1569
    %v1571 = vmul.f32 1.0, %v1570
    %v1572 = vadd.f32 %v1555, %v592
    %v1573 = vmul.f32 %v1564, %v1572
    %v1574 = vadd.f32 %v425, %v1573
    %v1575 = vtanh.pop %v1574
    %v1576 = vsub.f32 1.0, %v1571
    %v1577 = vmul.f32 %v1576, %v1575
    %v1578 = vmul.f32 %v1571, %v1416
    %v1579 = vadd.f32 %v1577, %v1578
    %1580 = vmatprep.subr.mxu0 %v170
    %1581 = vmatpush1.msra.mxu0 %v169
    %1582 = vmatprep.subr.mxu0 %v167
    %1583 = vmatpush1.msra.mxu0 %v166
    %1584 = vmatprep.subr.mxu0 %v164
    %1585 = vmatpush1.msra.mxu0 %v163
    %1586 = vmatprep.subr.mxu0 %v161
    %1587 = vmatpush1.msra.mxu0 %v160
    %1588 = vmatprep.subr.mxu0 %v158
    %1589 = vmatpush1.msra.mxu0 %v157
    %1590 = vmatprep.subr.mxu0 %v155
    %1591 = vmatpush1.msra.mxu0 %v154
    %1592 = vmatprep.subr.mxu0 %v152
    %1593 = vmatpush1.msra.mxu0 %v151
    %1594 = vmatprep.subr.mxu0 %v149
    %1595 = vmatpush1.msra.mxu0 %v148
    %1596 = vmatprep.subr.mxu0 %v146
    %1597 = vmatpush1.msra.mxu0 %v145
    %1598 = vmatprep.subr.mxu0 %v143
    %1599 = vmatpush1.msra.mxu0 %v142
    %1600 = vmatprep.subr.mxu0 %v140
    %1601 = vmatpush1.msra.mxu0 %v139
    %1602 = vmatprep.subr.mxu0 %v137
    %1603 = vmatpush1.msra.mxu0 %v136
    %1604 = vmatprep.subr.mxu0 %v134
    %1605 = vmatpush1.msra.mxu0 %v133
    %1606 = vmatprep.subr.mxu0 %v131
    %1607 = vmatpush1.msra.mxu0 %v130
    %1608 = vmatprep.subr.mxu0 %v128
    %1609 = vmatpush1.msra.mxu0 %v127
    %1610 = vmatprep.subr.mxu0 %v125
    %1611 = vmatpush1.msra.mxu0 %v124
    %1612 = vmatprep.subr.mxu0 0.0
    %1613 = vmatpush2.msra.mxu0 0.0
    %1614 = vmatprep.subr.mxu0 0.0
    %1615 = vmatpush2.msra.mxu0 0.0
    %1616 = vmatprep.subr.mxu0 0.0
    %1617 = vmatpush2.msra.mxu0 0.0
    %1618 = vmatprep.subr.mxu0 0.0
    %1619 = vmatpush2.msra.mxu0 0.0
    %1620 = vmatprep.subr.mxu0 0.0
    %1621 = vmatpush2.msra.mxu0 0.0
    %1622 = vmatprep.subr.mxu0 0.0
    %1623 = vmatpush2.msra.mxu0 0.0
    %1624 = vmatprep.subr.mxu0 0.0
    %1625 = vmatpush2.msra.mxu0 0.0
    %1626 = vmatprep.subr.mxu0 0.0
    %1627 = vmatpush2.msra.mxu0 0.0
    %1628 = vmatprep.subr.mxu0 0.0
    %1629 = vmatpush2.msra.mxu0 0.0
    %1630 = vmatprep.subr.mxu0 0.0
    %1631 = vmatpush2.msra.mxu0 0.0
    %1632 = vmatprep.subr.mxu0 0.0
    %1633 = vmatpush2.msra.mxu0 0.0
    %1634 = vmatprep.subr.mxu0 0.0
    %1635 = vmatpush2.msra.mxu0 0.0
    %1636 = vmatprep.subr.mxu0 0.0
    %1637 = vmatpush2.msra.mxu0 0.0
    %1638 = vmatprep.subr.mxu0 0.0
    %1639 = vmatpush2.msra.mxu0 0.0
    %1640 = vmatprep.subr.mxu0 0.0
    %1641 = vmatpush2.msra.mxu0 0.0
    %1642 = vmatprep.subr.mxu0 0.0
    %1643 = vmatpush2.msra.mxu0 0.0
    %1644 = vmatprep.mubr.f32.mxu0 0.0
    %1645 = vmatmul.mubr.f32.gmra.mxu0 %v1579
    %v1646 = vpop.f32.mrf.mxu0
    %v1647 = vadd.f32 0.0, %v1646
    %v1648 = vpop.f32.mrf.mxu0
    %v1649 = vadd.f32 0.0, %v1648
    %1650 = vdwg.mxu0
    %1651 = vmatprep.subr.mxu0 0.0
    %1652 = vmatpush1.msra.mxu0 %v171
    %1653 = vmatprep.subr.mxu0 0.0
    %1654 = vmatpush1.msra.mxu0 %v168
    %1655 = vmatprep.subr.mxu0 0.0
    %1656 = vmatpush1.msra.mxu0 %v165
    %1657 = vmatprep.subr.mxu0 0.0
    %1658 = vmatpush1.msra.mxu0 %v162
    %1659 = vmatprep.subr.mxu0 0.0
    %1660 = vmatpush1.msra.mxu0 %v159
    %1661 = vmatprep.subr.mxu0 0.0
    %1662 = vmatpush1.msra.mxu0 %v156
    %1663 = vmatprep.subr.mxu0 0.0
    %1664 = vmatpush1.msra.mxu0 %v153
    %1665 = vmatprep.subr.mxu0 0.0
    %1666 = vmatpush1.msra.mxu0 %v150
    %1667 = vmatprep.subr.mxu0 0.0
    %1668 = vmatpush1.msra.mxu0 %v147
    %1669 = vmatprep.subr.mxu0 0.0
    %1670 = vmatpush1.msra.mxu0 %v144
    %1671 = vmatprep.subr.mxu0 0.0
    %1672 = vmatpush1.msra.mxu0 %v141
    %1673 = vmatprep.subr.mxu0 0.0
    %1674 = vmatpush1.msra.mxu0 %v138
    %1675 = vmatprep.subr.mxu0 0.0
    %1676 = vmatpush1.msra.mxu0 %v135
    %1677 = vmatprep.subr.mxu0 0.0
    %1678 = vmatpush1.msra.mxu0 %v132
    %1679 = vmatprep.subr.mxu0 0.0
    %1680 = vmatpush1.msra.mxu0 %v129
    %1681 = vmatprep.subr.mxu0 0.0
    %1682 = vmatpush1.msra.mxu0 %v126
    %1683 = vmatprep.subr.mxu0 0.0
    %1684 = vmatpush2.msra.mxu0 0.0
    %1685 = vmatprep.subr.mxu0 0.0
    %1686 = vmatpush2.msra.mxu0 0.0
    %1687 = vmatprep.subr.mxu0 0.0
    %1688 = vmatpush2.msra.mxu0 0.0
    %1689 = vmatprep.subr.mxu0 0.0
    %1690 = vmatpush2.msra.mxu0 0.0
    %1691 = vmatprep.subr.mxu0 0.0
    %1692 = vmatpush2.msra.mxu0 0.0
    %1693 = vmatprep.subr.mxu0 0.0
    %1694 = vmatpush2.msra.mxu0 0.0
    %1695 = vmatprep.subr.mxu0 0.0
    %1696 = vmatpush2.msra.mxu0 0.0
    %1697 = vmatprep.subr.mxu0 0.0
    %1698 = vmatpush2.msra.mxu0 0.0
    %1699 = vmatprep.subr.mxu0 0.0
    %1700 = vmatpush2.msra.mxu0 0.0
    %1701 = vmatprep.subr.mxu0 0.0
    %1702 = vmatpush2.msra.mxu0 0.0
    %1703 = vmatprep.subr.mxu0 0.0
    %1704 = vmatpush2.msra.mxu0 0.0
    %1705 = vmatprep.subr.mxu0 0.0
    %1706 = vmatpush2.msra.mxu0 0.0
    %1707 = vmatprep.subr.mxu0 0.0
    %1708 = vmatpush2.msra.mxu0 0.0
    %1709 = vmatprep.subr.mxu0 0.0
    %1710 = vmatpush2.msra.mxu0 0.0
    %1711 = vmatprep.subr.mxu0 0.0
    %1712 = vmatpush2.msra.mxu0 0.0
    %1713 = vmatprep.subr.mxu0 0.0
    %1714 = vmatpush2.msra.mxu0 0.0
    %1715 = vmatprep.mubr.f32.mxu0 0.0
    %1716 = vmatmul.mubr.f32.gmra.mxu0 %v1579
    %v1717 = vpop.f32.mrf.mxu0
    %v1718 = vadd.f32 0.0, %v1717
    %v1719 = vpop.f32.mrf.mxu0
    %1720 = vdwg.mxu0
    %v1721 = vadd.f32 %v324, %v1647
    %v1722 = vxor.u32 %v1721, 2147483648
    %v1723 = vmul.f32 %v1722, 1.442695
    %v1724 = vpow.pop %v1723
    %v1725 = vadd.f32 %v1724, 1.0
    %v1726 = vrcp.pop %v1725
    %v1727 = vmul.f32 1.0, %v1726
    %v1728 = vadd.f32 %v326, %v1649
    %v1729 = vxor.u32 %v1728, 2147483648
    %v1730 = vmul.f32 %v1729, 1.442695
    %v1731 = vpow.pop %v1730
    %v1732 = vadd.f32 %v1731, 1.0
    %v1733 = vrcp.pop %v1732
    %v1734 = vmul.f32 1.0, %v1733
    %v1735 = vadd.f32 %v1718, %v592
    %v1736 = vmul.f32 %v1727, %v1735
    %v1737 = vadd.f32 %v430, %v1736
    %v1738 = vtanh.pop %v1737
    %v1739 = vsub.f32 1.0, %v1734
    %v1740 = vmul.f32 %v1739, %v1738
    %v1741 = vmul.f32 %v1734, %v1579
    %v1742 = vadd.f32 %v1740, %v1741
    %v1743 = vld [vmem:[#allocation8] sm:$0xff]
    %v1744 = vld [vmem:[#allocation8 + $0x8] sm:$0xff]
    %v1745 = vld [vmem:[#allocation8 + $0x10] sm:$0xff]
    %v1746 = vld [vmem:[#allocation8 + $0x18] sm:$0xff]
    %v1747 = vld [vmem:[#allocation8 + $0x20] sm:$0xff]
    %v1748 = vld [vmem:[#allocation8 + $0x28] sm:$0xff]
    %v1749 = vld [vmem:[#allocation8 + $0x30] sm:$0xff]
    %v1750 = vld [vmem:[#allocation8 + $0x38] sm:$0xff]
    %v1751 = vld [vmem:[#allocation8 + $0x40] sm:$0xff]
    %v1752 = vld [vmem:[#allocation8 + $0x48] sm:$0xff]
    %v1753 = vld [vmem:[#allocation8 + $0x50] sm:$0xff]
    %v1754 = vld [vmem:[#allocation8 + $0x58] sm:$0xff]
    %v1755 = vld [vmem:[#allocation8 + $0x60] sm:$0xff]
    %v1756 = vld [vmem:[#allocation8 + $0x68] sm:$0xff]
    %v1757 = vld [vmem:[#allocation8 + $0x70] sm:$0xff]
    %v1758 = vld [vmem:[#allocation8 + $0x78] sm:$0xff]
    %v1759 = vld [vmem:[#allocation8 + $0x80] sm:$0xff]
    %v1760 = vld [vmem:[#allocation8 + $0x88] sm:$0xff]
    %v1761 = vld [vmem:[#allocation8 + $0x90] sm:$0xff]
    %v1762 = vld [vmem:[#allocation8 + $0x98] sm:$0xff]
    %v1763 = vld [vmem:[#allocation8 + $0xa0] sm:$0xff]
    %v1764 = vld [vmem:[#allocation8 + $0xa8] sm:$0xff]
    %v1765 = vld [vmem:[#allocation8 + $0xb0] sm:$0xff]
    %v1766 = vld [vmem:[#allocation8 + $0xb8] sm:$0xff]
    %v1767 = vld [vmem:[#allocation8 + $0xc0] sm:$0xff]
    %v1768 = vld [vmem:[#allocation8 + $0xc8] sm:$0xff]
    %v1769 = vld [vmem:[#allocation8 + $0xd0] sm:$0xff]
    %v1770 = vld [vmem:[#allocation8 + $0xd8] sm:$0xff]
    %v1771 = vld [vmem:[#allocation8 + $0xe0] sm:$0xff]
    %v1772 = vld [vmem:[#allocation8 + $0xe8] sm:$0xff]
    %v1773 = vld [vmem:[#allocation8 + $0xf0] sm:$0xff]
    %v1774 = vld [vmem:[#allocation8 + $0xf8] sm:$0xff]
    %v1775 = vld [vmem:[#allocation8 + $0x100] sm:$0xff]
    %v1776 = vld [vmem:[#allocation8 + $0x108] sm:$0xff]
    %v1777 = vld [vmem:[#allocation8 + $0x110] sm:$0xff]
    %v1778 = vld [vmem:[#allocation8 + $0x118] sm:$0xff]
    %v1779 = vld [vmem:[#allocation8 + $0x120] sm:$0xff]
    %v1780 = vld [vmem:[#allocation8 + $0x128] sm:$0xff]
    %v1781 = vld [vmem:[#allocation8 + $0x130] sm:$0xff]
    %v1782 = vld [vmem:[#allocation8 + $0x138] sm:$0xff]
    %v1783 = vld [vmem:[#allocation8 + $0x140] sm:$0xff]
    %v1784 = vld [vmem:[#allocation8 + $0x148] sm:$0xff]
    %v1785 = vld [vmem:[#allocation8 + $0x150] sm:$0xff]
    %v1786 = vld [vmem:[#allocation8 + $0x158] sm:$0xff]
    %v1787 = vld [vmem:[#allocation8 + $0x160] sm:$0xff]
    %v1788 = vld [vmem:[#allocation8 + $0x168] sm:$0xff]
    %v1789 = vld [vmem:[#allocation8 + $0x170] sm:$0xff]
    %v1790 = vld [vmem:[#allocation8 + $0x178] sm:$0xff]
    %v1791 = vld [vmem:[#allocation10] sm:$0xff]
    %v1792 = vld [vmem:[#allocation10 + $0x8] sm:$0xff]
    %v1793 = vld [vmem:[#allocation10 + $0x10] sm:$0xff]
    %v1794 = vld [vmem:[#allocation10 + $0x18] sm:$0xff]
    %v1795 = vld [vmem:[#allocation10 + $0x20] sm:$0xff]
    %v1796 = vld [vmem:[#allocation10 + $0x28] sm:$0xff]
    %v1797 = vld [vmem:[#allocation10 + $0x30] sm:$0xff]
    %v1798 = vld [vmem:[#allocation10 + $0x38] sm:$0xff]
    %v1799 = vld [vmem:[#allocation10 + $0x40] sm:$0xff]
    %v1800 = vld [vmem:[#allocation10 + $0x48] sm:$0xff]
    %v1801 = vld [vmem:[#allocation10 + $0x50] sm:$0xff]
    %v1802 = vld [vmem:[#allocation10 + $0x58] sm:$0xff]
    %v1803 = vld [vmem:[#allocation10 + $0x60] sm:$0xff]
    %v1804 = vld [vmem:[#allocation10 + $0x68] sm:$0xff]
    %v1805 = vld [vmem:[#allocation10 + $0x70] sm:$0xff]
    %v1806 = vld [vmem:[#allocation10 + $0x78] sm:$0xff]
    %v1807 = vld [vmem:[#allocation10 + $0x80] sm:$0xff]
    %v1808 = vld [vmem:[#allocation10 + $0x88] sm:$0xff]
    %v1809 = vld [vmem:[#allocation10 + $0x90] sm:$0xff]
    %v1810 = vld [vmem:[#allocation10 + $0x98] sm:$0xff]
    %v1811 = vld [vmem:[#allocation10 + $0xa0] sm:$0xff]
    %v1812 = vld [vmem:[#allocation10 + $0xa8] sm:$0xff]
    %v1813 = vld [vmem:[#allocation10 + $0xb0] sm:$0xff]
    %v1814 = vld [vmem:[#allocation10 + $0xb8] sm:$0xff]
    %v1815 = vld [vmem:[#allocation10 + $0xc0] sm:$0xff]
    %v1816 = vld [vmem:[#allocation10 + $0xc8] sm:$0xff]
    %v1817 = vld [vmem:[#allocation10 + $0xd0] sm:$0xff]
    %v1818 = vld [vmem:[#allocation10 + $0xd8] sm:$0xff]
    %v1819 = vld [vmem:[#allocation10 + $0xe0] sm:$0xff]
    %v1820 = vld [vmem:[#allocation10 + $0xe8] sm:$0xff]
    %v1821 = vld [vmem:[#allocation10 + $0xf0] sm:$0xff]
    %v1822 = vld [vmem:[#allocation10 + $0xf8] sm:$0xff]
    %v1823 = vld [vmem:[#allocation10 + $0x100] sm:$0xff]
    %v1824 = vld [vmem:[#allocation10 + $0x108] sm:$0xff]
    %v1825 = vld [vmem:[#allocation10 + $0x110] sm:$0xff]
    %v1826 = vld [vmem:[#allocation10 + $0x118] sm:$0xff]
    %v1827 = vld [vmem:[#allocation10 + $0x120] sm:$0xff]
    %v1828 = vld [vmem:[#allocation10 + $0x128] sm:$0xff]
    %v1829 = vld [vmem:[#allocation10 + $0x130] sm:$0xff]
    %v1830 = vld [vmem:[#allocation10 + $0x138] sm:$0xff]
    %v1831 = vld [vmem:[#allocation10 + $0x140] sm:$0xff]
    %v1832 = vld [vmem:[#allocation10 + $0x148] sm:$0xff]
    %v1833 = vld [vmem:[#allocation10 + $0x150] sm:$0xff]
    %v1834 = vld [vmem:[#allocation10 + $0x158] sm:$0xff]
    %v1835 = vld [vmem:[#allocation10 + $0x160] sm:$0xff]
    %v1836 = vld [vmem:[#allocation10 + $0x168] sm:$0xff]
    %v1837 = vld [vmem:[#allocation10 + $0x170] sm:$0xff]
    %v1838 = vld [vmem:[#allocation10 + $0x178] sm:$0xff]
    %v1839 = vld [vmem:[%s7] sm:$0x7]
    %v1840 = vld [vmem:[%s8] sm:$0x1]
    %v1842 = vlaneseq
    %v1843 = vshrl.u32 %v1842, 7
    %v1844 = vsub.s32 0, %v1843
    %v1845 = vrot.slane %v1839, %v1844
    %v1846 = vlaneseq
    %v1847 = vshrl.u32 %v1846, 7
    %v1848 = vsub.s32 1, %v1847
    %v1849 = vrot.slane %v1839, %v1848
    %v1850 = vlaneseq
    %v1851 = vshrl.u32 %v1850, 7
    %v1852 = vsub.s32 2, %v1851
    %v1853 = vrot.slane %v1839, %v1852
    %1857 = vmatprep.subr.mxu0 %v1789
    %1858 = vmatpush1.msra.mxu0 %v1788
    %1859 = vmatprep.subr.mxu0 %v1786
    %1860 = vmatpush1.msra.mxu0 %v1785
    %1861 = vmatprep.subr.mxu0 %v1783
    %1862 = vmatpush1.msra.mxu0 %v1782
    %1863 = vmatprep.subr.mxu0 %v1780
    %1864 = vmatpush1.msra.mxu0 %v1779
    %1865 = vmatprep.subr.mxu0 %v1777
    %1866 = vmatpush1.msra.mxu0 %v1776
    %1867 = vmatprep.subr.mxu0 %v1774
    %1868 = vmatpush1.msra.mxu0 %v1773
    %1869 = vmatprep.subr.mxu0 %v1771
    %1870 = vmatpush1.msra.mxu0 %v1770
    %1871 = vmatprep.subr.mxu0 %v1768
    %1872 = vmatpush1.msra.mxu0 %v1767
    %1873 = vmatprep.subr.mxu0 %v1765
    %1874 = vmatpush1.msra.mxu0 %v1764
    %1875 = vmatprep.subr.mxu0 %v1762
    %1876 = vmatpush1.msra.mxu0 %v1761
    %1877 = vmatprep.subr.mxu0 %v1759
    %1878 = vmatpush1.msra.mxu0 %v1758
    %1879 = vmatprep.subr.mxu0 %v1756
    %1880 = vmatpush1.msra.mxu0 %v1755
    %1881 = vmatprep.subr.mxu0 %v1753
    %1882 = vmatpush1.msra.mxu0 %v1752
    %1883 = vmatprep.subr.mxu0 %v1750
    %1884 = vmatpush1.msra.mxu0 %v1749
    %1885 = vmatprep.subr.mxu0 %v1747
    %1886 = vmatpush1.msra.mxu0 %v1746
    %1887 = vmatprep.subr.mxu0 %v1744
    %1888 = vmatpush1.msra.mxu0 %v1743
    %1889 = vmatprep.subr.mxu0 0.0
    %1890 = vmatpush2.msra.mxu0 0.0
    %1891 = vmatprep.subr.mxu0 0.0
    %1892 = vmatpush2.msra.mxu0 0.0
    %1893 = vmatprep.subr.mxu0 0.0
    %1894 = vmatpush2.msra.mxu0 0.0
    %1895 = vmatprep.subr.mxu0 0.0
    %1896 = vmatpush2.msra.mxu0 0.0
    %1897 = vmatprep.subr.mxu0 0.0
    %1898 = vmatpush2.msra.mxu0 0.0
    %1899 = vmatprep.subr.mxu0 0.0
    %1900 = vmatpush2.msra.mxu0 0.0
    %1901 = vmatprep.subr.mxu0 0.0
    %1902 = vmatpush2.msra.mxu0 0.0
    %1903 = vmatprep.subr.mxu0 0.0
    %1904 = vmatpush2.msra.mxu0 0.0
    %1905 = vmatprep.subr.mxu0 0.0
    %1906 = vmatpush2.msra.mxu0 0.0
    %1907 = vmatprep.subr.mxu0 0.0
    %1908 = vmatpush2.msra.mxu0 0.0
    %1909 = vmatprep.subr.mxu0 0.0
    %1910 = vmatpush2.msra.mxu0 0.0
    %1911 = vmatprep.subr.mxu0 0.0
    %1912 = vmatpush2.msra.mxu0 0.0
    %1913 = vmatprep.subr.mxu0 0.0
    %1914 = vmatpush2.msra.mxu0 0.0
    %1915 = vmatprep.subr.mxu0 0.0
    %1916 = vmatpush2.msra.mxu0 0.0
    %1917 = vmatprep.subr.mxu0 0.0
    %1918 = vmatpush2.msra.mxu0 0.0
    %1919 = vmatprep.subr.mxu0 0.0
    %1920 = vmatpush2.msra.mxu0 0.0
    %1921 = vmatprep.mubr.f32.mxu0 0.0
    %1922 = vmatmul.mubr.f32.gmra.mxu0 %v601
    %v1923 = vpop.f32.mrf.mxu0
    %v1924 = vadd.f32 %v1845, %v1923
    %v1925 = vpop.f32.mrf.mxu0
    %v1926 = vadd.f32 %v1849, %v1925
    %1927 = vmatprep.mubr.f32.mxu0 0.0
    %1928 = vmatmul.mubr.f32.gmra.mxu0 %v764
    %v1929 = vpop.f32.mrf.mxu0
    %v1930 = vadd.f32 %v1845, %v1929
    %v1931 = vpop.f32.mrf.mxu0
    %v1932 = vadd.f32 %v1849, %v1931
    %1933 = vmatprep.mubr.f32.mxu0 0.0
    %1934 = vmatmul.mubr.f32.gmra.mxu0 %v927
    %v1935 = vpop.f32.mrf.mxu0
    %v1936 = vadd.f32 %v1845, %v1935
    %v1937 = vpop.f32.mrf.mxu0
    %v1938 = vadd.f32 %v1849, %v1937
    %1939 = vmatprep.mubr.f32.mxu0 0.0
    %1940 = vmatmul.mubr.f32.gmra.mxu0 %v1090
    %v1941 = vpop.f32.mrf.mxu0
    %v1942 = vadd.f32 %v1845, %v1941
    %v1943 = vpop.f32.mrf.mxu0
    %v1944 = vadd.f32 %v1849, %v1943
    %1945 = vmatprep.mubr.f32.mxu0 0.0
    %1946 = vmatmul.mubr.f32.gmra.mxu0 %v1253
    %v1947 = vpop.f32.mrf.mxu0
    %v1948 = vadd.f32 %v1845, %v1947
    %v1949 = vpop.f32.mrf.mxu0
    %v1950 = vadd.f32 %v1849, %v1949
    %1951 = vmatprep.mubr.f32.mxu0 0.0
    %1952 = vmatmul.mubr.f32.gmra.mxu0 %v1416
    %v1953 = vpop.f32.mrf.mxu0
    %v1954 = vadd.f32 %v1845, %v1953
    %v1955 = vpop.f32.mrf.mxu0
    %v1956 = vadd.f32 %v1849, %v1955
    %1957 = vmatprep.mubr.f32.mxu0 0.0
    %1958 = vmatmul.mubr.f32.gmra.mxu0 %v1579
    %v1959 = vpop.f32.mrf.mxu0
    %v1960 = vadd.f32 %v1845, %v1959
    %v1961 = vpop.f32.mrf.mxu0
    %v1962 = vadd.f32 %v1849, %v1961
    %1963 = vmatprep.mubr.f32.mxu0 0.0
    %1964 = vmatmul.mubr.f32.gmra.mxu0 %v1742
    %v1965 = vpop.f32.mrf.mxu0
    %v1966 = vadd.f32 %v1845, %v1965
    %v1967 = vpop.f32.mrf.mxu0
    %v1968 = vadd.f32 %v1849, %v1967
    %1969 = vdwg.mxu0
    %1970 = vmatprep.subr.mxu0 0.0
    %1971 = vmatpush1.msra.mxu0 %v1790
    %1972 = vmatprep.subr.mxu0 0.0
    %1973 = vmatpush1.msra.mxu0 %v1787
    %1974 = vmatprep.subr.mxu0 0.0
    %1975 = vmatpush1.msra.mxu0 %v1784
    %1976 = vmatprep.subr.mxu0 0.0
    %1977 = vmatpush1.msra.mxu0 %v1781
    %1978 = vmatprep.subr.mxu0 0.0
    %1979 = vmatpush1.msra.mxu0 %v1778
    %1980 = vmatprep.subr.mxu0 0.0
    %1981 = vmatpush1.msra.mxu0 %v1775
    %1982 = vmatprep.subr.mxu0 0.0
    %1983 = vmatpush1.msra.mxu0 %v1772
    %1984 = vmatprep.subr.mxu0 0.0
    %1985 = vmatpush1.msra.mxu0 %v1769
    %1986 = vmatprep.subr.mxu0 0.0
    %1987 = vmatpush1.msra.mxu0 %v1766
    %1988 = vmatprep.subr.mxu0 0.0
    %1989 = vmatpush1.msra.mxu0 %v1763
    %1990 = vmatprep.subr.mxu0 0.0
    %1991 = vmatpush1.msra.mxu0 %v1760
    %1992 = vmatprep.subr.mxu0 0.0
    %1993 = vmatpush1.msra.mxu0 %v1757
    %1994 = vmatprep.subr.mxu0 0.0
    %1995 = vmatpush1.msra.mxu0 %v1754
    %1996 = vmatprep.subr.mxu0 0.0
    %1997 = vmatpush1.msra.mxu0 %v1751
    %1998 = vmatprep.subr.mxu0 0.0
    %1999 = vmatpush1.msra.mxu0 %v1748
    %2000 = vmatprep.subr.mxu0 0.0
    %2001 = vmatpush1.msra.mxu0 %v1745
    %2002 = vmatprep.subr.mxu0 0.0
    %2003 = vmatpush2.msra.mxu0 0.0
    %2004 = vmatprep.subr.mxu0 0.0
    %2005 = vmatpush2.msra.mxu0 0.0
    %2006 = vmatprep.subr.mxu0 0.0
    %2007 = vmatpush2.msra.mxu0 0.0
    %2008 = vmatprep.subr.mxu0 0.0
    %2009 = vmatpush2.msra.mxu0 0.0
    %2010 = vmatprep.subr.mxu0 0.0
    %2011 = vmatpush2.msra.mxu0 0.0
    %2012 = vmatprep.subr.mxu0 0.0
    %2013 = vmatpush2.msra.mxu0 0.0
    %2014 = vmatprep.subr.mxu0 0.0
    %2015 = vmatpush2.msra.mxu0 0.0
    %2016 = vmatprep.subr.mxu0 0.0
    %2017 = vmatpush2.msra.mxu0 0.0
    %2018 = vmatprep.subr.mxu0 0.0
    %2019 = vmatpush2.msra.mxu0 0.0
    %2020 = vmatprep.subr.mxu0 0.0
    %2021 = vmatpush2.msra.mxu0 0.0
    %2022 = vmatprep.subr.mxu0 0.0
    %2023 = vmatpush2.msra.mxu0 0.0
    %2024 = vmatprep.subr.mxu0 0.0
    %2025 = vmatpush2.msra.mxu0 0.0
    %2026 = vmatprep.subr.mxu0 0.0
    %2027 = vmatpush2.msra.mxu0 0.0
    %2028 = vmatprep.subr.mxu0 0.0
    %2029 = vmatpush2.msra.mxu0 0.0
    %2030 = vmatprep.subr.mxu0 0.0
    %2031 = vmatpush2.msra.mxu0 0.0
    %2032 = vmatprep.subr.mxu0 0.0
    %2033 = vmatpush2.msra.mxu0 0.0
    %2034 = vmatprep.mubr.f32.mxu0 0.0
    %2035 = vmatmul.mubr.f32.gmra.mxu0 %v601
    %v2036 = vpop.f32.mrf.mxu0
    %v2037 = vadd.f32 %v1853, %v2036
    %v2038 = vpop.f32.mrf.mxu0
    %2039 = vmatprep.mubr.f32.mxu0 0.0
    %2040 = vmatmul.mubr.f32.gmra.mxu0 %v764
    %v2041 = vpop.f32.mrf.mxu0
    %v2042 = vadd.f32 %v1853, %v2041
    %v2043 = vpop.f32.mrf.mxu0
    %2044 = vmatprep.mubr.f32.mxu0 0.0
    %2045 = vmatmul.mubr.f32.gmra.mxu0 %v927
    %v2046 = vpop.f32.mrf.mxu0
    %v2047 = vadd.f32 %v1853, %v2046
    %v2048 = vpop.f32.mrf.mxu0
    %2049 = vmatprep.mubr.f32.mxu0 0.0
    %2050 = vmatmul.mubr.f32.gmra.mxu0 %v1090
    %v2051 = vpop.f32.mrf.mxu0
    %v2052 = vadd.f32 %v1853, %v2051
    %v2053 = vpop.f32.mrf.mxu0
    %2054 = vmatprep.mubr.f32.mxu0 0.0
    %2055 = vmatmul.mubr.f32.gmra.mxu0 %v1253
    %v2056 = vpop.f32.mrf.mxu0
    %v2057 = vadd.f32 %v1853, %v2056
    %v2058 = vpop.f32.mrf.mxu0
    %2059 = vmatprep.mubr.f32.mxu0 0.0
    %2060 = vmatmul.mubr.f32.gmra.mxu0 %v1416
    %v2061 = vpop.f32.mrf.mxu0
    %v2062 = vadd.f32 %v1853, %v2061
    %v2063 = vpop.f32.mrf.mxu0
    %2064 = vmatprep.mubr.f32.mxu0 0.0
    %2065 = vmatmul.mubr.f32.gmra.mxu0 %v1579
    %v2066 = vpop.f32.mrf.mxu0
    %v2067 = vadd.f32 %v1853, %v2066
    %v2068 = vpop.f32.mrf.mxu0
    %2069 = vmatprep.mubr.f32.mxu0 0.0
    %2070 = vmatmul.mubr.f32.gmra.mxu0 %v1742
    %v2071 = vpop.f32.mrf.mxu0
    %v2072 = vadd.f32 %v1853, %v2071
    %v2073 = vpop.f32.mrf.mxu0
    %2074 = vdwg.mxu0
    %2075 = vmatprep.subr.mxu0 %v1837
    %2076 = vmatpush1.msra.mxu0 %v1836
    %2077 = vmatprep.subr.mxu0 %v1834
    %2078 = vmatpush1.msra.mxu0 %v1833
    %2079 = vmatprep.subr.mxu0 %v1831
    %2080 = vmatpush1.msra.mxu0 %v1830
    %2081 = vmatprep.subr.mxu0 %v1828
    %2082 = vmatpush1.msra.mxu0 %v1827
    %2083 = vmatprep.subr.mxu0 %v1825
    %2084 = vmatpush1.msra.mxu0 %v1824
    %2085 = vmatprep.subr.mxu0 %v1822
    %2086 = vmatpush1.msra.mxu0 %v1821
    %2087 = vmatprep.subr.mxu0 %v1819
    %2088 = vmatpush1.msra.mxu0 %v1818
    %2089 = vmatprep.subr.mxu0 %v1816
    %2090 = vmatpush1.msra.mxu0 %v1815
    %2091 = vmatprep.subr.mxu0 %v1813
    %2092 = vmatpush1.msra.mxu0 %v1812
    %2093 = vmatprep.subr.mxu0 %v1810
    %2094 = vmatpush1.msra.mxu0 %v1809
    %2095 = vmatprep.subr.mxu0 %v1807
    %2096 = vmatpush1.msra.mxu0 %v1806
    %2097 = vmatprep.subr.mxu0 %v1804
    %2098 = vmatpush1.msra.mxu0 %v1803
    %2099 = vmatprep.subr.mxu0 %v1801
    %2100 = vmatpush1.msra.mxu0 %v1800
    %2101 = vmatprep.subr.mxu0 %v1798
    %2102 = vmatpush1.msra.mxu0 %v1797
    %2103 = vmatprep.subr.mxu0 %v1795
    %2104 = vmatpush1.msra.mxu0 %v1794
    %2105 = vmatprep.subr.mxu0 %v1792
    %2106 = vmatpush1.msra.mxu0 %v1791
    %2107 = vmatprep.subr.mxu0 0.0
    %2108 = vmatpush2.msra.mxu0 0.0
    %2109 = vmatprep.subr.mxu0 0.0
    %2110 = vmatpush2.msra.mxu0 0.0
    %2111 = vmatprep.subr.mxu0 0.0
    %2112 = vmatpush2.msra.mxu0 0.0
    %2113 = vmatprep.subr.mxu0 0.0
    %2114 = vmatpush2.msra.mxu0 0.0
    %2115 = vmatprep.subr.mxu0 0.0
    %2116 = vmatpush2.msra.mxu0 0.0
    %2117 = vmatprep.subr.mxu0 0.0
    %2118 = vmatpush2.msra.mxu0 0.0
    %2119 = vmatprep.subr.mxu0 0.0
    %2120 = vmatpush2.msra.mxu0 0.0
    %2121 = vmatprep.subr.mxu0 0.0
    %2122 = vmatpush2.msra.mxu0 0.0
    %2123 = vmatprep.subr.mxu0 0.0
    %2124 = vmatpush2.msra.mxu0 0.0
    %2125 = vmatprep.subr.mxu0 0.0
    %2126 = vmatpush2.msra.mxu0 0.0
    %2127 = vmatprep.subr.mxu0 0.0
    %2128 = vmatpush2.msra.mxu0 0.0
    %2129 = vmatprep.subr.mxu0 0.0
    %2130 = vmatpush2.msra.mxu0 0.0
    %2131 = vmatprep.subr.mxu0 0.0
    %2132 = vmatpush2.msra.mxu0 0.0
    %2133 = vmatprep.subr.mxu0 0.0
    %2134 = vmatpush2.msra.mxu0 0.0
    %2135 = vmatprep.subr.mxu0 0.0
    %2136 = vmatpush2.msra.mxu0 0.0
    %2137 = vmatprep.subr.mxu0 0.0
    %2138 = vmatpush2.msra.mxu0 0.0
    %2139 = vmatprep.mubr.f32.mxu0 0.0
    %2140 = vmatmul.mubr.f32.gmra.mxu0 0.0
    %v2141 = vpop.f32.mrf.mxu0
    %v2142 = vadd.f32 0.0, %v2141
    %v2143 = vpop.f32.mrf.mxu0
    %v2144 = vadd.f32 0.0, %v2143
    %2145 = vdwg.mxu0
    %2146 = vmatprep.subr.mxu0 0.0
    %2147 = vmatpush1.msra.mxu0 %v1838
    %2148 = vmatprep.subr.mxu0 0.0
    %2149 = vmatpush1.msra.mxu0 %v1835
    %2150 = vmatprep.subr.mxu0 0.0
    %2151 = vmatpush1.msra.mxu0 %v1832
    %2152 = vmatprep.subr.mxu0 0.0
    %2153 = vmatpush1.msra.mxu0 %v1829
    %2154 = vmatprep.subr.mxu0 0.0
    %2155 = vmatpush1.msra.mxu0 %v1826
    %2156 = vmatprep.subr.mxu0 0.0
    %2157 = vmatpush1.msra.mxu0 %v1823
    %2158 = vmatprep.subr.mxu0 0.0
    %2159 = vmatpush1.msra.mxu0 %v1820
    %2160 = vmatprep.subr.mxu0 0.0
    %2161 = vmatpush1.msra.mxu0 %v1817
    %2162 = vmatprep.subr.mxu0 0.0
    %2163 = vmatpush1.msra.mxu0 %v1814
    %2164 = vmatprep.subr.mxu0 0.0
    %2165 = vmatpush1.msra.mxu0 %v1811
    %2166 = vmatprep.subr.mxu0 0.0
    %2167 = vmatpush1.msra.mxu0 %v1808
    %2168 = vmatprep.subr.mxu0 0.0
    %2169 = vmatpush1.msra.mxu0 %v1805
    %2170 = vmatprep.subr.mxu0 0.0
    %2171 = vmatpush1.msra.mxu0 %v1802
    %2172 = vmatprep.subr.mxu0 0.0
    %2173 = vmatpush1.msra.mxu0 %v1799
    %2174 = vmatprep.subr.mxu0 0.0
    %2175 = vmatpush1.msra.mxu0 %v1796
    %2176 = vmatprep.subr.mxu0 0.0
    %2177 = vmatpush1.msra.mxu0 %v1793
    %2178 = vmatprep.subr.mxu0 0.0
    %2179 = vmatpush2.msra.mxu0 0.0
    %2180 = vmatprep.subr.mxu0 0.0
    %2181 = vmatpush2.msra.mxu0 0.0
    %2182 = vmatprep.subr.mxu0 0.0
    %2183 = vmatpush2.msra.mxu0 0.0
    %2184 = vmatprep.subr.mxu0 0.0
    %2185 = vmatpush2.msra.mxu0 0.0
    %2186 = vmatprep.subr.mxu0 0.0
    %2187 = vmatpush2.msra.mxu0 0.0
    %2188 = vmatprep.subr.mxu0 0.0
    %2189 = vmatpush2.msra.mxu0 0.0
    %2190 = vmatprep.subr.mxu0 0.0
    %2191 = vmatpush2.msra.mxu0 0.0
    %2192 = vmatprep.subr.mxu0 0.0
    %2193 = vmatpush2.msra.mxu0 0.0
    %2194 = vmatprep.subr.mxu0 0.0
    %2195 = vmatpush2.msra.mxu0 0.0
    %2196 = vmatprep.subr.mxu0 0.0
    %2197 = vmatpush2.msra.mxu0 0.0
    %2198 = vmatprep.subr.mxu0 0.0
    %2199 = vmatpush2.msra.mxu0 0.0
    %2200 = vmatprep.subr.mxu0 0.0
    %2201 = vmatpush2.msra.mxu0 0.0
    %2202 = vmatprep.subr.mxu0 0.0
    %2203 = vmatpush2.msra.mxu0 0.0
    %2204 = vmatprep.subr.mxu0 0.0
    %2205 = vmatpush2.msra.mxu0 0.0
    %2206 = vmatprep.subr.mxu0 0.0
    %2207 = vmatpush2.msra.mxu0 0.0
    %2208 = vmatprep.subr.mxu0 0.0
    %2209 = vmatpush2.msra.mxu0 0.0
    %2210 = vmatprep.mubr.f32.mxu0 0.0
    %2211 = vmatmul.mubr.f32.gmra.mxu0 0.0
    %v2212 = vpop.f32.mrf.mxu0
    %v2213 = vadd.f32 0.0, %v2212
    %v2214 = vpop.f32.mrf.mxu0
    %2215 = vdwg.mxu0
    %v2216 = vadd.f32 %v1924, %v2142
    %v2217 = vxor.u32 %v2216, 2147483648
    %v2218 = vmul.f32 %v2217, 1.442695
    %v2219 = vpow.pop %v2218
    %v2220 = vadd.f32 %v2219, 1.0
    %v2221 = vrcp.pop %v2220
    %v2222 = vmul.f32 1.0, %v2221
    %v2223 = vadd.f32 %v1926, %v2144
    %v2224 = vxor.u32 %v2223, 2147483648
    %v2225 = vmul.f32 %v2224, 1.442695
    %v2226 = vpow.pop %v2225
    %v2227 = vadd.f32 %v2226, 1.0
    %v2228 = vrcp.pop %v2227
    %v2229 = vmul.f32 1.0, %v2228
    %v2231 = vlaneseq
    %v2232 = vshrl.u32 %v2231, 7
    %v2233 = vsub.s32 0, %v2232
    %v2234 = vrot.slane %v1840, %v2233
    %v2236 = vadd.f32 %v2213, %v2234
    %v2237 = vmul.f32 %v2222, %v2236
    %v2238 = vadd.f32 %v2037, %v2237
    %v2239 = vtanh.pop %v2238
    %v2240 = vsub.f32 1.0, %v2229
    %v2241 = vmul.f32 %v2240, %v2239
    %v2242 = vmul.f32 %v2229, 0.0
    %v2243 = vadd.f32 %v2241, %v2242
    %2244 = vmatprep.subr.mxu0 %v1837
    %2245 = vmatpush1.msra.mxu0 %v1836
    %2246 = vmatprep.subr.mxu0 %v1834
    %2247 = vmatpush1.msra.mxu0 %v1833
    %2248 = vmatprep.subr.mxu0 %v1831
    %2249 = vmatpush1.msra.mxu0 %v1830
    %2250 = vmatprep.subr.mxu0 %v1828
    %2251 = vmatpush1.msra.mxu0 %v1827
    %2252 = vmatprep.subr.mxu0 %v1825
    %2253 = vmatpush1.msra.mxu0 %v1824
    %2254 = vmatprep.subr.mxu0 %v1822
    %2255 = vmatpush1.msra.mxu0 %v1821
    %2256 = vmatprep.subr.mxu0 %v1819
    %2257 = vmatpush1.msra.mxu0 %v1818
    %2258 = vmatprep.subr.mxu0 %v1816
    %2259 = vmatpush1.msra.mxu0 %v1815
    %2260 = vmatprep.subr.mxu0 %v1813
    %2261 = vmatpush1.msra.mxu0 %v1812
    %2262 = vmatprep.subr.mxu0 %v1810
    %2263 = vmatpush1.msra.mxu0 %v1809
    %2264 = vmatprep.subr.mxu0 %v1807
    %2265 = vmatpush1.msra.mxu0 %v1806
    %2266 = vmatprep.subr.mxu0 %v1804
    %2267 = vmatpush1.msra.mxu0 %v1803
    %2268 = vmatprep.subr.mxu0 %v1801
    %2269 = vmatpush1.msra.mxu0 %v1800
    %2270 = vmatprep.subr.mxu0 %v1798
    %2271 = vmatpush1.msra.mxu0 %v1797
    %2272 = vmatprep.subr.mxu0 %v1795
    %2273 = vmatpush1.msra.mxu0 %v1794
    %2274 = vmatprep.subr.mxu0 %v1792
    %2275 = vmatpush1.msra.mxu0 %v1791
    %2276 = vmatprep.subr.mxu0 0.0
    %2277 = vmatpush2.msra.mxu0 0.0
    %2278 = vmatprep.subr.mxu0 0.0
    %2279 = vmatpush2.msra.mxu0 0.0
    %2280 = vmatprep.subr.mxu0 0.0
    %2281 = vmatpush2.msra.mxu0 0.0
    %2282 = vmatprep.subr.mxu0 0.0
    %2283 = vmatpush2.msra.mxu0 0.0
    %2284 = vmatprep.subr.mxu0 0.0
    %2285 = vmatpush2.msra.mxu0 0.0
    %2286 = vmatprep.subr.mxu0 0.0
    %2287 = vmatpush2.msra.mxu0 0.0
    %2288 = vmatprep.subr.mxu0 0.0
    %2289 = vmatpush2.msra.mxu0 0.0
    %2290 = vmatprep.subr.mxu0 0.0
    %2291 = vmatpush2.msra.mxu0 0.0
    %2292 = vmatprep.subr.mxu0 0.0
    %2293 = vmatpush2.msra.mxu0 0.0
    %2294 = vmatprep.subr.mxu0 0.0
    %2295 = vmatpush2.msra.mxu0 0.0
    %2296 = vmatprep.subr.mxu0 0.0
    %2297 = vmatpush2.msra.mxu0 0.0
    %2298 = vmatprep.subr.mxu0 0.0
    %2299 = vmatpush2.msra.mxu0 0.0
    %2300 = vmatprep.subr.mxu0 0.0
    %2301 = vmatpush2.msra.mxu0 0.0
    %2302 = vmatprep.subr.mxu0 0.0
    %2303 = vmatpush2.msra.mxu0 0.0
    %2304 = vmatprep.subr.mxu0 0.0
    %2305 = vmatpush2.msra.mxu0 0.0
    %2306 = vmatprep.subr.mxu0 0.0
    %2307 = vmatpush2.msra.mxu0 0.0
    %2308 = vmatprep.mubr.f32.mxu0 0.0
    %2309 = vmatmul.mubr.f32.gmra.mxu0 %v2243
    %v2310 = vpop.f32.mrf.mxu0
    %v2311 = vadd.f32 0.0, %v2310
    %v2312 = vpop.f32.mrf.mxu0
    %v2313 = vadd.f32 0.0, %v2312
    %2314 = vdwg.mxu0
    %2315 = vmatprep.subr.mxu0 0.0
    %2316 = vmatpush1.msra.mxu0 %v1838
    %2317 = vmatprep.subr.mxu0 0.0
    %2318 = vmatpush1.msra.mxu0 %v1835
    %2319 = vmatprep.subr.mxu0 0.0
    %2320 = vmatpush1.msra.mxu0 %v1832
    %2321 = vmatprep.subr.mxu0 0.0
    %2322 = vmatpush1.msra.mxu0 %v1829
    %2323 = vmatprep.subr.mxu0 0.0
    %2324 = vmatpush1.msra.mxu0 %v1826
    %2325 = vmatprep.subr.mxu0 0.0
    %2326 = vmatpush1.msra.mxu0 %v1823
    %2327 = vmatprep.subr.mxu0 0.0
    %2328 = vmatpush1.msra.mxu0 %v1820
    %2329 = vmatprep.subr.mxu0 0.0
    %2330 = vmatpush1.msra.mxu0 %v1817
    %2331 = vmatprep.subr.mxu0 0.0
    %2332 = vmatpush1.msra.mxu0 %v1814
    %2333 = vmatprep.subr.mxu0 0.0
    %2334 = vmatpush1.msra.mxu0 %v1811
    %2335 = vmatprep.subr.mxu0 0.0
    %2336 = vmatpush1.msra.mxu0 %v1808
    %2337 = vmatprep.subr.mxu0 0.0
    %2338 = vmatpush1.msra.mxu0 %v1805
    %2339 = vmatprep.subr.mxu0 0.0
    %2340 = vmatpush1.msra.mxu0 %v1802
    %2341 = vmatprep.subr.mxu0 0.0
    %2342 = vmatpush1.msra.mxu0 %v1799
    %2343 = vmatprep.subr.mxu0 0.0
    %2344 = vmatpush1.msra.mxu0 %v1796
    %2345 = vmatprep.subr.mxu0 0.0
    %2346 = vmatpush1.msra.mxu0 %v1793
    %2347 = vmatprep.subr.mxu0 0.0
    %2348 = vmatpush2.msra.mxu0 0.0
    %2349 = vmatprep.subr.mxu0 0.0
    %2350 = vmatpush2.msra.mxu0 0.0
    %2351 = vmatprep.subr.mxu0 0.0
    %2352 = vmatpush2.msra.mxu0 0.0
    %2353 = vmatprep.subr.mxu0 0.0
    %2354 = vmatpush2.msra.mxu0 0.0
    %2355 = vmatprep.subr.mxu0 0.0
    %2356 = vmatpush2.msra.mxu0 0.0
    %2357 = vmatprep.subr.mxu0 0.0
    %2358 = vmatpush2.msra.mxu0 0.0
    %2359 = vmatprep.subr.mxu0 0.0
    %2360 = vmatpush2.msra.mxu0 0.0
    %2361 = vmatprep.subr.mxu0 0.0
    %2362 = vmatpush2.msra.mxu0 0.0
    %2363 = vmatprep.subr.mxu0 0.0
    %2364 = vmatpush2.msra.mxu0 0.0
    %2365 = vmatprep.subr.mxu0 0.0
    %2366 = vmatpush2.msra.mxu0 0.0
    %2367 = vmatprep.subr.mxu0 0.0
    %2368 = vmatpush2.msra.mxu0 0.0
    %2369 = vmatprep.subr.mxu0 0.0
    %2370 = vmatpush2.msra.mxu0 0.0
    %2371 = vmatprep.subr.mxu0 0.0
    %2372 = vmatpush2.msra.mxu0 0.0
    %2373 = vmatprep.subr.mxu0 0.0
    %2374 = vmatpush2.msra.mxu0 0.0
    %2375 = vmatprep.subr.mxu0 0.0
    %2376 = vmatpush2.msra.mxu0 0.0
    %2377 = vmatprep.subr.mxu0 0.0
    %2378 = vmatpush2.msra.mxu0 0.0
    %2379 = vmatprep.mubr.f32.mxu0 0.0
    %2380 = vmatmul.mubr.f32.gmra.mxu0 %v2243
    %v2381 = vpop.f32.mrf.mxu0
    %v2382 = vadd.f32 0.0, %v2381
    %v2383 = vpop.f32.mrf.mxu0
    %2384 = vdwg.mxu0
    %v2385 = vadd.f32 %v1930, %v2311
    %v2386 = vxor.u32 %v2385, 2147483648
    %v2387 = vmul.f32 %v2386, 1.442695
    %v2388 = vpow.pop %v2387
    %v2389 = vadd.f32 %v2388, 1.0
    %v2390 = vrcp.pop %v2389
    %v2391 = vmul.f32 1.0, %v2390
    %v2392 = vadd.f32 %v1932, %v2313
    %v2393 = vxor.u32 %v2392, 2147483648
    %v2394 = vmul.f32 %v2393, 1.442695
    %v2395 = vpow.pop %v2394
    %v2396 = vadd.f32 %v2395, 1.0
    %v2397 = vrcp.pop %v2396
    %v2398 = vmul.f32 1.0, %v2397
    %v2399 = vadd.f32 %v2382, %v2234
    %v2400 = vmul.f32 %v2391, %v2399
    %v2401 = vadd.f32 %v2042, %v2400
    %v2402 = vtanh.pop %v2401
    %v2403 = vsub.f32 1.0, %v2398
    %v2404 = vmul.f32 %v2403, %v2402
    %v2405 = vmul.f32 %v2398, %v2243
    %v2406 = vadd.f32 %v2404, %v2405
    %2407 = vmatprep.subr.mxu0 %v1837
    %2408 = vmatpush1.msra.mxu0 %v1836
    %2409 = vmatprep.subr.mxu0 %v1834
    %2410 = vmatpush1.msra.mxu0 %v1833
    %2411 = vmatprep.subr.mxu0 %v1831
    %2412 = vmatpush1.msra.mxu0 %v1830
    %2413 = vmatprep.subr.mxu0 %v1828
    %2414 = vmatpush1.msra.mxu0 %v1827
    %2415 = vmatprep.subr.mxu0 %v1825
    %2416 = vmatpush1.msra.mxu0 %v1824
    %2417 = vmatprep.subr.mxu0 %v1822
    %2418 = vmatpush1.msra.mxu0 %v1821
    %2419 = vmatprep.subr.mxu0 %v1819
    %2420 = vmatpush1.msra.mxu0 %v1818
    %2421 = vmatprep.subr.mxu0 %v1816
    %2422 = vmatpush1.msra.mxu0 %v1815
    %2423 = vmatprep.subr.mxu0 %v1813
    %2424 = vmatpush1.msra.mxu0 %v1812
    %2425 = vmatprep.subr.mxu0 %v1810
    %2426 = vmatpush1.msra.mxu0 %v1809
    %2427 = vmatprep.subr.mxu0 %v1807
    %2428 = vmatpush1.msra.mxu0 %v1806
    %2429 = vmatprep.subr.mxu0 %v1804
    %2430 = vmatpush1.msra.mxu0 %v1803
    %2431 = vmatprep.subr.mxu0 %v1801
    %2432 = vmatpush1.msra.mxu0 %v1800
    %2433 = vmatprep.subr.mxu0 %v1798
    %2434 = vmatpush1.msra.mxu0 %v1797
    %2435 = vmatprep.subr.mxu0 %v1795
    %2436 = vmatpush1.msra.mxu0 %v1794
    %2437 = vmatprep.subr.mxu0 %v1792
    %2438 = vmatpush1.msra.mxu0 %v1791
    %2439 = vmatprep.subr.mxu0 0.0
    %2440 = vmatpush2.msra.mxu0 0.0
    %2441 = vmatprep.subr.mxu0 0.0
    %2442 = vmatpush2.msra.mxu0 0.0
    %2443 = vmatprep.subr.mxu0 0.0
    %2444 = vmatpush2.msra.mxu0 0.0
    %2445 = vmatprep.subr.mxu0 0.0
    %2446 = vmatpush2.msra.mxu0 0.0
    %2447 = vmatprep.subr.mxu0 0.0
    %2448 = vmatpush2.msra.mxu0 0.0
    %2449 = vmatprep.subr.mxu0 0.0
    %2450 = vmatpush2.msra.mxu0 0.0
    %2451 = vmatprep.subr.mxu0 0.0
    %2452 = vmatpush2.msra.mxu0 0.0
    %2453 = vmatprep.subr.mxu0 0.0
    %2454 = vmatpush2.msra.mxu0 0.0
    %2455 = vmatprep.subr.mxu0 0.0
    %2456 = vmatpush2.msra.mxu0 0.0
    %2457 = vmatprep.subr.mxu0 0.0
    %2458 = vmatpush2.msra.mxu0 0.0
    %2459 = vmatprep.subr.mxu0 0.0
    %2460 = vmatpush2.msra.mxu0 0.0
    %2461 = vmatprep.subr.mxu0 0.0
    %2462 = vmatpush2.msra.mxu0 0.0
    %2463 = vmatprep.subr.mxu0 0.0
    %2464 = vmatpush2.msra.mxu0 0.0
    %2465 = vmatprep.subr.mxu0 0.0
    %2466 = vmatpush2.msra.mxu0 0.0
    %2467 = vmatprep.subr.mxu0 0.0
    %2468 = vmatpush2.msra.mxu0 0.0
    %2469 = vmatprep.subr.mxu0 0.0
    %2470 = vmatpush2.msra.mxu0 0.0
    %2471 = vmatprep.mubr.f32.mxu0 0.0
    %2472 = vmatmul.mubr.f32.gmra.mxu0 %v2406
    %v2473 = vpop.f32.mrf.mxu0
    %v2474 = vadd.f32 0.0, %v2473
    %v2475 = vpop.f32.mrf.mxu0
    %v2476 = vadd.f32 0.0, %v2475
    %2477 = vdwg.mxu0
    %2478 = vmatprep.subr.mxu0 0.0
    %2479 = vmatpush1.msra.mxu0 %v1838
    %2480 = vmatprep.subr.mxu0 0.0
    %2481 = vmatpush1.msra.mxu0 %v1835
    %2482 = vmatprep.subr.mxu0 0.0
    %2483 = vmatpush1.msra.mxu0 %v1832
    %2484 = vmatprep.subr.mxu0 0.0
    %2485 = vmatpush1.msra.mxu0 %v1829
    %2486 = vmatprep.subr.mxu0 0.0
    %2487 = vmatpush1.msra.mxu0 %v1826
    %2488 = vmatprep.subr.mxu0 0.0
    %2489 = vmatpush1.msra.mxu0 %v1823
    %2490 = vmatprep.subr.mxu0 0.0
    %2491 = vmatpush1.msra.mxu0 %v1820
    %2492 = vmatprep.subr.mxu0 0.0
    %2493 = vmatpush1.msra.mxu0 %v1817
    %2494 = vmatprep.subr.mxu0 0.0
    %2495 = vmatpush1.msra.mxu0 %v1814
    %2496 = vmatprep.subr.mxu0 0.0
    %2497 = vmatpush1.msra.mxu0 %v1811
    %2498 = vmatprep.subr.mxu0 0.0
    %2499 = vmatpush1.msra.mxu0 %v1808
    %2500 = vmatprep.subr.mxu0 0.0
    %2501 = vmatpush1.msra.mxu0 %v1805
    %2502 = vmatprep.subr.mxu0 0.0
    %2503 = vmatpush1.msra.mxu0 %v1802
    %2504 = vmatprep.subr.mxu0 0.0
    %2505 = vmatpush1.msra.mxu0 %v1799
    %2506 = vmatprep.subr.mxu0 0.0
    %2507 = vmatpush1.msra.mxu0 %v1796
    %2508 = vmatprep.subr.mxu0 0.0
    %2509 = vmatpush1.msra.mxu0 %v1793
    %2510 = vmatprep.subr.mxu0 0.0
    %2511 = vmatpush2.msra.mxu0 0.0
    %2512 = vmatprep.subr.mxu0 0.0
    %2513 = vmatpush2.msra.mxu0 0.0
    %2514 = vmatprep.subr.mxu0 0.0
    %2515 = vmatpush2.msra.mxu0 0.0
    %2516 = vmatprep.subr.mxu0 0.0
    %2517 = vmatpush2.msra.mxu0 0.0
    %2518 = vmatprep.subr.mxu0 0.0
    %2519 = vmatpush2.msra.mxu0 0.0
    %2520 = vmatprep.subr.mxu0 0.0
    %2521 = vmatpush2.msra.mxu0 0.0
    %2522 = vmatprep.subr.mxu0 0.0
    %2523 = vmatpush2.msra.mxu0 0.0
    %2524 = vmatprep.subr.mxu0 0.0
    %2525 = vmatpush2.msra.mxu0 0.0
    %2526 = vmatprep.subr.mxu0 0.0
    %2527 = vmatpush2.msra.mxu0 0.0
    %2528 = vmatprep.subr.mxu0 0.0
    %2529 = vmatpush2.msra.mxu0 0.0
    %2530 = vmatprep.subr.mxu0 0.0
    %2531 = vmatpush2.msra.mxu0 0.0
    %2532 = vmatprep.subr.mxu0 0.0
    %2533 = vmatpush2.msra.mxu0 0.0
    %2534 = vmatprep.subr.mxu0 0.0
    %2535 = vmatpush2.msra.mxu0 0.0
    %2536 = vmatprep.subr.mxu0 0.0
    %2537 = vmatpush2.msra.mxu0 0.0
    %2538 = vmatprep.subr.mxu0 0.0
    %2539 = vmatpush2.msra.mxu0 0.0
    %2540 = vmatprep.subr.mxu0 0.0
    %2541 = vmatpush2.msra.mxu0 0.0
    %2542 = vmatprep.mubr.f32.mxu0 0.0
    %2543 = vmatmul.mubr.f32.gmra.mxu0 %v2406
    %v2544 = vpop.f32.mrf.mxu0
    %v2545 = vadd.f32 0.0, %v2544
    %v2546 = vpop.f32.mrf.mxu0
    %2547 = vdwg.mxu0
    %v2548 = vadd.f32 %v1936, %v2474
    %v2549 = vxor.u32 %v2548, 2147483648
    %v2550 = vmul.f32 %v2549, 1.442695
    %v2551 = vpow.pop %v2550
    %v2552 = vadd.f32 %v2551, 1.0
    %v2553 = vrcp.pop %v2552
    %v2554 = vmul.f32 1.0, %v2553
    %v2555 = vadd.f32 %v1938, %v2476
    %v2556 = vxor.u32 %v2555, 2147483648
    %v2557 = vmul.f32 %v2556, 1.442695
    %v2558 = vpow.pop %v2557
    %v2559 = vadd.f32 %v2558, 1.0
    %v2560 = vrcp.pop %v2559
    %v2561 = vmul.f32 1.0, %v2560
    %v2562 = vadd.f32 %v2545, %v2234
    %v2563 = vmul.f32 %v2554, %v2562
    %v2564 = vadd.f32 %v2047, %v2563
    %v2565 = vtanh.pop %v2564
    %v2566 = vsub.f32 1.0, %v2561
    %v2567 = vmul.f32 %v2566, %v2565
    %v2568 = vmul.f32 %v2561, %v2406
    %v2569 = vadd.f32 %v2567, %v2568
    %2570 = vmatprep.subr.mxu0 %v1837
    %2571 = vmatpush1.msra.mxu0 %v1836
    %2572 = vmatprep.subr.mxu0 %v1834
    %2573 = vmatpush1.msra.mxu0 %v1833
    %2574 = vmatprep.subr.mxu0 %v1831
    %2575 = vmatpush1.msra.mxu0 %v1830
    %2576 = vmatprep.subr.mxu0 %v1828
    %2577 = vmatpush1.msra.mxu0 %v1827
    %2578 = vmatprep.subr.mxu0 %v1825
    %2579 = vmatpush1.msra.mxu0 %v1824
    %2580 = vmatprep.subr.mxu0 %v1822
    %2581 = vmatpush1.msra.mxu0 %v1821
    %2582 = vmatprep.subr.mxu0 %v1819
    %2583 = vmatpush1.msra.mxu0 %v1818
    %2584 = vmatprep.subr.mxu0 %v1816
    %2585 = vmatpush1.msra.mxu0 %v1815
    %2586 = vmatprep.subr.mxu0 %v1813
    %2587 = vmatpush1.msra.mxu0 %v1812
    %2588 = vmatprep.subr.mxu0 %v1810
    %2589 = vmatpush1.msra.mxu0 %v1809
    %2590 = vmatprep.subr.mxu0 %v1807
    %2591 = vmatpush1.msra.mxu0 %v1806
    %2592 = vmatprep.subr.mxu0 %v1804
    %2593 = vmatpush1.msra.mxu0 %v1803
    %2594 = vmatprep.subr.mxu0 %v1801
    %2595 = vmatpush1.msra.mxu0 %v1800
    %2596 = vmatprep.subr.mxu0 %v1798
    %2597 = vmatpush1.msra.mxu0 %v1797
    %2598 = vmatprep.subr.mxu0 %v1795
    %2599 = vmatpush1.msra.mxu0 %v1794
    %2600 = vmatprep.subr.mxu0 %v1792
    %2601 = vmatpush1.msra.mxu0 %v1791
    %2602 = vmatprep.subr.mxu0 0.0
    %2603 = vmatpush2.msra.mxu0 0.0
    %2604 = vmatprep.subr.mxu0 0.0
    %2605 = vmatpush2.msra.mxu0 0.0
    %2606 = vmatprep.subr.mxu0 0.0
    %2607 = vmatpush2.msra.mxu0 0.0
    %2608 = vmatprep.subr.mxu0 0.0
    %2609 = vmatpush2.msra.mxu0 0.0
    %2610 = vmatprep.subr.mxu0 0.0
    %2611 = vmatpush2.msra.mxu0 0.0
    %2612 = vmatprep.subr.mxu0 0.0
    %2613 = vmatpush2.msra.mxu0 0.0
    %2614 = vmatprep.subr.mxu0 0.0
    %2615 = vmatpush2.msra.mxu0 0.0
    %2616 = vmatprep.subr.mxu0 0.0
    %2617 = vmatpush2.msra.mxu0 0.0
    %2618 = vmatprep.subr.mxu0 0.0
    %2619 = vmatpush2.msra.mxu0 0.0
    %2620 = vmatprep.subr.mxu0 0.0
    %2621 = vmatpush2.msra.mxu0 0.0
    %2622 = vmatprep.subr.mxu0 0.0
    %2623 = vmatpush2.msra.mxu0 0.0
    %2624 = vmatprep.subr.mxu0 0.0
    %2625 = vmatpush2.msra.mxu0 0.0
    %2626 = vmatprep.subr.mxu0 0.0
    %2627 = vmatpush2.msra.mxu0 0.0
    %2628 = vmatprep.subr.mxu0 0.0
    %2629 = vmatpush2.msra.mxu0 0.0
    %2630 = vmatprep.subr.mxu0 0.0
    %2631 = vmatpush2.msra.mxu0 0.0
    %2632 = vmatprep.subr.mxu0 0.0
    %2633 = vmatpush2.msra.mxu0 0.0
    %2634 = vmatprep.mubr.f32.mxu0 0.0
    %2635 = vmatmul.mubr.f32.gmra.mxu0 %v2569
    %v2636 = vpop.f32.mrf.mxu0
    %v2637 = vadd.f32 0.0, %v2636
    %v2638 = vpop.f32.mrf.mxu0
    %v2639 = vadd.f32 0.0, %v2638
    %2640 = vdwg.mxu0
    %2641 = vmatprep.subr.mxu0 0.0
    %2642 = vmatpush1.msra.mxu0 %v1838
    %2643 = vmatprep.subr.mxu0 0.0
    %2644 = vmatpush1.msra.mxu0 %v1835
    %2645 = vmatprep.subr.mxu0 0.0
    %2646 = vmatpush1.msra.mxu0 %v1832
    %2647 = vmatprep.subr.mxu0 0.0
    %2648 = vmatpush1.msra.mxu0 %v1829
    %2649 = vmatprep.subr.mxu0 0.0
    %2650 = vmatpush1.msra.mxu0 %v1826
    %2651 = vmatprep.subr.mxu0 0.0
    %2652 = vmatpush1.msra.mxu0 %v1823
    %2653 = vmatprep.subr.mxu0 0.0
    %2654 = vmatpush1.msra.mxu0 %v1820
    %2655 = vmatprep.subr.mxu0 0.0
    %2656 = vmatpush1.msra.mxu0 %v1817
    %2657 = vmatprep.subr.mxu0 0.0
    %2658 = vmatpush1.msra.mxu0 %v1814
    %2659 = vmatprep.subr.mxu0 0.0
    %2660 = vmatpush1.msra.mxu0 %v1811
    %2661 = vmatprep.subr.mxu0 0.0
    %2662 = vmatpush1.msra.mxu0 %v1808
    %2663 = vmatprep.subr.mxu0 0.0
    %2664 = vmatpush1.msra.mxu0 %v1805
    %2665 = vmatprep.subr.mxu0 0.0
    %2666 = vmatpush1.msra.mxu0 %v1802
    %2667 = vmatprep.subr.mxu0 0.0
    %2668 = vmatpush1.msra.mxu0 %v1799
    %2669 = vmatprep.subr.mxu0 0.0
    %2670 = vmatpush1.msra.mxu0 %v1796
    %2671 = vmatprep.subr.mxu0 0.0
    %2672 = vmatpush1.msra.mxu0 %v1793
    %2673 = vmatprep.subr.mxu0 0.0
    %2674 = vmatpush2.msra.mxu0 0.0
    %2675 = vmatprep.subr.mxu0 0.0
    %2676 = vmatpush2.msra.mxu0 0.0
    %2677 = vmatprep.subr.mxu0 0.0
    %2678 = vmatpush2.msra.mxu0 0.0
    %2679 = vmatprep.subr.mxu0 0.0
    %2680 = vmatpush2.msra.mxu0 0.0
    %2681 = vmatprep.subr.mxu0 0.0
    %2682 = vmatpush2.msra.mxu0 0.0
    %2683 = vmatprep.subr.mxu0 0.0
    %2684 = vmatpush2.msra.mxu0 0.0
    %2685 = vmatprep.subr.mxu0 0.0
    %2686 = vmatpush2.msra.mxu0 0.0
    %2687 = vmatprep.subr.mxu0 0.0
    %2688 = vmatpush2.msra.mxu0 0.0
    %2689 = vmatprep.subr.mxu0 0.0
    %2690 = vmatpush2.msra.mxu0 0.0
    %2691 = vmatprep.subr.mxu0 0.0
    %2692 = vmatpush2.msra.mxu0 0.0
    %2693 = vmatprep.subr.mxu0 0.0
    %2694 = vmatpush2.msra.mxu0 0.0
    %2695 = vmatprep.subr.mxu0 0.0
    %2696 = vmatpush2.msra.mxu0 0.0
    %2697 = vmatprep.subr.mxu0 0.0
    %2698 = vmatpush2.msra.mxu0 0.0
    %2699 = vmatprep.subr.mxu0 0.0
    %2700 = vmatpush2.msra.mxu0 0.0
    %2701 = vmatprep.subr.mxu0 0.0
    %2702 = vmatpush2.msra.mxu0 0.0
    %2703 = vmatprep.subr.mxu0 0.0
    %2704 = vmatpush2.msra.mxu0 0.0
    %2705 = vmatprep.mubr.f32.mxu0 0.0
    %2706 = vmatmul.mubr.f32.gmra.mxu0 %v2569
    %v2707 = vpop.f32.mrf.mxu0
    %v2708 = vadd.f32 0.0, %v2707
    %v2709 = vpop.f32.mrf.mxu0
    %2710 = vdwg.mxu0
    %v2711 = vadd.f32 %v1942, %v2637
    %v2712 = vxor.u32 %v2711, 2147483648
    %v2713 = vmul.f32 %v2712, 1.442695
    %v2714 = vpow.pop %v2713
    %v2715 = vadd.f32 %v2714, 1.0
    %v2716 = vrcp.pop %v2715
    %v2717 = vmul.f32 1.0, %v2716
    %v2718 = vadd.f32 %v1944, %v2639
    %v2719 = vxor.u32 %v2718, 2147483648
    %v2720 = vmul.f32 %v2719, 1.442695
    %v2721 = vpow.pop %v2720
    %v2722 = vadd.f32 %v2721, 1.0
    %v2723 = vrcp.pop %v2722
    %v2724 = vmul.f32 1.0, %v2723
    %v2725 = vadd.f32 %v2708, %v2234
    %v2726 = vmul.f32 %v2717, %v2725
    %v2727 = vadd.f32 %v2052, %v2726
    %v2728 = vtanh.pop %v2727
    %v2729 = vsub.f32 1.0, %v2724
    %v2730 = vmul.f32 %v2729, %v2728
    %v2731 = vmul.f32 %v2724, %v2569
    %v2732 = vadd.f32 %v2730, %v2731
    %2733 = vmatprep.subr.mxu0 %v1837
    %2734 = vmatpush1.msra.mxu0 %v1836
    %2735 = vmatprep.subr.mxu0 %v1834
    %2736 = vmatpush1.msra.mxu0 %v1833
    %2737 = vmatprep.subr.mxu0 %v1831
    %2738 = vmatpush1.msra.mxu0 %v1830
    %2739 = vmatprep.subr.mxu0 %v1828
    %2740 = vmatpush1.msra.mxu0 %v1827
    %2741 = vmatprep.subr.mxu0 %v1825
    %2742 = vmatpush1.msra.mxu0 %v1824
    %2743 = vmatprep.subr.mxu0 %v1822
    %2744 = vmatpush1.msra.mxu0 %v1821
    %2745 = vmatprep.subr.mxu0 %v1819
    %2746 = vmatpush1.msra.mxu0 %v1818
    %2747 = vmatprep.subr.mxu0 %v1816
    %2748 = vmatpush1.msra.mxu0 %v1815
    %2749 = vmatprep.subr.mxu0 %v1813
    %2750 = vmatpush1.msra.mxu0 %v1812
    %2751 = vmatprep.subr.mxu0 %v1810
    %2752 = vmatpush1.msra.mxu0 %v1809
    %2753 = vmatprep.subr.mxu0 %v1807
    %2754 = vmatpush1.msra.mxu0 %v1806
    %2755 = vmatprep.subr.mxu0 %v1804
    %2756 = vmatpush1.msra.mxu0 %v1803
    %2757 = vmatprep.subr.mxu0 %v1801
    %2758 = vmatpush1.msra.mxu0 %v1800
    %2759 = vmatprep.subr.mxu0 %v1798
    %2760 = vmatpush1.msra.mxu0 %v1797
    %2761 = vmatprep.subr.mxu0 %v1795
    %2762 = vmatpush1.msra.mxu0 %v1794
    %2763 = vmatprep.subr.mxu0 %v1792
    %2764 = vmatpush1.msra.mxu0 %v1791
    %2765 = vmatprep.subr.mxu0 0.0
    %2766 = vmatpush2.msra.mxu0 0.0
    %2767 = vmatprep.subr.mxu0 0.0
    %2768 = vmatpush2.msra.mxu0 0.0
    %2769 = vmatprep.subr.mxu0 0.0
    %2770 = vmatpush2.msra.mxu0 0.0
    %2771 = vmatprep.subr.mxu0 0.0
    %2772 = vmatpush2.msra.mxu0 0.0
    %2773 = vmatprep.subr.mxu0 0.0
    %2774 = vmatpush2.msra.mxu0 0.0
    %2775 = vmatprep.subr.mxu0 0.0
    %2776 = vmatpush2.msra.mxu0 0.0
    %2777 = vmatprep.subr.mxu0 0.0
    %2778 = vmatpush2.msra.mxu0 0.0
    %2779 = vmatprep.subr.mxu0 0.0
    %2780 = vmatpush2.msra.mxu0 0.0
    %2781 = vmatprep.subr.mxu0 0.0
    %2782 = vmatpush2.msra.mxu0 0.0
    %2783 = vmatprep.subr.mxu0 0.0
    %2784 = vmatpush2.msra.mxu0 0.0
    %2785 = vmatprep.subr.mxu0 0.0
    %2786 = vmatpush2.msra.mxu0 0.0
    %2787 = vmatprep.subr.mxu0 0.0
    %2788 = vmatpush2.msra.mxu0 0.0
    %2789 = vmatprep.subr.mxu0 0.0
    %2790 = vmatpush2.msra.mxu0 0.0
    %2791 = vmatprep.subr.mxu0 0.0
    %2792 = vmatpush2.msra.mxu0 0.0
    %2793 = vmatprep.subr.mxu0 0.0
    %2794 = vmatpush2.msra.mxu0 0.0
    %2795 = vmatprep.subr.mxu0 0.0
    %2796 = vmatpush2.msra.mxu0 0.0
    %2797 = vmatprep.mubr.f32.mxu0 0.0
    %2798 = vmatmul.mubr.f32.gmra.mxu0 %v2732
    %v2799 = vpop.f32.mrf.mxu0
    %v2800 = vadd.f32 0.0, %v2799
    %v2801 = vpop.f32.mrf.mxu0
    %v2802 = vadd.f32 0.0, %v2801
    %2803 = vdwg.mxu0
    %2804 = vmatprep.subr.mxu0 0.0
    %2805 = vmatpush1.msra.mxu0 %v1838
    %2806 = vmatprep.subr.mxu0 0.0
    %2807 = vmatpush1.msra.mxu0 %v1835
    %2808 = vmatprep.subr.mxu0 0.0
    %2809 = vmatpush1.msra.mxu0 %v1832
    %2810 = vmatprep.subr.mxu0 0.0
    %2811 = vmatpush1.msra.mxu0 %v1829
    %2812 = vmatprep.subr.mxu0 0.0
    %2813 = vmatpush1.msra.mxu0 %v1826
    %2814 = vmatprep.subr.mxu0 0.0
    %2815 = vmatpush1.msra.mxu0 %v1823
    %2816 = vmatprep.subr.mxu0 0.0
    %2817 = vmatpush1.msra.mxu0 %v1820
    %2818 = vmatprep.subr.mxu0 0.0
    %2819 = vmatpush1.msra.mxu0 %v1817
    %2820 = vmatprep.subr.mxu0 0.0
    %2821 = vmatpush1.msra.mxu0 %v1814
    %2822 = vmatprep.subr.mxu0 0.0
    %2823 = vmatpush1.msra.mxu0 %v1811
    %2824 = vmatprep.subr.mxu0 0.0
    %2825 = vmatpush1.msra.mxu0 %v1808
    %2826 = vmatprep.subr.mxu0 0.0
    %2827 = vmatpush1.msra.mxu0 %v1805
    %2828 = vmatprep.subr.mxu0 0.0
    %2829 = vmatpush1.msra.mxu0 %v1802
    %2830 = vmatprep.subr.mxu0 0.0
    %2831 = vmatpush1.msra.mxu0 %v1799
    %2832 = vmatprep.subr.mxu0 0.0
    %2833 = vmatpush1.msra.mxu0 %v1796
    %2834 = vmatprep.subr.mxu0 0.0
    %2835 = vmatpush1.msra.mxu0 %v1793
    %2836 = vmatprep.subr.mxu0 0.0
    %2837 = vmatpush2.msra.mxu0 0.0
    %2838 = vmatprep.subr.mxu0 0.0
    %2839 = vmatpush2.msra.mxu0 0.0
    %2840 = vmatprep.subr.mxu0 0.0
    %2841 = vmatpush2.msra.mxu0 0.0
    %2842 = vmatprep.subr.mxu0 0.0
    %2843 = vmatpush2.msra.mxu0 0.0
    %2844 = vmatprep.subr.mxu0 0.0
    %2845 = vmatpush2.msra.mxu0 0.0
    %2846 = vmatprep.subr.mxu0 0.0
    %2847 = vmatpush2.msra.mxu0 0.0
    %2848 = vmatprep.subr.mxu0 0.0
    %2849 = vmatpush2.msra.mxu0 0.0
    %2850 = vmatprep.subr.mxu0 0.0
    %2851 = vmatpush2.msra.mxu0 0.0
    %2852 = vmatprep.subr.mxu0 0.0
    %2853 = vmatpush2.msra.mxu0 0.0
    %2854 = vmatprep.subr.mxu0 0.0
    %2855 = vmatpush2.msra.mxu0 0.0
    %2856 = vmatprep.subr.mxu0 0.0
    %2857 = vmatpush2.msra.mxu0 0.0
    %2858 = vmatprep.subr.mxu0 0.0
    %2859 = vmatpush2.msra.mxu0 0.0
    %2860 = vmatprep.subr.mxu0 0.0
    %2861 = vmatpush2.msra.mxu0 0.0
    %2862 = vmatprep.subr.mxu0 0.0
    %2863 = vmatpush2.msra.mxu0 0.0
    %2864 = vmatprep.subr.mxu0 0.0
    %2865 = vmatpush2.msra.mxu0 0.0
    %2866 = vmatprep.subr.mxu0 0.0
    %2867 = vmatpush2.msra.mxu0 0.0
    %2868 = vmatprep.mubr.f32.mxu0 0.0
    %2869 = vmatmul.mubr.f32.gmra.mxu0 %v2732
    %v2870 = vpop.f32.mrf.mxu0
    %v2871 = vadd.f32 0.0, %v2870
    %v2872 = vpop.f32.mrf.mxu0
    %2873 = vdwg.mxu0
    %v2874 = vadd.f32 %v1948, %v2800
    %v2875 = vxor.u32 %v2874, 2147483648
    %v2876 = vmul.f32 %v2875, 1.442695
    %v2877 = vpow.pop %v2876
    %v2878 = vadd.f32 %v2877, 1.0
    %v2879 = vrcp.pop %v2878
    %v2880 = vmul.f32 1.0, %v2879
    %v2881 = vadd.f32 %v1950, %v2802
    %v2882 = vxor.u32 %v2881, 2147483648
    %v2883 = vmul.f32 %v2882, 1.442695
    %v2884 = vpow.pop %v2883
    %v2885 = vadd.f32 %v2884, 1.0
    %v2886 = vrcp.pop %v2885
    %v2887 = vmul.f32 1.0, %v2886
    %v2888 = vadd.f32 %v2871, %v2234
    %v2889 = vmul.f32 %v2880, %v2888
    %v2890 = vadd.f32 %v2057, %v2889
    %v2891 = vtanh.pop %v2890
    %v2892 = vsub.f32 1.0, %v2887
    %v2893 = vmul.f32 %v2892, %v2891
    %v2894 = vmul.f32 %v2887, %v2732
    %v2895 = vadd.f32 %v2893, %v2894
    %2896 = vmatprep.subr.mxu0 %v1837
    %2897 = vmatpush1.msra.mxu0 %v1836
    %2898 = vmatprep.subr.mxu0 %v1834
    %2899 = vmatpush1.msra.mxu0 %v1833
    %2900 = vmatprep.subr.mxu0 %v1831
    %2901 = vmatpush1.msra.mxu0 %v1830
    %2902 = vmatprep.subr.mxu0 %v1828
    %2903 = vmatpush1.msra.mxu0 %v1827
    %2904 = vmatprep.subr.mxu0 %v1825
    %2905 = vmatpush1.msra.mxu0 %v1824
    %2906 = vmatprep.subr.mxu0 %v1822
    %2907 = vmatpush1.msra.mxu0 %v1821
    %2908 = vmatprep.subr.mxu0 %v1819
    %2909 = vmatpush1.msra.mxu0 %v1818
    %2910 = vmatprep.subr.mxu0 %v1816
    %2911 = vmatpush1.msra.mxu0 %v1815
    %2912 = vmatprep.subr.mxu0 %v1813
    %2913 = vmatpush1.msra.mxu0 %v1812
    %2914 = vmatprep.subr.mxu0 %v1810
    %2915 = vmatpush1.msra.mxu0 %v1809
    %2916 = vmatprep.subr.mxu0 %v1807
    %2917 = vmatpush1.msra.mxu0 %v1806
    %2918 = vmatprep.subr.mxu0 %v1804
    %2919 = vmatpush1.msra.mxu0 %v1803
    %2920 = vmatprep.subr.mxu0 %v1801
    %2921 = vmatpush1.msra.mxu0 %v1800
    %2922 = vmatprep.subr.mxu0 %v1798
    %2923 = vmatpush1.msra.mxu0 %v1797
    %2924 = vmatprep.subr.mxu0 %v1795
    %2925 = vmatpush1.msra.mxu0 %v1794
    %2926 = vmatprep.subr.mxu0 %v1792
    %2927 = vmatpush1.msra.mxu0 %v1791
    %2928 = vmatprep.subr.mxu0 0.0
    %2929 = vmatpush2.msra.mxu0 0.0
    %2930 = vmatprep.subr.mxu0 0.0
    %2931 = vmatpush2.msra.mxu0 0.0
    %2932 = vmatprep.subr.mxu0 0.0
    %2933 = vmatpush2.msra.mxu0 0.0
    %2934 = vmatprep.subr.mxu0 0.0
    %2935 = vmatpush2.msra.mxu0 0.0
    %2936 = vmatprep.subr.mxu0 0.0
    %2937 = vmatpush2.msra.mxu0 0.0
    %2938 = vmatprep.subr.mxu0 0.0
    %2939 = vmatpush2.msra.mxu0 0.0
    %2940 = vmatprep.subr.mxu0 0.0
    %2941 = vmatpush2.msra.mxu0 0.0
    %2942 = vmatprep.subr.mxu0 0.0
    %2943 = vmatpush2.msra.mxu0 0.0
    %2944 = vmatprep.subr.mxu0 0.0
    %2945 = vmatpush2.msra.mxu0 0.0
    %2946 = vmatprep.subr.mxu0 0.0
    %2947 = vmatpush2.msra.mxu0 0.0
    %2948 = vmatprep.subr.mxu0 0.0
    %2949 = vmatpush2.msra.mxu0 0.0
    %2950 = vmatprep.subr.mxu0 0.0
    %2951 = vmatpush2.msra.mxu0 0.0
    %2952 = vmatprep.subr.mxu0 0.0
    %2953 = vmatpush2.msra.mxu0 0.0
    %2954 = vmatprep.subr.mxu0 0.0
    %2955 = vmatpush2.msra.mxu0 0.0
    %2956 = vmatprep.subr.mxu0 0.0
    %2957 = vmatpush2.msra.mxu0 0.0
    %2958 = vmatprep.subr.mxu0 0.0
    %2959 = vmatpush2.msra.mxu0 0.0
    %2960 = vmatprep.mubr.f32.mxu0 0.0
    %2961 = vmatmul.mubr.f32.gmra.mxu0 %v2895
    %v2962 = vpop.f32.mrf.mxu0
    %v2963 = vadd.f32 0.0, %v2962
    %v2964 = vpop.f32.mrf.mxu0
    %v2965 = vadd.f32 0.0, %v2964
    %2966 = vdwg.mxu0
    %2967 = vmatprep.subr.mxu0 0.0
    %2968 = vmatpush1.msra.mxu0 %v1838
    %2969 = vmatprep.subr.mxu0 0.0
    %2970 = vmatpush1.msra.mxu0 %v1835
    %2971 = vmatprep.subr.mxu0 0.0
    %2972 = vmatpush1.msra.mxu0 %v1832
    %2973 = vmatprep.subr.mxu0 0.0
    %2974 = vmatpush1.msra.mxu0 %v1829
    %2975 = vmatprep.subr.mxu0 0.0
    %2976 = vmatpush1.msra.mxu0 %v1826
    %2977 = vmatprep.subr.mxu0 0.0
    %2978 = vmatpush1.msra.mxu0 %v1823
    %2979 = vmatprep.subr.mxu0 0.0
    %2980 = vmatpush1.msra.mxu0 %v1820
    %2981 = vmatprep.subr.mxu0 0.0
    %2982 = vmatpush1.msra.mxu0 %v1817
    %2983 = vmatprep.subr.mxu0 0.0
    %2984 = vmatpush1.msra.mxu0 %v1814
    %2985 = vmatprep.subr.mxu0 0.0
    %2986 = vmatpush1.msra.mxu0 %v1811
    %2987 = vmatprep.subr.mxu0 0.0
    %2988 = vmatpush1.msra.mxu0 %v1808
    %2989 = vmatprep.subr.mxu0 0.0
    %2990 = vmatpush1.msra.mxu0 %v1805
    %2991 = vmatprep.subr.mxu0 0.0
    %2992 = vmatpush1.msra.mxu0 %v1802
    %2993 = vmatprep.subr.mxu0 0.0
    %2994 = vmatpush1.msra.mxu0 %v1799
    %2995 = vmatprep.subr.mxu0 0.0
    %2996 = vmatpush1.msra.mxu0 %v1796
    %2997 = vmatprep.subr.mxu0 0.0
    %2998 = vmatpush1.msra.mxu0 %v1793
    %2999 = vmatprep.subr.mxu0 0.0
    %3000 = vmatpush2.msra.mxu0 0.0
    %3001 = vmatprep.subr.mxu0 0.0
    %3002 = vmatpush2.msra.mxu0 0.0
    %3003 = vmatprep.subr.mxu0 0.0
    %3004 = vmatpush2.msra.mxu0 0.0
    %3005 = vmatprep.subr.mxu0 0.0
    %3006 = vmatpush2.msra.mxu0 0.0
    %3007 = vmatprep.subr.mxu0 0.0
    %3008 = vmatpush2.msra.mxu0 0.0
    %3009 = vmatprep.subr.mxu0 0.0
    %3010 = vmatpush2.msra.mxu0 0.0
    %3011 = vmatprep.subr.mxu0 0.0
    %3012 = vmatpush2.msra.mxu0 0.0
    %3013 = vmatprep.subr.mxu0 0.0
    %3014 = vmatpush2.msra.mxu0 0.0
    %3015 = vmatprep.subr.mxu0 0.0
    %3016 = vmatpush2.msra.mxu0 0.0
    %3017 = vmatprep.subr.mxu0 0.0
    %3018 = vmatpush2.msra.mxu0 0.0
    %3019 = vmatprep.subr.mxu0 0.0
    %3020 = vmatpush2.msra.mxu0 0.0
    %3021 = vmatprep.subr.mxu0 0.0
    %3022 = vmatpush2.msra.mxu0 0.0
    %3023 = vmatprep.subr.mxu0 0.0
    %3024 = vmatpush2.msra.mxu0 0.0
    %3025 = vmatprep.subr.mxu0 0.0
    %3026 = vmatpush2.msra.mxu0 0.0
    %3027 = vmatprep.subr.mxu0 0.0
    %3028 = vmatpush2.msra.mxu0 0.0
    %3029 = vmatprep.subr.mxu0 0.0
    %3030 = vmatpush2.msra.mxu0 0.0
    %3031 = vmatprep.mubr.f32.mxu0 0.0
    %3032 = vmatmul.mubr.f32.gmra.mxu0 %v2895
    %v3033 = vpop.f32.mrf.mxu0
    %v3034 = vadd.f32 0.0, %v3033
    %v3035 = vpop.f32.mrf.mxu0
    %3036 = vdwg.mxu0
    %v3037 = vadd.f32 %v1954, %v2963
    %v3038 = vxor.u32 %v3037, 2147483648
    %v3039 = vmul.f32 %v3038, 1.442695
    %v3040 = vpow.pop %v3039
    %v3041 = vadd.f32 %v3040, 1.0
    %v3042 = vrcp.pop %v3041
    %v3043 = vmul.f32 1.0, %v3042
    %v3044 = vadd.f32 %v1956, %v2965
    %v3045 = vxor.u32 %v3044, 2147483648
    %v3046 = vmul.f32 %v3045, 1.442695
    %v3047 = vpow.pop %v3046
    %v3048 = vadd.f32 %v3047, 1.0
    %v3049 = vrcp.pop %v3048
    %v3050 = vmul.f32 1.0, %v3049
    %v3051 = vadd.f32 %v3034, %v2234
    %v3052 = vmul.f32 %v3043, %v3051
    %v3053 = vadd.f32 %v2062, %v3052
    %v3054 = vtanh.pop %v3053
    %v3055 = vsub.f32 1.0, %v3050
    %v3056 = vmul.f32 %v3055, %v3054
    %v3057 = vmul.f32 %v3050, %v2895
    %v3058 = vadd.f32 %v3056, %v3057
    %3059 = vmatprep.subr.mxu0 %v1837
    %3060 = vmatpush1.msra.mxu0 %v1836
    %3061 = vmatprep.subr.mxu0 %v1834
    %3062 = vmatpush1.msra.mxu0 %v1833
    %3063 = vmatprep.subr.mxu0 %v1831
    %3064 = vmatpush1.msra.mxu0 %v1830
    %3065 = vmatprep.subr.mxu0 %v1828
    %3066 = vmatpush1.msra.mxu0 %v1827
    %3067 = vmatprep.subr.mxu0 %v1825
    %3068 = vmatpush1.msra.mxu0 %v1824
    %3069 = vmatprep.subr.mxu0 %v1822
    %3070 = vmatpush1.msra.mxu0 %v1821
    %3071 = vmatprep.subr.mxu0 %v1819
    %3072 = vmatpush1.msra.mxu0 %v1818
    %3073 = vmatprep.subr.mxu0 %v1816
    %3074 = vmatpush1.msra.mxu0 %v1815
    %3075 = vmatprep.subr.mxu0 %v1813
    %3076 = vmatpush1.msra.mxu0 %v1812
    %3077 = vmatprep.subr.mxu0 %v1810
    %3078 = vmatpush1.msra.mxu0 %v1809
    %3079 = vmatprep.subr.mxu0 %v1807
    %3080 = vmatpush1.msra.mxu0 %v1806
    %3081 = vmatprep.subr.mxu0 %v1804
    %3082 = vmatpush1.msra.mxu0 %v1803
    %3083 = vmatprep.subr.mxu0 %v1801
    %3084 = vmatpush1.msra.mxu0 %v1800
    %3085 = vmatprep.subr.mxu0 %v1798
    %3086 = vmatpush1.msra.mxu0 %v1797
    %3087 = vmatprep.subr.mxu0 %v1795
    %3088 = vmatpush1.msra.mxu0 %v1794
    %3089 = vmatprep.subr.mxu0 %v1792
    %3090 = vmatpush1.msra.mxu0 %v1791
    %3091 = vmatprep.subr.mxu0 0.0
    %3092 = vmatpush2.msra.mxu0 0.0
    %3093 = vmatprep.subr.mxu0 0.0
    %3094 = vmatpush2.msra.mxu0 0.0
    %3095 = vmatprep.subr.mxu0 0.0
    %3096 = vmatpush2.msra.mxu0 0.0
    %3097 = vmatprep.subr.mxu0 0.0
    %3098 = vmatpush2.msra.mxu0 0.0
    %3099 = vmatprep.subr.mxu0 0.0
    %3100 = vmatpush2.msra.mxu0 0.0
    %3101 = vmatprep.subr.mxu0 0.0
    %3102 = vmatpush2.msra.mxu0 0.0
    %3103 = vmatprep.subr.mxu0 0.0
    %3104 = vmatpush2.msra.mxu0 0.0
    %3105 = vmatprep.subr.mxu0 0.0
    %3106 = vmatpush2.msra.mxu0 0.0
    %3107 = vmatprep.subr.mxu0 0.0
    %3108 = vmatpush2.msra.mxu0 0.0
    %3109 = vmatprep.subr.mxu0 0.0
    %3110 = vmatpush2.msra.mxu0 0.0
    %3111 = vmatprep.subr.mxu0 0.0
    %3112 = vmatpush2.msra.mxu0 0.0
    %3113 = vmatprep.subr.mxu0 0.0
    %3114 = vmatpush2.msra.mxu0 0.0
    %3115 = vmatprep.subr.mxu0 0.0
    %3116 = vmatpush2.msra.mxu0 0.0
    %3117 = vmatprep.subr.mxu0 0.0
    %3118 = vmatpush2.msra.mxu0 0.0
    %3119 = vmatprep.subr.mxu0 0.0
    %3120 = vmatpush2.msra.mxu0 0.0
    %3121 = vmatprep.subr.mxu0 0.0
    %3122 = vmatpush2.msra.mxu0 0.0
    %3123 = vmatprep.mubr.f32.mxu0 0.0
    %3124 = vmatmul.mubr.f32.gmra.mxu0 %v3058
    %v3125 = vpop.f32.mrf.mxu0
    %v3126 = vadd.f32 0.0, %v3125
    %v3127 = vpop.f32.mrf.mxu0
    %v3128 = vadd.f32 0.0, %v3127
    %3129 = vdwg.mxu0
    %3130 = vmatprep.subr.mxu0 0.0
    %3131 = vmatpush1.msra.mxu0 %v1838
    %3132 = vmatprep.subr.mxu0 0.0
    %3133 = vmatpush1.msra.mxu0 %v1835
    %3134 = vmatprep.subr.mxu0 0.0
    %3135 = vmatpush1.msra.mxu0 %v1832
    %3136 = vmatprep.subr.mxu0 0.0
    %3137 = vmatpush1.msra.mxu0 %v1829
    %3138 = vmatprep.subr.mxu0 0.0
    %3139 = vmatpush1.msra.mxu0 %v1826
    %3140 = vmatprep.subr.mxu0 0.0
    %3141 = vmatpush1.msra.mxu0 %v1823
    %3142 = vmatprep.subr.mxu0 0.0
    %3143 = vmatpush1.msra.mxu0 %v1820
    %3144 = vmatprep.subr.mxu0 0.0
    %3145 = vmatpush1.msra.mxu0 %v1817
    %3146 = vmatprep.subr.mxu0 0.0
    %3147 = vmatpush1.msra.mxu0 %v1814
    %3148 = vmatprep.subr.mxu0 0.0
    %3149 = vmatpush1.msra.mxu0 %v1811
    %3150 = vmatprep.subr.mxu0 0.0
    %3151 = vmatpush1.msra.mxu0 %v1808
    %3152 = vmatprep.subr.mxu0 0.0
    %3153 = vmatpush1.msra.mxu0 %v1805
    %3154 = vmatprep.subr.mxu0 0.0
    %3155 = vmatpush1.msra.mxu0 %v1802
    %3156 = vmatprep.subr.mxu0 0.0
    %3157 = vmatpush1.msra.mxu0 %v1799
    %3158 = vmatprep.subr.mxu0 0.0
    %3159 = vmatpush1.msra.mxu0 %v1796
    %3160 = vmatprep.subr.mxu0 0.0
    %3161 = vmatpush1.msra.mxu0 %v1793
    %3162 = vmatprep.subr.mxu0 0.0
    %3163 = vmatpush2.msra.mxu0 0.0
    %3164 = vmatprep.subr.mxu0 0.0
    %3165 = vmatpush2.msra.mxu0 0.0
    %3166 = vmatprep.subr.mxu0 0.0
    %3167 = vmatpush2.msra.mxu0 0.0
    %3168 = vmatprep.subr.mxu0 0.0
    %3169 = vmatpush2.msra.mxu0 0.0
    %3170 = vmatprep.subr.mxu0 0.0
    %3171 = vmatpush2.msra.mxu0 0.0
    %3172 = vmatprep.subr.mxu0 0.0
    %3173 = vmatpush2.msra.mxu0 0.0
    %3174 = vmatprep.subr.mxu0 0.0
    %3175 = vmatpush2.msra.mxu0 0.0
    %3176 = vmatprep.subr.mxu0 0.0
    %3177 = vmatpush2.msra.mxu0 0.0
    %3178 = vmatprep.subr.mxu0 0.0
    %3179 = vmatpush2.msra.mxu0 0.0
    %3180 = vmatprep.subr.mxu0 0.0
    %3181 = vmatpush2.msra.mxu0 0.0
    %3182 = vmatprep.subr.mxu0 0.0
    %3183 = vmatpush2.msra.mxu0 0.0
    %3184 = vmatprep.subr.mxu0 0.0
    %3185 = vmatpush2.msra.mxu0 0.0
    %3186 = vmatprep.subr.mxu0 0.0
    %3187 = vmatpush2.msra.mxu0 0.0
    %3188 = vmatprep.subr.mxu0 0.0
    %3189 = vmatpush2.msra.mxu0 0.0
    %3190 = vmatprep.subr.mxu0 0.0
    %3191 = vmatpush2.msra.mxu0 0.0
    %3192 = vmatprep.subr.mxu0 0.0
    %3193 = vmatpush2.msra.mxu0 0.0
    %3194 = vmatprep.mubr.f32.mxu0 0.0
    %3195 = vmatmul.mubr.f32.gmra.mxu0 %v3058
    %v3196 = vpop.f32.mrf.mxu0
    %v3197 = vadd.f32 0.0, %v3196
    %v3198 = vpop.f32.mrf.mxu0
    %3199 = vdwg.mxu0
    %v3200 = vadd.f32 %v1960, %v3126
    %v3201 = vxor.u32 %v3200, 2147483648
    %v3202 = vmul.f32 %v3201, 1.442695
    %v3203 = vpow.pop %v3202
    %v3204 = vadd.f32 %v3203, 1.0
    %v3205 = vrcp.pop %v3204
    %v3206 = vmul.f32 1.0, %v3205
    %v3207 = vadd.f32 %v1962, %v3128
    %v3208 = vxor.u32 %v3207, 2147483648
    %v3209 = vmul.f32 %v3208, 1.442695
    %v3210 = vpow.pop %v3209
    %v3211 = vadd.f32 %v3210, 1.0
    %v3212 = vrcp.pop %v3211
    %v3213 = vmul.f32 1.0, %v3212
    %v3214 = vadd.f32 %v3197, %v2234
    %v3215 = vmul.f32 %v3206, %v3214
    %v3216 = vadd.f32 %v2067, %v3215
    %v3217 = vtanh.pop %v3216
    %v3218 = vsub.f32 1.0, %v3213
    %v3219 = vmul.f32 %v3218, %v3217
    %v3220 = vmul.f32 %v3213, %v3058
    %v3221 = vadd.f32 %v3219, %v3220
    %3222 = vmatprep.subr.mxu0 %v1837
    %3223 = vmatpush1.msra.mxu0 %v1836
    %3224 = vmatprep.subr.mxu0 %v1834
    %3225 = vmatpush1.msra.mxu0 %v1833
    %3226 = vmatprep.subr.mxu0 %v1831
    %3227 = vmatpush1.msra.mxu0 %v1830
    %3228 = vmatprep.subr.mxu0 %v1828
    %3229 = vmatpush1.msra.mxu0 %v1827
    %3230 = vmatprep.subr.mxu0 %v1825
    %3231 = vmatpush1.msra.mxu0 %v1824
    %3232 = vmatprep.subr.mxu0 %v1822
    %3233 = vmatpush1.msra.mxu0 %v1821
    %3234 = vmatprep.subr.mxu0 %v1819
    %3235 = vmatpush1.msra.mxu0 %v1818
    %3236 = vmatprep.subr.mxu0 %v1816
    %3237 = vmatpush1.msra.mxu0 %v1815
    %3238 = vmatprep.subr.mxu0 %v1813
    %3239 = vmatpush1.msra.mxu0 %v1812
    %3240 = vmatprep.subr.mxu0 %v1810
    %3241 = vmatpush1.msra.mxu0 %v1809
    %3242 = vmatprep.subr.mxu0 %v1807
    %3243 = vmatpush1.msra.mxu0 %v1806
    %3244 = vmatprep.subr.mxu0 %v1804
    %3245 = vmatpush1.msra.mxu0 %v1803
    %3246 = vmatprep.subr.mxu0 %v1801
    %3247 = vmatpush1.msra.mxu0 %v1800
    %3248 = vmatprep.subr.mxu0 %v1798
    %3249 = vmatpush1.msra.mxu0 %v1797
    %3250 = vmatprep.subr.mxu0 %v1795
    %3251 = vmatpush1.msra.mxu0 %v1794
    %3252 = vmatprep.subr.mxu0 %v1792
    %3253 = vmatpush1.msra.mxu0 %v1791
    %3254 = vmatprep.subr.mxu0 0.0
    %3255 = vmatpush2.msra.mxu0 0.0
    %3256 = vmatprep.subr.mxu0 0.0
    %3257 = vmatpush2.msra.mxu0 0.0
    %3258 = vmatprep.subr.mxu0 0.0
    %3259 = vmatpush2.msra.mxu0 0.0
    %3260 = vmatprep.subr.mxu0 0.0
    %3261 = vmatpush2.msra.mxu0 0.0
    %3262 = vmatprep.subr.mxu0 0.0
    %3263 = vmatpush2.msra.mxu0 0.0
    %3264 = vmatprep.subr.mxu0 0.0
    %3265 = vmatpush2.msra.mxu0 0.0
    %3266 = vmatprep.subr.mxu0 0.0
    %3267 = vmatpush2.msra.mxu0 0.0
    %3268 = vmatprep.subr.mxu0 0.0
    %3269 = vmatpush2.msra.mxu0 0.0
    %3270 = vmatprep.subr.mxu0 0.0
    %3271 = vmatpush2.msra.mxu0 0.0
    %3272 = vmatprep.subr.mxu0 0.0
    %3273 = vmatpush2.msra.mxu0 0.0
    %3274 = vmatprep.subr.mxu0 0.0
    %3275 = vmatpush2.msra.mxu0 0.0
    %3276 = vmatprep.subr.mxu0 0.0
    %3277 = vmatpush2.msra.mxu0 0.0
    %3278 = vmatprep.subr.mxu0 0.0
    %3279 = vmatpush2.msra.mxu0 0.0
    %3280 = vmatprep.subr.mxu0 0.0
    %3281 = vmatpush2.msra.mxu0 0.0
    %3282 = vmatprep.subr.mxu0 0.0
    %3283 = vmatpush2.msra.mxu0 0.0
    %3284 = vmatprep.subr.mxu0 0.0
    %3285 = vmatpush2.msra.mxu0 0.0
    %3286 = vmatprep.mubr.f32.mxu0 0.0
    %3287 = vmatmul.mubr.f32.gmra.mxu0 %v3221
    %v3288 = vpop.f32.mrf.mxu0
    %v3289 = vadd.f32 0.0, %v3288
    %v3290 = vpop.f32.mrf.mxu0
    %v3291 = vadd.f32 0.0, %v3290
    %3292 = vdwg.mxu0
    %3293 = vmatprep.subr.mxu0 0.0
    %3294 = vmatpush1.msra.mxu0 %v1838
    %3295 = vmatprep.subr.mxu0 0.0
    %3296 = vmatpush1.msra.mxu0 %v1835
    %3297 = vmatprep.subr.mxu0 0.0
    %3298 = vmatpush1.msra.mxu0 %v1832
    %3299 = vmatprep.subr.mxu0 0.0
    %3300 = vmatpush1.msra.mxu0 %v1829
    %3301 = vmatprep.subr.mxu0 0.0
    %3302 = vmatpush1.msra.mxu0 %v1826
    %3303 = vmatprep.subr.mxu0 0.0
    %3304 = vmatpush1.msra.mxu0 %v1823
    %3305 = vmatprep.subr.mxu0 0.0
    %3306 = vmatpush1.msra.mxu0 %v1820
    %3307 = vmatprep.subr.mxu0 0.0
    %3308 = vmatpush1.msra.mxu0 %v1817
    %3309 = vmatprep.subr.mxu0 0.0
    %3310 = vmatpush1.msra.mxu0 %v1814
    %3311 = vmatprep.subr.mxu0 0.0
    %3312 = vmatpush1.msra.mxu0 %v1811
    %3313 = vmatprep.subr.mxu0 0.0
    %3314 = vmatpush1.msra.mxu0 %v1808
    %3315 = vmatprep.subr.mxu0 0.0
    %3316 = vmatpush1.msra.mxu0 %v1805
    %3317 = vmatprep.subr.mxu0 0.0
    %3318 = vmatpush1.msra.mxu0 %v1802
    %3319 = vmatprep.subr.mxu0 0.0
    %3320 = vmatpush1.msra.mxu0 %v1799
    %3321 = vmatprep.subr.mxu0 0.0
    %3322 = vmatpush1.msra.mxu0 %v1796
    %3323 = vmatprep.subr.mxu0 0.0
    %3324 = vmatpush1.msra.mxu0 %v1793
    %3325 = vmatprep.subr.mxu0 0.0
    %3326 = vmatpush2.msra.mxu0 0.0
    %3327 = vmatprep.subr.mxu0 0.0
    %3328 = vmatpush2.msra.mxu0 0.0
    %3329 = vmatprep.subr.mxu0 0.0
    %3330 = vmatpush2.msra.mxu0 0.0
    %3331 = vmatprep.subr.mxu0 0.0
    %3332 = vmatpush2.msra.mxu0 0.0
    %3333 = vmatprep.subr.mxu0 0.0
    %3334 = vmatpush2.msra.mxu0 0.0
    %3335 = vmatprep.subr.mxu0 0.0
    %3336 = vmatpush2.msra.mxu0 0.0
    %3337 = vmatprep.subr.mxu0 0.0
    %3338 = vmatpush2.msra.mxu0 0.0
    %3339 = vmatprep.subr.mxu0 0.0
    %3340 = vmatpush2.msra.mxu0 0.0
    %3341 = vmatprep.subr.mxu0 0.0
    %3342 = vmatpush2.msra.mxu0 0.0
    %3343 = vmatprep.subr.mxu0 0.0
    %3344 = vmatpush2.msra.mxu0 0.0
    %3345 = vmatprep.subr.mxu0 0.0
    %3346 = vmatpush2.msra.mxu0 0.0
    %3347 = vmatprep.subr.mxu0 0.0
    %3348 = vmatpush2.msra.mxu0 0.0
    %3349 = vmatprep.subr.mxu0 0.0
    %3350 = vmatpush2.msra.mxu0 0.0
    %3351 = vmatprep.subr.mxu0 0.0
    %3352 = vmatpush2.msra.mxu0 0.0
    %3353 = vmatprep.subr.mxu0 0.0
    %3354 = vmatpush2.msra.mxu0 0.0
    %3355 = vmatprep.subr.mxu0 0.0
    %3356 = vmatpush2.msra.mxu0 0.0
    %3357 = vmatprep.mubr.f32.mxu0 0.0
    %3358 = vmatmul.mubr.f32.gmra.mxu0 %v3221
    %v3359 = vpop.f32.mrf.mxu0
    %v3360 = vadd.f32 0.0, %v3359
    %v3361 = vpop.f32.mrf.mxu0
    %3362 = vdwg.mxu0
    %v3363 = vadd.f32 %v1966, %v3289
    %v3364 = vxor.u32 %v3363, 2147483648
    %v3365 = vmul.f32 %v3364, 1.442695
    %v3366 = vpow.pop %v3365
    %v3367 = vadd.f32 %v3366, 1.0
    %v3368 = vrcp.pop %v3367
    %v3369 = vmul.f32 1.0, %v3368
    %v3370 = vadd.f32 %v1968, %v3291
    %v3371 = vxor.u32 %v3370, 2147483648
    %v3372 = vmul.f32 %v3371, 1.442695
    %v3373 = vpow.pop %v3372
    %v3374 = vadd.f32 %v3373, 1.0
    %v3375 = vrcp.pop %v3374
    %v3376 = vmul.f32 1.0, %v3375
    %v3377 = vadd.f32 %v3360, %v2234
    %v3378 = vmul.f32 %v3369, %v3377
    %v3379 = vadd.f32 %v2072, %v3378
    %v3380 = vtanh.pop %v3379
    %v3381 = vsub.f32 1.0, %v3376
    %v3382 = vmul.f32 %v3381, %v3380
    %v3383 = vmul.f32 %v3376, %v3221
    %v3384 = vadd.f32 %v3382, %v3383
    %v3386 = vlaneseq
    %v3387 = vshrl.u32 %v3386, 7
    %v3388 = vsub.s32 0, %v3387
    %v3389 = vrot.slane %v109, %v3388
    %v3391 = vmul.f32 %v3384, %v3389
    %3392 = vadd.xlane.f32.xlu0 %v3391
    %v3393 = vpop.xlane.xlu0 %3392
    %v3395 = vlaneseq
    %v3396 = vshrl.u32 %v3395, 7
    %v3397 = vsub.s32 0, %v3396
    %v3398 = vrot.slane %v108, %v3397
    %v3400 = vadd.f32 %v3393, %v3398
    %v3401 = vxor.u32 %v3400, 2147483648
    %v3402 = vmul.f32 %v3401, 1.442695
    %v3403 = vpow.pop %v3402
    %v3404 = vadd.f32 %v3403, 1.0
    %v3405 = vrcp.pop %v3404
    %v3406 = vmul.f32 1.0, %v3405
    %vm3407 = vcmask 7168
    %3408 = vst.msk [vmem:[%s11] sm:$0xff] %vm3407, %v3406
    // Predicated region
    $region66: #{tpu_custom_call.1} parent=1 // pred_check
      _
    $region67: #{tpu_custom_call.1} parent=1 // pred_check_branch
      %3410 = sbr.rel (0) target = $region69
    $region68: #{tpu_custom_call.1} parent=1 // pred_region
      _
    $region69: #{tpu_custom_call.1} parent=1 // pred_fallthru
      _
    // Predicated region
    $region70: #{tpu_custom_call.1} parent=1 // pred_check
      _
    $region71: #{tpu_custom_call.1} parent=1 // pred_check_branch
      %3412 = sbr.rel (0) target = $region73
    $region72: #{tpu_custom_call.1} parent=1 // pred_region
      _
    $region73: #{tpu_custom_call.1} parent=1 // pred_fallthru
      _
    %3413 = vsyncpa [#allocation4], 1
    %3414 = vsyncpa [#allocation6], 1
    %3415 = vsyncpa [#allocation9], 1

</llo_original>
